<compile_context>
chip_gen: v5e
topology: v5e:2x2
jax: 0.10.0
libtpu: 0.0.40
codegen_flags: <defaults>
</compile_context>

<pallas_src>
import functools

import jax
import jax.numpy as jnp
from jax import lax
from jax.experimental import pallas as pl
from jax.experimental.pallas import tpu as pltpu


def _mha_kernel(x_ref, wqkv_ref, bqkv_ref, wout_ref, bout_ref, o_ref,
                attn_out_ref, *, embed_dim: int, num_heads: int,
                block_b: int, seq_len: int):
    """One grid step == block_b batch elements. All matmuls/softmax on-chip."""
    C = embed_dim
    H = num_heads
    D = C // H
    P = seq_len
    scaling = D ** (-0.5)

    # Fused QKV projection over all Bt batches at once: (Bt*P, C) @ (C, 3C),
    # bf16 operands, f32 accumulation, f32 bias add.
    x2d = x_ref[...].reshape(block_b * P, C).astype(jnp.bfloat16)
    qkv = jnp.dot(x2d, wqkv_ref[...], preferred_element_type=jnp.float32)
    qkv = qkv + bqkv_ref[...]                               # (1, 3C) broadcast

    q_all = qkv[:, :C] * scaling                            # scale q once
    k_all = qkv[:, C:2 * C]
    v_all = qkv[:, 2 * C:]

    # Per (batch, head) scaled-dot-product attention. The full (P, P) score
    # tile is materialized (fine for MobileViT-sized P); head outputs go
    # straight into column slices of the bf16 scratch slab (no concatenate).
    # Note: for very long sequences, a flash-style key-tiled online softmax
    # would be needed to stay inside v7x's 64 MiB VMEM.
    for b in range(block_b):
        r0 = b * P
        for h in range(H):
            c0 = h * D
            q_h = q_all[r0:r0 + P, c0:c0 + D].astype(jnp.bfloat16)   # (P, D)
            k_h = k_all[r0:r0 + P, c0:c0 + D].astype(jnp.bfloat16)   # (P, D)
            v_h = v_all[r0:r0 + P, c0:c0 + D].astype(jnp.bfloat16)   # (P, D)

            # q @ k^T via contraction on the last axes (no explicit transpose).
            s = lax.dot_general(q_h, k_h, (((1,), (1,)), ((), ())),
                                preferred_element_type=jnp.float32)  # (P, P)
            s = s - jnp.max(s, axis=-1, keepdims=True)
            p = jnp.exp(s)
            p = p * pl.reciprocal(jnp.sum(p, axis=-1, keepdims=True),
                                  approx=True)
            # attn_dropout has p=0.0 -> identity in eval/default config.
            o_h = jnp.dot(p.astype(jnp.bfloat16), v_h,
                          preferred_element_type=jnp.float32)        # (P, D)
            attn_out_ref[r0:r0 + P, c0:c0 + D] = o_h.astype(jnp.bfloat16)

    # Output projection on the fused (Bt*P, C) slab: one big MXU matmul.
    out = jnp.dot(attn_out_ref[...], wout_ref[...],
                  preferred_element_type=jnp.float32)
    out = out + bout_ref[...]                               # (1, C) broadcast
    o_ref[...] = out.reshape(block_b, P, C).astype(o_ref.dtype)


def _choose_block_b(n, p, c, x_itemsize, *, target_rows=512,
                    vmem_budget_bytes=12 * 1024 * 1024):
    """Largest divisor Bt of n whose per-step working set fits the VMEM budget
    (budget kept well under v7x's 64 MiB so double-buffering survives)."""
    best = 1
    for bt in range(1, n + 1):
        if n % bt != 0:
            continue
        rows = bt * p
        est = (2 * 2 * bt * p * c * x_itemsize   # x + out blocks, double-buffered
               + rows * 3 * c * 4                # f32 qkv intermediate
               + rows * c * (2 + 4)              # bf16 scratch + f32 proj result
               + 4 * p * p * 4                   # a few live (P, P) score tiles
               + (3 * c * c + c * c) * 2         # bf16 weights
               + 4 * c * 4)                      # biases
        if rows <= max(target_rows, p) and est <= vmem_budget_bytes:
            best = bt
    return best


def multi_head_attention(x, w_qkv, b_qkv, w_out, b_out, *, num_heads: int):
    """x: (N, P, C); w_qkv: (3C, C); b_qkv: (3C,); w_out: (C, C); b_out: (C,)."""
    n, p, c = x.shape
    assert c % num_heads == 0
    assert w_qkv.shape == (3 * c, c) and w_out.shape == (c, c)

    # One-time parameter prep (would be cached with the weights in a real
    # model): transpose to (in, out) so the kernel contracts directly on the
    # MXU, and cast to bf16. Biases stay f32 for the f32 bias add.
    w_qkv_t = jnp.asarray(w_qkv.T, dtype=jnp.bfloat16)      # (C, 3C)
    w_out_t = jnp.asarray(w_out.T, dtype=jnp.bfloat16)      # (C, C)
    b_qkv2 = b_qkv.reshape(1, 3 * c).astype(jnp.float32)
    b_out2 = b_out.reshape(1, c).astype(jnp.float32)

    block_b = _choose_block_b(n, p, c, x.dtype.itemsize)
    grid = (n // block_b,)

    kernel = functools.partial(_mha_kernel, embed_dim=c, num_heads=num_heads,
                               block_b=block_b, seq_len=p)

    return pl.pallas_call(
        kernel,
        out_shape=jax.ShapeDtypeStruct((n, p, c), x.dtype),
        grid_spec=pltpu.PrefetchScalarGridSpec(
            num_scalar_prefetch=0,
            grid=grid,
            in_specs=[
                pl.BlockSpec((block_b, p, c), lambda i: (i, 0, 0)),   # x
                pl.BlockSpec((c, 3 * c), lambda i: (0, 0)),           # w_qkv^T
                pl.BlockSpec((1, 3 * c), lambda i: (0, 0)),           # b_qkv
                pl.BlockSpec((c, c), lambda i: (0, 0)),               # w_out^T
                pl.BlockSpec((1, c), lambda i: (0, 0)),               # b_out
            ],
            out_specs=pl.BlockSpec((block_b, p, c), lambda i: (i, 0, 0)),
            scratch_shapes=[pltpu.VMEM((block_b * p, c), jnp.bfloat16)],
        ),
        compiler_params=pltpu.CompilerParams(
            dimension_semantics=("parallel",)),
    )(x, w_qkv_t, b_qkv2, w_out_t, b_out2)


def _reference(x, w_qkv, b_qkv, w_out, b_out, num_heads):
    """Plain-JAX mirror of PyTorch forward_default for validation."""
    n, p, c = x.shape
    d = c // num_heads
    qkv = jnp.einsum("npc,oc->npo", x, w_qkv) + b_qkv       # (N, P, 3C)
    qkv = qkv.reshape(n, p, 3, num_heads, d).transpose(0, 3, 2, 1, 4)
    q, k, v = qkv[:, :, 0], qkv[:, :, 1], qkv[:, :, 2]      # (N, H, P, D)
    q = q * (d ** -0.5)
    attn = jnp.einsum("nhpd,nhqd->nhpq", q, k)
    attn = jax.nn.softmax(attn, axis=-1)
    out = jnp.einsum("nhpq,nhqd->nhpd", attn, v)
    out = out.transpose(0, 2, 1, 3).reshape(n, p, c)
    return jnp.einsum("npc,oc->npo", out, w_out) + b_out


if __name__ == "__main__":
    # Small shapes consistent with the module: (N, P, C_in), C_in % heads == 0.
    # C=128 keeps the output lane-dense (multiple of 128 lanes).
    N, P, C = 4, 64, 128
    NUM_HEADS = 4

    key = jax.random.PRNGKey(0)
    kx, k1, k2, k3, k4 = jax.random.split(key, 5)

    x = jax.random.normal(kx, (N, P, C), dtype=jnp.float32)
    # Deterministic synthetic parameters (nn.Linear shapes: (out, in) + (out,)).
    w_qkv = jax.random.normal(k1, (3 * C, C), dtype=jnp.float32) * 0.05
    b_qkv = jax.random.normal(k2, (3 * C,), dtype=jnp.float32) * 0.01
    w_out = jax.random.normal(k3, (C, C), dtype=jnp.float32) * 0.05
    b_out = jax.random.normal(k4, (C,), dtype=jnp.float32) * 0.01

    out = multi_head_attention(x, w_qkv, b_qkv, w_out, b_out,
                               num_heads=NUM_HEADS)
    out = jax.block_until_ready(out)

    ref = _reference(x, w_qkv, b_qkv, w_out, b_out, NUM_HEADS)
    assert out.shape == (N, P, C)
    # bf16 MXU operands + approx reciprocal -> slightly looser tolerance.
    assert jnp.allclose(out, ref, atol=3e-2, rtol=3e-2), "mismatch vs reference"

    print("KERNEL_OK")
</pallas_src>

<mosaic_0001>
module attributes {stable_mosaic.version = 11 : i64} {
  func.func @_mha_kernel(%arg0: i32, %arg1: memref<4x64x128xf32, #tpu.memory_space<vmem>>, %arg2: memref<128x384xbf16, #tpu.memory_space<vmem>>, %arg3: memref<1x384xf32, #tpu.memory_space<vmem>>, %arg4: memref<128x128xbf16, #tpu.memory_space<vmem>>, %arg5: memref<1x128xf32, #tpu.memory_space<vmem>>, %arg6: memref<4x64x128xf32, #tpu.memory_space<vmem>>, %arg7: memref<256x128xbf16, #tpu.memory_space<vmem>>) attributes {dimension_semantics = [#tpu.dimension_semantics<parallel>], iteration_bounds = array<i64: 1>, scalar_prefetch = 0 : i64, scratch_operands = 1 : i64, tpu.core_type = #tpu.core_type<tc>, window_params = [{transform_indices = @transform_0, window_bounds = array<i64: 4, 64, 128>}, {pipeline_mode = #tpu.pipeline_mode<synchronous>, transform_indices = @transform_1, window_bounds = array<i64: 128, 384>}, {pipeline_mode = #tpu.pipeline_mode<synchronous>, transform_indices = @transform_2, window_bounds = array<i64: 1, 384>}, {pipeline_mode = #tpu.pipeline_mode<synchronous>, transform_indices = @transform_3, window_bounds = array<i64: 128, 128>}, {pipeline_mode = #tpu.pipeline_mode<synchronous>, transform_indices = @transform_4, window_bounds = array<i64: 1, 128>}, {transform_indices = @transform_5, window_bounds = array<i64: 4, 64, 128>}]} {
    %c0 = arith.constant 0 : index
    %c0_0 = arith.constant 0 : index
    %c0_1 = arith.constant 0 : index
    %0 = vector.load %arg1[%c0, %c0_0, %c0_1] : memref<4x64x128xf32, #tpu.memory_space<vmem>>, vector<4x64x128xf32>
    %1 = vector.shape_cast %0 : vector<4x64x128xf32> to vector<256x128xf32>
    %2 = arith.truncf %1 : vector<256x128xf32> to vector<256x128xbf16>
    %c0_2 = arith.constant 0 : index
    %c0_3 = arith.constant 0 : index
    %3 = vector.load %arg2[%c0_2, %c0_3] : memref<128x384xbf16, #tpu.memory_space<vmem>>, vector<128x384xbf16>
    %cst = arith.constant dense<0.000000e+00> : vector<256x384xf32>
    %4 = tpu.matmul %2, %3, %cst {dimension_numbers = #tpu.dot_dimension_numbers<[1], [0], [0], [1], [0, 0, 1, 1], [], []>} : vector<256x128xbf16>, vector<128x384xbf16>, vector<256x384xf32> -> vector<256x384xf32>
    %c0_4 = arith.constant 0 : index
    %c0_5 = arith.constant 0 : index
    %5 = vector.load %arg3[%c0_4, %c0_5] : memref<1x384xf32, #tpu.memory_space<vmem>>, vector<1x384xf32>
    %6 = vector.broadcast %5 : vector<1x384xf32> to vector<256x384xf32>
    %7 = arith.addf %4, %6 : vector<256x384xf32>
    %8 = vector.extract_strided_slice %7 {offsets = [0, 0], sizes = [256, 128], strides = [1, 1]} : vector<256x384xf32> to vector<256x128xf32>
    %cst_6 = arith.constant 0.176776692 : f32
    %9 = vector.broadcast %cst_6 : f32 to vector<256x128xf32>
    %10 = arith.mulf %8, %9 : vector<256x128xf32>
    %11 = vector.extract_strided_slice %7 {offsets = [0, 128], sizes = [256, 128], strides = [1, 1]} : vector<256x384xf32> to vector<256x128xf32>
    %12 = vector.extract_strided_slice %7 {offsets = [0, 256], sizes = [256, 128], strides = [1, 1]} : vector<256x384xf32> to vector<256x128xf32>
    %13 = vector.extract_strided_slice %10 {offsets = [0, 0], sizes = [64, 32], strides = [1, 1]} : vector<256x128xf32> to vector<64x32xf32>
    %14 = arith.truncf %13 : vector<64x32xf32> to vector<64x32xbf16>
    %15 = vector.extract_strided_slice %11 {offsets = [0, 0], sizes = [64, 32], strides = [1, 1]} : vector<256x128xf32> to vector<64x32xf32>
    %16 = arith.truncf %15 : vector<64x32xf32> to vector<64x32xbf16>
    %17 = vector.extract_strided_slice %12 {offsets = [0, 0], sizes = [64, 32], strides = [1, 1]} : vector<256x128xf32> to vector<64x32xf32>
    %18 = arith.truncf %17 : vector<64x32xf32> to vector<64x32xbf16>
    %cst_7 = arith.constant dense<0.000000e+00> : vector<64x64xf32>
    %19 = tpu.matmul %14, %16, %cst_7 {dimension_numbers = #tpu.dot_dimension_numbers<[1], [1], [0], [0], [0, 0, 1, 0], [], []>} : vector<64x32xbf16>, vector<64x32xbf16>, vector<64x64xf32> -> vector<64x64xf32>
    %cst_8 = arith.constant dense<0xFF800000> : vector<64xf32>
    %20 = vector.multi_reduction <maximumf>, %19, %cst_8 [1] : vector<64x64xf32> to vector<64xf32>
    %21 = vector.shape_cast %20 : vector<64xf32> to vector<64x1xf32>
    %22 = vector.broadcast %21 : vector<64x1xf32> to vector<64x64xf32>
    %23 = arith.subf %19, %22 : vector<64x64xf32>
    %24 = math.exp %23 : vector<64x64xf32>
    %cst_9 = arith.constant dense<0.000000e+00> : vector<64xf32>
    %25 = vector.multi_reduction <add>, %24, %cst_9 [1] : vector<64x64xf32> to vector<64xf32>
    %26 = vector.shape_cast %25 : vector<64xf32> to vector<64x1xf32>
    %27 = tpu.reciprocal %26 {approx = true} : vector<64x1xf32> -> vector<64x1xf32>
    %28 = vector.broadcast %27 : vector<64x1xf32> to vector<64x64xf32>
    %29 = arith.mulf %24, %28 : vector<64x64xf32>
    %30 = arith.truncf %29 : vector<64x64xf32> to vector<64x64xbf16>
    %cst_10 = arith.constant dense<0.000000e+00> : vector<64x32xf32>
    %31 = tpu.matmul %30, %18, %cst_10 {dimension_numbers = #tpu.dot_dimension_numbers<[1], [0], [0], [1], [0, 0, 1, 1], [], []>} : vector<64x64xbf16>, vector<64x32xbf16>, vector<64x32xf32> -> vector<64x32xf32>
    %32 = arith.truncf %31 : vector<64x32xf32> to vector<64x32xbf16>
    %c0_11 = arith.constant 0 : index
    %c0_12 = arith.constant 0 : index
    %33 = vector.load %arg7[%c0_11, %c0_12] : memref<256x128xbf16, #tpu.memory_space<vmem>>, vector<64x32xbf16>
    tpu.vector_store %arg7[%c0_11, %c0_12], %32 {strides = array<i32>} : memref<256x128xbf16, #tpu.memory_space<vmem>>, vector<64x32xbf16>,
    %34 = vector.extract_strided_slice %10 {offsets = [0, 32], sizes = [64, 32], strides = [1, 1]} : vector<256x128xf32> to vector<64x32xf32>
    %35 = arith.truncf %34 : vector<64x32xf32> to vector<64x32xbf16>
    %36 = vector.extract_strided_slice %11 {offsets = [0, 32], sizes = [64, 32], strides = [1, 1]} : vector<256x128xf32> to vector<64x32xf32>
    %37 = arith.truncf %36 : vector<64x32xf32> to vector<64x32xbf16>
    %38 = vector.extract_strided_slice %12 {offsets = [0, 32], sizes = [64, 32], strides = [1, 1]} : vector<256x128xf32> to vector<64x32xf32>
    %39 = arith.truncf %38 : vector<64x32xf32> to vector<64x32xbf16>
    %cst_13 = arith.constant dense<0.000000e+00> : vector<64x64xf32>
    %40 = tpu.matmul %35, %37, %cst_13 {dimension_numbers = #tpu.dot_dimension_numbers<[1], [1], [0], [0], [0, 0, 1, 0], [], []>} : vector<64x32xbf16>, vector<64x32xbf16>, vector<64x64xf32> -> vector<64x64xf32>
    %cst_14 = arith.constant dense<0xFF800000> : vector<64xf32>
    %41 = vector.multi_reduction <maximumf>, %40, %cst_14 [1] : vector<64x64xf32> to vector<64xf32>
    %42 = vector.shape_cast %41 : vector<64xf32> to vector<64x1xf32>
    %43 = vector.broadcast %42 : vector<64x1xf32> to vector<64x64xf32>
    %44 = arith.subf %40, %43 : vector<64x64xf32>
    %45 = math.exp %44 : vector<64x64xf32>
    %cst_15 = arith.constant dense<0.000000e+00> : vector<64xf32>
    %46 = vector.multi_reduction <add>, %45, %cst_15 [1] : vector<64x64xf32> to vector<64xf32>
    %47 = vector.shape_cast %46 : vector<64xf32> to vector<64x1xf32>
    %48 = tpu.reciprocal %47 {approx = true} : vector<64x1xf32> -> vector<64x1xf32>
    %49 = vector.broadcast %48 : vector<64x1xf32> to vector<64x64xf32>
    %50 = arith.mulf %45, %49 : vector<64x64xf32>
    %51 = arith.truncf %50 : vector<64x64xf32> to vector<64x64xbf16>
    %cst_16 = arith.constant dense<0.000000e+00> : vector<64x32xf32>
    %52 = tpu.matmul %51, %39, %cst_16 {dimension_numbers = #tpu.dot_dimension_numbers<[1], [0], [0], [1], [0, 0, 1, 1], [], []>} : vector<64x64xbf16>, vector<64x32xbf16>, vector<64x32xf32> -> vector<64x32xf32>
    %53 = arith.truncf %52 : vector<64x32xf32> to vector<64x32xbf16>
    %c0_17 = arith.constant 0 : index
    %c32 = arith.constant 32 : index
    %54 = vector.load %arg7[%c0_17, %c32] : memref<256x128xbf16, #tpu.memory_space<vmem>>, vector<64x32xbf16>
    tpu.vector_store %arg7[%c0_17, %c32], %53 {strides = array<i32>} : memref<256x128xbf16, #tpu.memory_space<vmem>>, vector<64x32xbf16>,
    %55 = vector.extract_strided_slice %10 {offsets = [0, 64], sizes = [64, 32], strides = [1, 1]} : vector<256x128xf32> to vector<64x32xf32>
    %56 = arith.truncf %55 : vector<64x32xf32> to vector<64x32xbf16>
    %57 = vector.extract_strided_slice %11 {offsets = [0, 64], sizes = [64, 32], strides = [1, 1]} : vector<256x128xf32> to vector<64x32xf32>
    %58 = arith.truncf %57 : vector<64x32xf32> to vector<64x32xbf16>
    %59 = vector.extract_strided_slice %12 {offsets = [0, 64], sizes = [64, 32], strides = [1, 1]} : vector<256x128xf32> to vector<64x32xf32>
    %60 = arith.truncf %59 : vector<64x32xf32> to vector<64x32xbf16>
    %cst_18 = arith.constant dense<0.000000e+00> : vector<64x64xf32>
    %61 = tpu.matmul %56, %58, %cst_18 {dimension_numbers = #tpu.dot_dimension_numbers<[1], [1], [0], [0], [0, 0, 1, 0], [], []>} : vector<64x32xbf16>, vector<64x32xbf16>, vector<64x64xf32> -> vector<64x64xf32>
    %cst_19 = arith.constant dense<0xFF800000> : vector<64xf32>
    %62 = vector.multi_reduction <maximumf>, %61, %cst_19 [1] : vector<64x64xf32> to vector<64xf32>
    %63 = vector.shape_cast %62 : vector<64xf32> to vector<64x1xf32>
    %64 = vector.broadcast %63 : vector<64x1xf32> to vector<64x64xf32>
    %65 = arith.subf %61, %64 : vector<64x64xf32>
    %66 = math.exp %65 : vector<64x64xf32>
    %cst_20 = arith.constant dense<0.000000e+00> : vector<64xf32>
    %67 = vector.multi_reduction <add>, %66, %cst_20 [1] : vector<64x64xf32> to vector<64xf32>
    %68 = vector.shape_cast %67 : vector<64xf32> to vector<64x1xf32>
    %69 = tpu.reciprocal %68 {approx = true} : vector<64x1xf32> -> vector<64x1xf32>
    %70 = vector.broadcast %69 : vector<64x1xf32> to vector<64x64xf32>
    %71 = arith.mulf %66, %70 : vector<64x64xf32>
    %72 = arith.truncf %71 : vector<64x64xf32> to vector<64x64xbf16>
    %cst_21 = arith.constant dense<0.000000e+00> : vector<64x32xf32>
    %73 = tpu.matmul %72, %60, %cst_21 {dimension_numbers = #tpu.dot_dimension_numbers<[1], [0], [0], [1], [0, 0, 1, 1], [], []>} : vector<64x64xbf16>, vector<64x32xbf16>, vector<64x32xf32> -> vector<64x32xf32>
    %74 = arith.truncf %73 : vector<64x32xf32> to vector<64x32xbf16>
    %c0_22 = arith.constant 0 : index
    %c64 = arith.constant 64 : index
    %75 = vector.load %arg7[%c0_22, %c64] : memref<256x128xbf16, #tpu.memory_space<vmem>>, vector<64x32xbf16>
    tpu.vector_store %arg7[%c0_22, %c64], %74 {strides = array<i32>} : memref<256x128xbf16, #tpu.memory_space<vmem>>, vector<64x32xbf16>,
    %76 = vector.extract_strided_slice %10 {offsets = [0, 96], sizes = [64, 32], strides = [1, 1]} : vector<256x128xf32> to vector<64x32xf32>
    %77 = arith.truncf %76 : vector<64x32xf32> to vector<64x32xbf16>
    %78 = vector.extract_strided_slice %11 {offsets = [0, 96], sizes = [64, 32], strides = [1, 1]} : vector<256x128xf32> to vector<64x32xf32>
    %79 = arith.truncf %78 : vector<64x32xf32> to vector<64x32xbf16>
    %80 = vector.extract_strided_slice %12 {offsets = [0, 96], sizes = [64, 32], strides = [1, 1]} : vector<256x128xf32> to vector<64x32xf32>
    %81 = arith.truncf %80 : vector<64x32xf32> to vector<64x32xbf16>
    %cst_23 = arith.constant dense<0.000000e+00> : vector<64x64xf32>
    %82 = tpu.matmul %77, %79, %cst_23 {dimension_numbers = #tpu.dot_dimension_numbers<[1], [1], [0], [0], [0, 0, 1, 0], [], []>} : vector<64x32xbf16>, vector<64x32xbf16>, vector<64x64xf32> -> vector<64x64xf32>
    %cst_24 = arith.constant dense<0xFF800000> : vector<64xf32>
    %83 = vector.multi_reduction <maximumf>, %82, %cst_24 [1] : vector<64x64xf32> to vector<64xf32>
    %84 = vector.shape_cast %83 : vector<64xf32> to vector<64x1xf32>
    %85 = vector.broadcast %84 : vector<64x1xf32> to vector<64x64xf32>
    %86 = arith.subf %82, %85 : vector<64x64xf32>
    %87 = math.exp %86 : vector<64x64xf32>
    %cst_25 = arith.constant dense<0.000000e+00> : vector<64xf32>
    %88 = vector.multi_reduction <add>, %87, %cst_25 [1] : vector<64x64xf32> to vector<64xf32>
    %89 = vector.shape_cast %88 : vector<64xf32> to vector<64x1xf32>
    %90 = tpu.reciprocal %89 {approx = true} : vector<64x1xf32> -> vector<64x1xf32>
    %91 = vector.broadcast %90 : vector<64x1xf32> to vector<64x64xf32>
    %92 = arith.mulf %87, %91 : vector<64x64xf32>
    %93 = arith.truncf %92 : vector<64x64xf32> to vector<64x64xbf16>
    %cst_26 = arith.constant dense<0.000000e+00> : vector<64x32xf32>
    %94 = tpu.matmul %93, %81, %cst_26 {dimension_numbers = #tpu.dot_dimension_numbers<[1], [0], [0], [1], [0, 0, 1, 1], [], []>} : vector<64x64xbf16>, vector<64x32xbf16>, vector<64x32xf32> -> vector<64x32xf32>
    %95 = arith.truncf %94 : vector<64x32xf32> to vector<64x32xbf16>
    %c0_27 = arith.constant 0 : index
    %c96 = arith.constant 96 : index
    %96 = vector.load %arg7[%c0_27, %c96] : memref<256x128xbf16, #tpu.memory_space<vmem>>, vector<64x32xbf16>
    tpu.vector_store %arg7[%c0_27, %c96], %95 {strides = array<i32>} : memref<256x128xbf16, #tpu.memory_space<vmem>>, vector<64x32xbf16>,
    %97 = vector.extract_strided_slice %10 {offsets = [64, 0], sizes = [64, 32], strides = [1, 1]} : vector<256x128xf32> to vector<64x32xf32>
    %98 = arith.truncf %97 : vector<64x32xf32> to vector<64x32xbf16>
    %99 = vector.extract_strided_slice %11 {offsets = [64, 0], sizes = [64, 32], strides = [1, 1]} : vector<256x128xf32> to vector<64x32xf32>
    %100 = arith.truncf %99 : vector<64x32xf32> to vector<64x32xbf16>
    %101 = vector.extract_strided_slice %12 {offsets = [64, 0], sizes = [64, 32], strides = [1, 1]} : vector<256x128xf32> to vector<64x32xf32>
    %102 = arith.truncf %101 : vector<64x32xf32> to vector<64x32xbf16>
    %cst_28 = arith.constant dense<0.000000e+00> : vector<64x64xf32>
    %103 = tpu.matmul %98, %100, %cst_28 {dimension_numbers = #tpu.dot_dimension_numbers<[1], [1], [0], [0], [0, 0, 1, 0], [], []>} : vector<64x32xbf16>, vector<64x32xbf16>, vector<64x64xf32> -> vector<64x64xf32>
    %cst_29 = arith.constant dense<0xFF800000> : vector<64xf32>
    %104 = vector.multi_reduction <maximumf>, %103, %cst_29 [1] : vector<64x64xf32> to vector<64xf32>
    %105 = vector.shape_cast %104 : vector<64xf32> to vector<64x1xf32>
    %106 = vector.broadcast %105 : vector<64x1xf32> to vector<64x64xf32>
    %107 = arith.subf %103, %106 : vector<64x64xf32>
    %108 = math.exp %107 : vector<64x64xf32>
    %cst_30 = arith.constant dense<0.000000e+00> : vector<64xf32>
    %109 = vector.multi_reduction <add>, %108, %cst_30 [1] : vector<64x64xf32> to vector<64xf32>
    %110 = vector.shape_cast %109 : vector<64xf32> to vector<64x1xf32>
    %111 = tpu.reciprocal %110 {approx = true} : vector<64x1xf32> -> vector<64x1xf32>
    %112 = vector.broadcast %111 : vector<64x1xf32> to vector<64x64xf32>
    %113 = arith.mulf %108, %112 : vector<64x64xf32>
    %114 = arith.truncf %113 : vector<64x64xf32> to vector<64x64xbf16>
    %cst_31 = arith.constant dense<0.000000e+00> : vector<64x32xf32>
    %115 = tpu.matmul %114, %102, %cst_31 {dimension_numbers = #tpu.dot_dimension_numbers<[1], [0], [0], [1], [0, 0, 1, 1], [], []>} : vector<64x64xbf16>, vector<64x32xbf16>, vector<64x32xf32> -> vector<64x32xf32>
    %116 = arith.truncf %115 : vector<64x32xf32> to vector<64x32xbf16>
    %c64_32 = arith.constant 64 : index
    %c0_33 = arith.constant 0 : index
    %117 = vector.load %arg7[%c64_32, %c0_33] : memref<256x128xbf16, #tpu.memory_space<vmem>>, vector<64x32xbf16>
    tpu.vector_store %arg7[%c64_32, %c0_33], %116 {strides = array<i32>} : memref<256x128xbf16, #tpu.memory_space<vmem>>, vector<64x32xbf16>,
    %118 = vector.extract_strided_slice %10 {offsets = [64, 32], sizes = [64, 32], strides = [1, 1]} : vector<256x128xf32> to vector<64x32xf32>
    %119 = arith.truncf %118 : vector<64x32xf32> to vector<64x32xbf16>
    %120 = vector.extract_strided_slice %11 {offsets = [64, 32], sizes = [64, 32], strides = [1, 1]} : vector<256x128xf32> to vector<64x32xf32>
    %121 = arith.truncf %120 : vector<64x32xf32> to vector<64x32xbf16>
    %122 = vector.extract_strided_slice %12 {offsets = [64, 32], sizes = [64, 32], strides = [1, 1]} : vector<256x128xf32> to vector<64x32xf32>
    %123 = arith.truncf %122 : vector<64x32xf32> to vector<64x32xbf16>
    %cst_34 = arith.constant dense<0.000000e+00> : vector<64x64xf32>
    %124 = tpu.matmul %119, %121, %cst_34 {dimension_numbers = #tpu.dot_dimension_numbers<[1], [1], [0], [0], [0, 0, 1, 0], [], []>} : vector<64x32xbf16>, vector<64x32xbf16>, vector<64x64xf32> -> vector<64x64xf32>
    %cst_35 = arith.constant dense<0xFF800000> : vector<64xf32>
    %125 = vector.multi_reduction <maximumf>, %124, %cst_35 [1] : vector<64x64xf32> to vector<64xf32>
    %126 = vector.shape_cast %125 : vector<64xf32> to vector<64x1xf32>
    %127 = vector.broadcast %126 : vector<64x1xf32> to vector<64x64xf32>
    %128 = arith.subf %124, %127 : vector<64x64xf32>
    %129 = math.exp %128 : vector<64x64xf32>
    %cst_36 = arith.constant dense<0.000000e+00> : vector<64xf32>
    %130 = vector.multi_reduction <add>, %129, %cst_36 [1] : vector<64x64xf32> to vector<64xf32>
    %131 = vector.shape_cast %130 : vector<64xf32> to vector<64x1xf32>
    %132 = tpu.reciprocal %131 {approx = true} : vector<64x1xf32> -> vector<64x1xf32>
    %133 = vector.broadcast %132 : vector<64x1xf32> to vector<64x64xf32>
    %134 = arith.mulf %129, %133 : vector<64x64xf32>
    %135 = arith.truncf %134 : vector<64x64xf32> to vector<64x64xbf16>
    %cst_37 = arith.constant dense<0.000000e+00> : vector<64x32xf32>
    %136 = tpu.matmul %135, %123, %cst_37 {dimension_numbers = #tpu.dot_dimension_numbers<[1], [0], [0], [1], [0, 0, 1, 1], [], []>} : vector<64x64xbf16>, vector<64x32xbf16>, vector<64x32xf32> -> vector<64x32xf32>
    %137 = arith.truncf %136 : vector<64x32xf32> to vector<64x32xbf16>
    %c64_38 = arith.constant 64 : index
    %c32_39 = arith.constant 32 : index
    %138 = vector.load %arg7[%c64_38, %c32_39] : memref<256x128xbf16, #tpu.memory_space<vmem>>, vector<64x32xbf16>
    tpu.vector_store %arg7[%c64_38, %c32_39], %137 {strides = array<i32>} : memref<256x128xbf16, #tpu.memory_space<vmem>>, vector<64x32xbf16>,
    %139 = vector.extract_strided_slice %10 {offsets = [64, 64], sizes = [64, 32], strides = [1, 1]} : vector<256x128xf32> to vector<64x32xf32>
    %140 = arith.truncf %139 : vector<64x32xf32> to vector<64x32xbf16>
    %141 = vector.extract_strided_slice %11 {offsets = [64, 64], sizes = [64, 32], strides = [1, 1]} : vector<256x128xf32> to vector<64x32xf32>
    %142 = arith.truncf %141 : vector<64x32xf32> to vector<64x32xbf16>
    %143 = vector.extract_strided_slice %12 {offsets = [64, 64], sizes = [64, 32], strides = [1, 1]} : vector<256x128xf32> to vector<64x32xf32>
    %144 = arith.truncf %143 : vector<64x32xf32> to vector<64x32xbf16>
    %cst_40 = arith.constant dense<0.000000e+00> : vector<64x64xf32>
    %145 = tpu.matmul %140, %142, %cst_40 {dimension_numbers = #tpu.dot_dimension_numbers<[1], [1], [0], [0], [0, 0, 1, 0], [], []>} : vector<64x32xbf16>, vector<64x32xbf16>, vector<64x64xf32> -> vector<64x64xf32>
    %cst_41 = arith.constant dense<0xFF800000> : vector<64xf32>
    %146 = vector.multi_reduction <maximumf>, %145, %cst_41 [1] : vector<64x64xf32> to vector<64xf32>
    %147 = vector.shape_cast %146 : vector<64xf32> to vector<64x1xf32>
    %148 = vector.broadcast %147 : vector<64x1xf32> to vector<64x64xf32>
    %149 = arith.subf %145, %148 : vector<64x64xf32>
    %150 = math.exp %149 : vector<64x64xf32>
    %cst_42 = arith.constant dense<0.000000e+00> : vector<64xf32>
    %151 = vector.multi_reduction <add>, %150, %cst_42 [1] : vector<64x64xf32> to vector<64xf32>
    %152 = vector.shape_cast %151 : vector<64xf32> to vector<64x1xf32>
    %153 = tpu.reciprocal %152 {approx = true} : vector<64x1xf32> -> vector<64x1xf32>
    %154 = vector.broadcast %153 : vector<64x1xf32> to vector<64x64xf32>
    %155 = arith.mulf %150, %154 : vector<64x64xf32>
    %156 = arith.truncf %155 : vector<64x64xf32> to vector<64x64xbf16>
    %cst_43 = arith.constant dense<0.000000e+00> : vector<64x32xf32>
    %157 = tpu.matmul %156, %144, %cst_43 {dimension_numbers = #tpu.dot_dimension_numbers<[1], [0], [0], [1], [0, 0, 1, 1], [], []>} : vector<64x64xbf16>, vector<64x32xbf16>, vector<64x32xf32> -> vector<64x32xf32>
    %158 = arith.truncf %157 : vector<64x32xf32> to vector<64x32xbf16>
    %c64_44 = arith.constant 64 : index
    %c64_45 = arith.constant 64 : index
    %159 = vector.load %arg7[%c64_44, %c64_45] : memref<256x128xbf16, #tpu.memory_space<vmem>>, vector<64x32xbf16>
    tpu.vector_store %arg7[%c64_44, %c64_45], %158 {strides = array<i32>} : memref<256x128xbf16, #tpu.memory_space<vmem>>, vector<64x32xbf16>,
    %160 = vector.extract_strided_slice %10 {offsets = [64, 96], sizes = [64, 32], strides = [1, 1]} : vector<256x128xf32> to vector<64x32xf32>
    %161 = arith.truncf %160 : vector<64x32xf32> to vector<64x32xbf16>
    %162 = vector.extract_strided_slice %11 {offsets = [64, 96], sizes = [64, 32], strides = [1, 1]} : vector<256x128xf32> to vector<64x32xf32>
    %163 = arith.truncf %162 : vector<64x32xf32> to vector<64x32xbf16>
    %164 = vector.extract_strided_slice %12 {offsets = [64, 96], sizes = [64, 32], strides = [1, 1]} : vector<256x128xf32> to vector<64x32xf32>
    %165 = arith.truncf %164 : vector<64x32xf32> to vector<64x32xbf16>
    %cst_46 = arith.constant dense<0.000000e+00> : vector<64x64xf32>
    %166 = tpu.matmul %161, %163, %cst_46 {dimension_numbers = #tpu.dot_dimension_numbers<[1], [1], [0], [0], [0, 0, 1, 0], [], []>} : vector<64x32xbf16>, vector<64x32xbf16>, vector<64x64xf32> -> vector<64x64xf32>
    %cst_47 = arith.constant dense<0xFF800000> : vector<64xf32>
    %167 = vector.multi_reduction <maximumf>, %166, %cst_47 [1] : vector<64x64xf32> to vector<64xf32>
    %168 = vector.shape_cast %167 : vector<64xf32> to vector<64x1xf32>
    %169 = vector.broadcast %168 : vector<64x1xf32> to vector<64x64xf32>
    %170 = arith.subf %166, %169 : vector<64x64xf32>
    %171 = math.exp %170 : vector<64x64xf32>
    %cst_48 = arith.constant dense<0.000000e+00> : vector<64xf32>
    %172 = vector.multi_reduction <add>, %171, %cst_48 [1] : vector<64x64xf32> to vector<64xf32>
    %173 = vector.shape_cast %172 : vector<64xf32> to vector<64x1xf32>
    %174 = tpu.reciprocal %173 {approx = true} : vector<64x1xf32> -> vector<64x1xf32>
    %175 = vector.broadcast %174 : vector<64x1xf32> to vector<64x64xf32>
    %176 = arith.mulf %171, %175 : vector<64x64xf32>
    %177 = arith.truncf %176 : vector<64x64xf32> to vector<64x64xbf16>
    %cst_49 = arith.constant dense<0.000000e+00> : vector<64x32xf32>
    %178 = tpu.matmul %177, %165, %cst_49 {dimension_numbers = #tpu.dot_dimension_numbers<[1], [0], [0], [1], [0, 0, 1, 1], [], []>} : vector<64x64xbf16>, vector<64x32xbf16>, vector<64x32xf32> -> vector<64x32xf32>
    %179 = arith.truncf %178 : vector<64x32xf32> to vector<64x32xbf16>
    %c64_50 = arith.constant 64 : index
    %c96_51 = arith.constant 96 : index
    %180 = vector.load %arg7[%c64_50, %c96_51] : memref<256x128xbf16, #tpu.memory_space<vmem>>, vector<64x32xbf16>
    tpu.vector_store %arg7[%c64_50, %c96_51], %179 {strides = array<i32>} : memref<256x128xbf16, #tpu.memory_space<vmem>>, vector<64x32xbf16>,
    %181 = vector.extract_strided_slice %10 {offsets = [128, 0], sizes = [64, 32], strides = [1, 1]} : vector<256x128xf32> to vector<64x32xf32>
    %182 = arith.truncf %181 : vector<64x32xf32> to vector<64x32xbf16>
    %183 = vector.extract_strided_slice %11 {offsets = [128, 0], sizes = [64, 32], strides = [1, 1]} : vector<256x128xf32> to vector<64x32xf32>
    %184 = arith.truncf %183 : vector<64x32xf32> to vector<64x32xbf16>
    %185 = vector.extract_strided_slice %12 {offsets = [128, 0], sizes = [64, 32], strides = [1, 1]} : vector<256x128xf32> to vector<64x32xf32>
    %186 = arith.truncf %185 : vector<64x32xf32> to vector<64x32xbf16>
    %cst_52 = arith.constant dense<0.000000e+00> : vector<64x64xf32>
    %187 = tpu.matmul %182, %184, %cst_52 {dimension_numbers = #tpu.dot_dimension_numbers<[1], [1], [0], [0], [0, 0, 1, 0], [], []>} : vector<64x32xbf16>, vector<64x32xbf16>, vector<64x64xf32> -> vector<64x64xf32>
    %cst_53 = arith.constant dense<0xFF800000> : vector<64xf32>
    %188 = vector.multi_reduction <maximumf>, %187, %cst_53 [1] : vector<64x64xf32> to vector<64xf32>
    %189 = vector.shape_cast %188 : vector<64xf32> to vector<64x1xf32>
    %190 = vector.broadcast %189 : vector<64x1xf32> to vector<64x64xf32>
    %191 = arith.subf %187, %190 : vector<64x64xf32>
    %192 = math.exp %191 : vector<64x64xf32>
    %cst_54 = arith.constant dense<0.000000e+00> : vector<64xf32>
    %193 = vector.multi_reduction <add>, %192, %cst_54 [1] : vector<64x64xf32> to vector<64xf32>
    %194 = vector.shape_cast %193 : vector<64xf32> to vector<64x1xf32>
    %195 = tpu.reciprocal %194 {approx = true} : vector<64x1xf32> -> vector<64x1xf32>
    %196 = vector.broadcast %195 : vector<64x1xf32> to vector<64x64xf32>
    %197 = arith.mulf %192, %196 : vector<64x64xf32>
    %198 = arith.truncf %197 : vector<64x64xf32> to vector<64x64xbf16>
    %cst_55 = arith.constant dense<0.000000e+00> : vector<64x32xf32>
    %199 = tpu.matmul %198, %186, %cst_55 {dimension_numbers = #tpu.dot_dimension_numbers<[1], [0], [0], [1], [0, 0, 1, 1], [], []>} : vector<64x64xbf16>, vector<64x32xbf16>, vector<64x32xf32> -> vector<64x32xf32>
    %200 = arith.truncf %199 : vector<64x32xf32> to vector<64x32xbf16>
    %c128 = arith.constant 128 : index
    %c0_56 = arith.constant 0 : index
    %201 = vector.load %arg7[%c128, %c0_56] : memref<256x128xbf16, #tpu.memory_space<vmem>>, vector<64x32xbf16>
    tpu.vector_store %arg7[%c128, %c0_56], %200 {strides = array<i32>} : memref<256x128xbf16, #tpu.memory_space<vmem>>, vector<64x32xbf16>,
    %202 = vector.extract_strided_slice %10 {offsets = [128, 32], sizes = [64, 32], strides = [1, 1]} : vector<256x128xf32> to vector<64x32xf32>
    %203 = arith.truncf %202 : vector<64x32xf32> to vector<64x32xbf16>
    %204 = vector.extract_strided_slice %11 {offsets = [128, 32], sizes = [64, 32], strides = [1, 1]} : vector<256x128xf32> to vector<64x32xf32>
    %205 = arith.truncf %204 : vector<64x32xf32> to vector<64x32xbf16>
    %206 = vector.extract_strided_slice %12 {offsets = [128, 32], sizes = [64, 32], strides = [1, 1]} : vector<256x128xf32> to vector<64x32xf32>
    %207 = arith.truncf %206 : vector<64x32xf32> to vector<64x32xbf16>
    %cst_57 = arith.constant dense<0.000000e+00> : vector<64x64xf32>
    %208 = tpu.matmul %203, %205, %cst_57 {dimension_numbers = #tpu.dot_dimension_numbers<[1], [1], [0], [0], [0, 0, 1, 0], [], []>} : vector<64x32xbf16>, vector<64x32xbf16>, vector<64x64xf32> -> vector<64x64xf32>
    %cst_58 = arith.constant dense<0xFF800000> : vector<64xf32>
    %209 = vector.multi_reduction <maximumf>, %208, %cst_58 [1] : vector<64x64xf32> to vector<64xf32>
    %210 = vector.shape_cast %209 : vector<64xf32> to vector<64x1xf32>
    %211 = vector.broadcast %210 : vector<64x1xf32> to vector<64x64xf32>
    %212 = arith.subf %208, %211 : vector<64x64xf32>
    %213 = math.exp %212 : vector<64x64xf32>
    %cst_59 = arith.constant dense<0.000000e+00> : vector<64xf32>
    %214 = vector.multi_reduction <add>, %213, %cst_59 [1] : vector<64x64xf32> to vector<64xf32>
    %215 = vector.shape_cast %214 : vector<64xf32> to vector<64x1xf32>
    %216 = tpu.reciprocal %215 {approx = true} : vector<64x1xf32> -> vector<64x1xf32>
    %217 = vector.broadcast %216 : vector<64x1xf32> to vector<64x64xf32>
    %218 = arith.mulf %213, %217 : vector<64x64xf32>
    %219 = arith.truncf %218 : vector<64x64xf32> to vector<64x64xbf16>
    %cst_60 = arith.constant dense<0.000000e+00> : vector<64x32xf32>
    %220 = tpu.matmul %219, %207, %cst_60 {dimension_numbers = #tpu.dot_dimension_numbers<[1], [0], [0], [1], [0, 0, 1, 1], [], []>} : vector<64x64xbf16>, vector<64x32xbf16>, vector<64x32xf32> -> vector<64x32xf32>
    %221 = arith.truncf %220 : vector<64x32xf32> to vector<64x32xbf16>
    %c128_61 = arith.constant 128 : index
    %c32_62 = arith.constant 32 : index
    %222 = vector.load %arg7[%c128_61, %c32_62] : memref<256x128xbf16, #tpu.memory_space<vmem>>, vector<64x32xbf16>
    tpu.vector_store %arg7[%c128_61, %c32_62], %221 {strides = array<i32>} : memref<256x128xbf16, #tpu.memory_space<vmem>>, vector<64x32xbf16>,
    %223 = vector.extract_strided_slice %10 {offsets = [128, 64], sizes = [64, 32], strides = [1, 1]} : vector<256x128xf32> to vector<64x32xf32>
    %224 = arith.truncf %223 : vector<64x32xf32> to vector<64x32xbf16>
    %225 = vector.extract_strided_slice %11 {offsets = [128, 64], sizes = [64, 32], strides = [1, 1]} : vector<256x128xf32> to vector<64x32xf32>
    %226 = arith.truncf %225 : vector<64x32xf32> to vector<64x32xbf16>
    %227 = vector.extract_strided_slice %12 {offsets = [128, 64], sizes = [64, 32], strides = [1, 1]} : vector<256x128xf32> to vector<64x32xf32>
    %228 = arith.truncf %227 : vector<64x32xf32> to vector<64x32xbf16>
    %cst_63 = arith.constant dense<0.000000e+00> : vector<64x64xf32>
    %229 = tpu.matmul %224, %226, %cst_63 {dimension_numbers = #tpu.dot_dimension_numbers<[1], [1], [0], [0], [0, 0, 1, 0], [], []>} : vector<64x32xbf16>, vector<64x32xbf16>, vector<64x64xf32> -> vector<64x64xf32>
    %cst_64 = arith.constant dense<0xFF800000> : vector<64xf32>
    %230 = vector.multi_reduction <maximumf>, %229, %cst_64 [1] : vector<64x64xf32> to vector<64xf32>
    %231 = vector.shape_cast %230 : vector<64xf32> to vector<64x1xf32>
    %232 = vector.broadcast %231 : vector<64x1xf32> to vector<64x64xf32>
    %233 = arith.subf %229, %232 : vector<64x64xf32>
    %234 = math.exp %233 : vector<64x64xf32>
    %cst_65 = arith.constant dense<0.000000e+00> : vector<64xf32>
    %235 = vector.multi_reduction <add>, %234, %cst_65 [1] : vector<64x64xf32> to vector<64xf32>
    %236 = vector.shape_cast %235 : vector<64xf32> to vector<64x1xf32>
    %237 = tpu.reciprocal %236 {approx = true} : vector<64x1xf32> -> vector<64x1xf32>
    %238 = vector.broadcast %237 : vector<64x1xf32> to vector<64x64xf32>
    %239 = arith.mulf %234, %238 : vector<64x64xf32>
    %240 = arith.truncf %239 : vector<64x64xf32> to vector<64x64xbf16>
    %cst_66 = arith.constant dense<0.000000e+00> : vector<64x32xf32>
    %241 = tpu.matmul %240, %228, %cst_66 {dimension_numbers = #tpu.dot_dimension_numbers<[1], [0], [0], [1], [0, 0, 1, 1], [], []>} : vector<64x64xbf16>, vector<64x32xbf16>, vector<64x32xf32> -> vector<64x32xf32>
    %242 = arith.truncf %241 : vector<64x32xf32> to vector<64x32xbf16>
    %c128_67 = arith.constant 128 : index
    %c64_68 = arith.constant 64 : index
    %243 = vector.load %arg7[%c128_67, %c64_68] : memref<256x128xbf16, #tpu.memory_space<vmem>>, vector<64x32xbf16>
    tpu.vector_store %arg7[%c128_67, %c64_68], %242 {strides = array<i32>} : memref<256x128xbf16, #tpu.memory_space<vmem>>, vector<64x32xbf16>,
    %244 = vector.extract_strided_slice %10 {offsets = [128, 96], sizes = [64, 32], strides = [1, 1]} : vector<256x128xf32> to vector<64x32xf32>
    %245 = arith.truncf %244 : vector<64x32xf32> to vector<64x32xbf16>
    %246 = vector.extract_strided_slice %11 {offsets = [128, 96], sizes = [64, 32], strides = [1, 1]} : vector<256x128xf32> to vector<64x32xf32>
    %247 = arith.truncf %246 : vector<64x32xf32> to vector<64x32xbf16>
    %248 = vector.extract_strided_slice %12 {offsets = [128, 96], sizes = [64, 32], strides = [1, 1]} : vector<256x128xf32> to vector<64x32xf32>
    %249 = arith.truncf %248 : vector<64x32xf32> to vector<64x32xbf16>
    %cst_69 = arith.constant dense<0.000000e+00> : vector<64x64xf32>
    %250 = tpu.matmul %245, %247, %cst_69 {dimension_numbers = #tpu.dot_dimension_numbers<[1], [1], [0], [0], [0, 0, 1, 0], [], []>} : vector<64x32xbf16>, vector<64x32xbf16>, vector<64x64xf32> -> vector<64x64xf32>
    %cst_70 = arith.constant dense<0xFF800000> : vector<64xf32>
    %251 = vector.multi_reduction <maximumf>, %250, %cst_70 [1] : vector<64x64xf32> to vector<64xf32>
    %252 = vector.shape_cast %251 : vector<64xf32> to vector<64x1xf32>
    %253 = vector.broadcast %252 : vector<64x1xf32> to vector<64x64xf32>
    %254 = arith.subf %250, %253 : vector<64x64xf32>
    %255 = math.exp %254 : vector<64x64xf32>
    %cst_71 = arith.constant dense<0.000000e+00> : vector<64xf32>
    %256 = vector.multi_reduction <add>, %255, %cst_71 [1] : vector<64x64xf32> to vector<64xf32>
    %257 = vector.shape_cast %256 : vector<64xf32> to vector<64x1xf32>
    %258 = tpu.reciprocal %257 {approx = true} : vector<64x1xf32> -> vector<64x1xf32>
    %259 = vector.broadcast %258 : vector<64x1xf32> to vector<64x64xf32>
    %260 = arith.mulf %255, %259 : vector<64x64xf32>
    %261 = arith.truncf %260 : vector<64x64xf32> to vector<64x64xbf16>
    %cst_72 = arith.constant dense<0.000000e+00> : vector<64x32xf32>
    %262 = tpu.matmul %261, %249, %cst_72 {dimension_numbers = #tpu.dot_dimension_numbers<[1], [0], [0], [1], [0, 0, 1, 1], [], []>} : vector<64x64xbf16>, vector<64x32xbf16>, vector<64x32xf32> -> vector<64x32xf32>
    %263 = arith.truncf %262 : vector<64x32xf32> to vector<64x32xbf16>
    %c128_73 = arith.constant 128 : index
    %c96_74 = arith.constant 96 : index
    %264 = vector.load %arg7[%c128_73, %c96_74] : memref<256x128xbf16, #tpu.memory_space<vmem>>, vector<64x32xbf16>
    tpu.vector_store %arg7[%c128_73, %c96_74], %263 {strides = array<i32>} : memref<256x128xbf16, #tpu.memory_space<vmem>>, vector<64x32xbf16>,
    %265 = vector.extract_strided_slice %10 {offsets = [192, 0], sizes = [64, 32], strides = [1, 1]} : vector<256x128xf32> to vector<64x32xf32>
    %266 = arith.truncf %265 : vector<64x32xf32> to vector<64x32xbf16>
    %267 = vector.extract_strided_slice %11 {offsets = [192, 0], sizes = [64, 32], strides = [1, 1]} : vector<256x128xf32> to vector<64x32xf32>
    %268 = arith.truncf %267 : vector<64x32xf32> to vector<64x32xbf16>
    %269 = vector.extract_strided_slice %12 {offsets = [192, 0], sizes = [64, 32], strides = [1, 1]} : vector<256x128xf32> to vector<64x32xf32>
    %270 = arith.truncf %269 : vector<64x32xf32> to vector<64x32xbf16>
    %cst_75 = arith.constant dense<0.000000e+00> : vector<64x64xf32>
    %271 = tpu.matmul %266, %268, %cst_75 {dimension_numbers = #tpu.dot_dimension_numbers<[1], [1], [0], [0], [0, 0, 1, 0], [], []>} : vector<64x32xbf16>, vector<64x32xbf16>, vector<64x64xf32> -> vector<64x64xf32>
    %cst_76 = arith.constant dense<0xFF800000> : vector<64xf32>
    %272 = vector.multi_reduction <maximumf>, %271, %cst_76 [1] : vector<64x64xf32> to vector<64xf32>
    %273 = vector.shape_cast %272 : vector<64xf32> to vector<64x1xf32>
    %274 = vector.broadcast %273 : vector<64x1xf32> to vector<64x64xf32>
    %275 = arith.subf %271, %274 : vector<64x64xf32>
    %276 = math.exp %275 : vector<64x64xf32>
    %cst_77 = arith.constant dense<0.000000e+00> : vector<64xf32>
    %277 = vector.multi_reduction <add>, %276, %cst_77 [1] : vector<64x64xf32> to vector<64xf32>
    %278 = vector.shape_cast %277 : vector<64xf32> to vector<64x1xf32>
    %279 = tpu.reciprocal %278 {approx = true} : vector<64x1xf32> -> vector<64x1xf32>
    %280 = vector.broadcast %279 : vector<64x1xf32> to vector<64x64xf32>
    %281 = arith.mulf %276, %280 : vector<64x64xf32>
    %282 = arith.truncf %281 : vector<64x64xf32> to vector<64x64xbf16>
    %cst_78 = arith.constant dense<0.000000e+00> : vector<64x32xf32>
    %283 = tpu.matmul %282, %270, %cst_78 {dimension_numbers = #tpu.dot_dimension_numbers<[1], [0], [0], [1], [0, 0, 1, 1], [], []>} : vector<64x64xbf16>, vector<64x32xbf16>, vector<64x32xf32> -> vector<64x32xf32>
    %284 = arith.truncf %283 : vector<64x32xf32> to vector<64x32xbf16>
    %c192 = arith.constant 192 : index
    %c0_79 = arith.constant 0 : index
    %285 = vector.load %arg7[%c192, %c0_79] : memref<256x128xbf16, #tpu.memory_space<vmem>>, vector<64x32xbf16>
    tpu.vector_store %arg7[%c192, %c0_79], %284 {strides = array<i32>} : memref<256x128xbf16, #tpu.memory_space<vmem>>, vector<64x32xbf16>,
    %286 = vector.extract_strided_slice %10 {offsets = [192, 32], sizes = [64, 32], strides = [1, 1]} : vector<256x128xf32> to vector<64x32xf32>
    %287 = arith.truncf %286 : vector<64x32xf32> to vector<64x32xbf16>
    %288 = vector.extract_strided_slice %11 {offsets = [192, 32], sizes = [64, 32], strides = [1, 1]} : vector<256x128xf32> to vector<64x32xf32>
    %289 = arith.truncf %288 : vector<64x32xf32> to vector<64x32xbf16>
    %290 = vector.extract_strided_slice %12 {offsets = [192, 32], sizes = [64, 32], strides = [1, 1]} : vector<256x128xf32> to vector<64x32xf32>
    %291 = arith.truncf %290 : vector<64x32xf32> to vector<64x32xbf16>
    %cst_80 = arith.constant dense<0.000000e+00> : vector<64x64xf32>
    %292 = tpu.matmul %287, %289, %cst_80 {dimension_numbers = #tpu.dot_dimension_numbers<[1], [1], [0], [0], [0, 0, 1, 0], [], []>} : vector<64x32xbf16>, vector<64x32xbf16>, vector<64x64xf32> -> vector<64x64xf32>
    %cst_81 = arith.constant dense<0xFF800000> : vector<64xf32>
    %293 = vector.multi_reduction <maximumf>, %292, %cst_81 [1] : vector<64x64xf32> to vector<64xf32>
    %294 = vector.shape_cast %293 : vector<64xf32> to vector<64x1xf32>
    %295 = vector.broadcast %294 : vector<64x1xf32> to vector<64x64xf32>
    %296 = arith.subf %292, %295 : vector<64x64xf32>
    %297 = math.exp %296 : vector<64x64xf32>
    %cst_82 = arith.constant dense<0.000000e+00> : vector<64xf32>
    %298 = vector.multi_reduction <add>, %297, %cst_82 [1] : vector<64x64xf32> to vector<64xf32>
    %299 = vector.shape_cast %298 : vector<64xf32> to vector<64x1xf32>
    %300 = tpu.reciprocal %299 {approx = true} : vector<64x1xf32> -> vector<64x1xf32>
    %301 = vector.broadcast %300 : vector<64x1xf32> to vector<64x64xf32>
    %302 = arith.mulf %297, %301 : vector<64x64xf32>
    %303 = arith.truncf %302 : vector<64x64xf32> to vector<64x64xbf16>
    %cst_83 = arith.constant dense<0.000000e+00> : vector<64x32xf32>
    %304 = tpu.matmul %303, %291, %cst_83 {dimension_numbers = #tpu.dot_dimension_numbers<[1], [0], [0], [1], [0, 0, 1, 1], [], []>} : vector<64x64xbf16>, vector<64x32xbf16>, vector<64x32xf32> -> vector<64x32xf32>
    %305 = arith.truncf %304 : vector<64x32xf32> to vector<64x32xbf16>
    %c192_84 = arith.constant 192 : index
    %c32_85 = arith.constant 32 : index
    %306 = vector.load %arg7[%c192_84, %c32_85] : memref<256x128xbf16, #tpu.memory_space<vmem>>, vector<64x32xbf16>
    tpu.vector_store %arg7[%c192_84, %c32_85], %305 {strides = array<i32>} : memref<256x128xbf16, #tpu.memory_space<vmem>>, vector<64x32xbf16>,
    %307 = vector.extract_strided_slice %10 {offsets = [192, 64], sizes = [64, 32], strides = [1, 1]} : vector<256x128xf32> to vector<64x32xf32>
    %308 = arith.truncf %307 : vector<64x32xf32> to vector<64x32xbf16>
    %309 = vector.extract_strided_slice %11 {offsets = [192, 64], sizes = [64, 32], strides = [1, 1]} : vector<256x128xf32> to vector<64x32xf32>
    %310 = arith.truncf %309 : vector<64x32xf32> to vector<64x32xbf16>
    %311 = vector.extract_strided_slice %12 {offsets = [192, 64], sizes = [64, 32], strides = [1, 1]} : vector<256x128xf32> to vector<64x32xf32>
    %312 = arith.truncf %311 : vector<64x32xf32> to vector<64x32xbf16>
    %cst_86 = arith.constant dense<0.000000e+00> : vector<64x64xf32>
    %313 = tpu.matmul %308, %310, %cst_86 {dimension_numbers = #tpu.dot_dimension_numbers<[1], [1], [0], [0], [0, 0, 1, 0], [], []>} : vector<64x32xbf16>, vector<64x32xbf16>, vector<64x64xf32> -> vector<64x64xf32>
    %cst_87 = arith.constant dense<0xFF800000> : vector<64xf32>
    %314 = vector.multi_reduction <maximumf>, %313, %cst_87 [1] : vector<64x64xf32> to vector<64xf32>
    %315 = vector.shape_cast %314 : vector<64xf32> to vector<64x1xf32>
    %316 = vector.broadcast %315 : vector<64x1xf32> to vector<64x64xf32>
    %317 = arith.subf %313, %316 : vector<64x64xf32>
    %318 = math.exp %317 : vector<64x64xf32>
    %cst_88 = arith.constant dense<0.000000e+00> : vector<64xf32>
    %319 = vector.multi_reduction <add>, %318, %cst_88 [1] : vector<64x64xf32> to vector<64xf32>
    %320 = vector.shape_cast %319 : vector<64xf32> to vector<64x1xf32>
    %321 = tpu.reciprocal %320 {approx = true} : vector<64x1xf32> -> vector<64x1xf32>
    %322 = vector.broadcast %321 : vector<64x1xf32> to vector<64x64xf32>
    %323 = arith.mulf %318, %322 : vector<64x64xf32>
    %324 = arith.truncf %323 : vector<64x64xf32> to vector<64x64xbf16>
    %cst_89 = arith.constant dense<0.000000e+00> : vector<64x32xf32>
    %325 = tpu.matmul %324, %312, %cst_89 {dimension_numbers = #tpu.dot_dimension_numbers<[1], [0], [0], [1], [0, 0, 1, 1], [], []>} : vector<64x64xbf16>, vector<64x32xbf16>, vector<64x32xf32> -> vector<64x32xf32>
    %326 = arith.truncf %325 : vector<64x32xf32> to vector<64x32xbf16>
    %c192_90 = arith.constant 192 : index
    %c64_91 = arith.constant 64 : index
    %327 = vector.load %arg7[%c192_90, %c64_91] : memref<256x128xbf16, #tpu.memory_space<vmem>>, vector<64x32xbf16>
    tpu.vector_store %arg7[%c192_90, %c64_91], %326 {strides = array<i32>} : memref<256x128xbf16, #tpu.memory_space<vmem>>, vector<64x32xbf16>,
    %328 = vector.extract_strided_slice %10 {offsets = [192, 96], sizes = [64, 32], strides = [1, 1]} : vector<256x128xf32> to vector<64x32xf32>
    %329 = arith.truncf %328 : vector<64x32xf32> to vector<64x32xbf16>
    %330 = vector.extract_strided_slice %11 {offsets = [192, 96], sizes = [64, 32], strides = [1, 1]} : vector<256x128xf32> to vector<64x32xf32>
    %331 = arith.truncf %330 : vector<64x32xf32> to vector<64x32xbf16>
    %332 = vector.extract_strided_slice %12 {offsets = [192, 96], sizes = [64, 32], strides = [1, 1]} : vector<256x128xf32> to vector<64x32xf32>
    %333 = arith.truncf %332 : vector<64x32xf32> to vector<64x32xbf16>
    %cst_92 = arith.constant dense<0.000000e+00> : vector<64x64xf32>
    %334 = tpu.matmul %329, %331, %cst_92 {dimension_numbers = #tpu.dot_dimension_numbers<[1], [1], [0], [0], [0, 0, 1, 0], [], []>} : vector<64x32xbf16>, vector<64x32xbf16>, vector<64x64xf32> -> vector<64x64xf32>
    %cst_93 = arith.constant dense<0xFF800000> : vector<64xf32>
    %335 = vector.multi_reduction <maximumf>, %334, %cst_93 [1] : vector<64x64xf32> to vector<64xf32>
    %336 = vector.shape_cast %335 : vector<64xf32> to vector<64x1xf32>
    %337 = vector.broadcast %336 : vector<64x1xf32> to vector<64x64xf32>
    %338 = arith.subf %334, %337 : vector<64x64xf32>
    %339 = math.exp %338 : vector<64x64xf32>
    %cst_94 = arith.constant dense<0.000000e+00> : vector<64xf32>
    %340 = vector.multi_reduction <add>, %339, %cst_94 [1] : vector<64x64xf32> to vector<64xf32>
    %341 = vector.shape_cast %340 : vector<64xf32> to vector<64x1xf32>
    %342 = tpu.reciprocal %341 {approx = true} : vector<64x1xf32> -> vector<64x1xf32>
    %343 = vector.broadcast %342 : vector<64x1xf32> to vector<64x64xf32>
    %344 = arith.mulf %339, %343 : vector<64x64xf32>
    %345 = arith.truncf %344 : vector<64x64xf32> to vector<64x64xbf16>
    %cst_95 = arith.constant dense<0.000000e+00> : vector<64x32xf32>
    %346 = tpu.matmul %345, %333, %cst_95 {dimension_numbers = #tpu.dot_dimension_numbers<[1], [0], [0], [1], [0, 0, 1, 1], [], []>} : vector<64x64xbf16>, vector<64x32xbf16>, vector<64x32xf32> -> vector<64x32xf32>
    %347 = arith.truncf %346 : vector<64x32xf32> to vector<64x32xbf16>
    %c192_96 = arith.constant 192 : index
    %c96_97 = arith.constant 96 : index
    %348 = vector.load %arg7[%c192_96, %c96_97] : memref<256x128xbf16, #tpu.memory_space<vmem>>, vector<64x32xbf16>
    tpu.vector_store %arg7[%c192_96, %c96_97], %347 {strides = array<i32>} : memref<256x128xbf16, #tpu.memory_space<vmem>>, vector<64x32xbf16>,
    %c0_98 = arith.constant 0 : index
    %c0_99 = arith.constant 0 : index
    %349 = vector.load %arg7[%c0_98, %c0_99] : memref<256x128xbf16, #tpu.memory_space<vmem>>, vector<256x128xbf16>
    %c0_100 = arith.constant 0 : index
    %c0_101 = arith.constant 0 : index
    %350 = vector.load %arg4[%c0_100, %c0_101] : memref<128x128xbf16, #tpu.memory_space<vmem>>, vector<128x128xbf16>
    %cst_102 = arith.constant dense<0.000000e+00> : vector<256x128xf32>
    %351 = tpu.matmul %349, %350, %cst_102 {dimension_numbers = #tpu.dot_dimension_numbers<[1], [0], [0], [1], [0, 0, 1, 1], [], []>} : vector<256x128xbf16>, vector<128x128xbf16>, vector<256x128xf32> -> vector<256x128xf32>
    %c0_103 = arith.constant 0 : index
    %c0_104 = arith.constant 0 : index
    %352 = vector.load %arg5[%c0_103, %c0_104] : memref<1x128xf32, #tpu.memory_space<vmem>>, vector<1x128xf32>
    %353 = vector.broadcast %352 : vector<1x128xf32> to vector<256x128xf32>
    %354 = arith.addf %351, %353 : vector<256x128xf32>
    %355 = vector.shape_cast %354 : vector<256x128xf32> to vector<4x64x128xf32>
    %c0_105 = arith.constant 0 : index
    %c0_106 = arith.constant 0 : index
    %c0_107 = arith.constant 0 : index
    %356 = vector.load %arg6[%c0_105, %c0_106, %c0_107] : memref<4x64x128xf32, #tpu.memory_space<vmem>>, vector<4x64x128xf32>
    tpu.vector_store %arg6[%c0_105, %c0_106, %c0_107], %355 {strides = array<i32>} : memref<4x64x128xf32, #tpu.memory_space<vmem>>, vector<4x64x128xf32>,
    return
  }
  func.func @transform_0(%arg0: i32) -> (i32, i32, i32) {
    %c0_i32 = arith.constant 0 : i32
    %c0_i32_0 = arith.constant 0 : i32
    %c0_i32_1 = arith.constant 0 : i32
    return %arg0, %c0_i32, %c0_i32_0 : i32, i32, i32
  }
  func.func @transform_1(%arg0: i32) -> (i32, i32) {
    %c0_i32 = arith.constant 0 : i32
    %c0_i32_0 = arith.constant 0 : i32
    %c0_i32_1 = arith.constant 0 : i32
    return %c0_i32, %c0_i32_0 : i32, i32
  }
  func.func @transform_2(%arg0: i32) -> (i32, i32) {
    %c0_i32 = arith.constant 0 : i32
    %c0_i32_0 = arith.constant 0 : i32
    %c0_i32_1 = arith.constant 0 : i32
    return %c0_i32, %c0_i32_0 : i32, i32
  }
  func.func @transform_3(%arg0: i32) -> (i32, i32) {
    %c0_i32 = arith.constant 0 : i32
    %c0_i32_0 = arith.constant 0 : i32
    %c0_i32_1 = arith.constant 0 : i32
    return %c0_i32, %c0_i32_0 : i32, i32
  }
  func.func @transform_4(%arg0: i32) -> (i32, i32) {
    %c0_i32 = arith.constant 0 : i32
    %c0_i32_0 = arith.constant 0 : i32
    %c0_i32_1 = arith.constant 0 : i32
    return %c0_i32, %c0_i32_0 : i32, i32
  }
  func.func @transform_5(%arg0: i32) -> (i32, i32, i32) {
    %c0_i32 = arith.constant 0 : i32
    %c0_i32_0 = arith.constant 0 : i32
    %c0_i32_1 = arith.constant 0 : i32
    return %arg0, %c0_i32, %c0_i32_0 : i32, i32, i32
  }
}

</mosaic_0001>

<llo_original>
// kernel: tpu_custom_call.1
$region0: #{tpu_custom_call.1}
  #allocation0 [shape = 'u32[]', space=smem, size = 0x4, offset = 0x4, fixed_abs, tag = 'smem constant byte address 0x4 - core index']
  #allocation1 [shape = 'u32[72,128]{1,0:T(1,128)}', space=vmem, size = 0x9000, scoped, tag = 'internal scratch']
  #allocation2 [shape = 'bf16[256,128]{1,0:T(8,128)(2,1)}', space=vmem, size = 0x10000, scoped, tag = 'scratch operand']
  %s0 = inlined_call_operand.hbm [shape: f32[4,64,128], index: 0, kind: input, shape index: {}]
  %s1 = inlined_call_operand.hbm [shape: bf16[128,384], index: 1, kind: input, shape index: {}]
  %s2 = inlined_call_operand.hbm [shape: f32[1,384], index: 2, kind: input, shape index: {}]
  %s3 = inlined_call_operand.hbm [shape: bf16[128,128], index: 3, kind: input, shape index: {}]
  %s4 = inlined_call_operand.vmem [shape: f32[1,128], index: 4, kind: input, shape index: {}]
  %s5 = inlined_call_operand.hbm [shape: f32[4,64,128], index: 5, kind: output, shape index: {}]
  %s6 = sld [smem:[#allocation0]]
  $region46: #{tpu_custom_call.1} parent=0
    _
  %s8 = ssub.s32 1, %s6
  %s9 = scalar_select 0, %s8, %s6
  $region1: #{tpu_custom_call.1} parent=0
    #allocation3 [shape = 'u8[131072]{0}', space=vmem, size = 0x20000, scoped, tag = 'input window, operand 0, single buffered']
    #allocation4 [shape = 's32[1]{0}', space=sflag, size = 0x4, scoped, tag = 'scoped memory for tpu_custom_call.1']
    #allocation5 [shape = 's32[1]{0}', space=sflag, size = 0x4, scoped, tag = 'scoped memory for tpu_custom_call.1']
    #allocation6 [shape = 'u8[98304]{0}', space=vmem, size = 0x18000, scoped, tag = 'input window, operand 1, single buffered']
    #allocation7 [shape = 's32[1]{0}', space=sflag, size = 0x4, scoped, tag = 'scoped memory for tpu_custom_call.1']
    #allocation8 [shape = 'u8[1536]{0}', space=vmem, size = 0x800, scoped, tag = 'input window, operand 2, single buffered']
    #allocation9 [shape = 'u8[32768]{0}', space=vmem, size = 0x8000, scoped, tag = 'input window, operand 3, single buffered']
    #allocation10 [shape = 's32[1]{0}', space=sflag, size = 0x4, scoped, tag = 'scoped memory for tpu_custom_call.1']
    #allocation11 [shape = 'u8[131072]{0}', space=vmem, size = 0x20000, scoped, tag = 'output window, operand 0, single buffered']
    %10 = vsyncpa [#allocation4], 0
    %11 = vsyncpa [#allocation7], 0
    %12 = vsyncpa [#allocation10], 0
    %13 = vsyncpa [#allocation5], 0
    // Predicated region
    $region2: #{tpu_custom_call.1} parent=1 // pred_check
      _
    $region3: #{tpu_custom_call.1} parent=1 // pred_check_branch
      %15 = sbr.rel (0) target = $region5
    $region4: #{tpu_custom_call.1} parent=1 // pred_region
      %17 = vsyncadd [#allocation4], 0
      %s18 = sshll.u32 %s0, 4
      %s19 = int_to_ptr.hbm [resolvable:$true] %s18
      %s20 = sshll.u32 [#allocation3], 4
      %s21 = int_to_ptr.vmem [resolvable:$true] %s20
      %26 = dma.hbm_to_vmem [thread:$0]  %s19, 4096, %s21, [#allocation4], 128, 128, 8
    $region5: #{tpu_custom_call.1} parent=1 // pred_fallthru
      _
    // Predicated region
    $region6: #{tpu_custom_call.1} parent=1 // pred_check
      _
    $region7: #{tpu_custom_call.1} parent=1 // pred_check_branch
      %28 = sbr.rel (0) target = $region9
    $region8: #{tpu_custom_call.1} parent=1 // pred_region
      %30 = vsyncadd [#allocation7], 0
      %s31 = sshll.u32 %s1, 4
      %s32 = int_to_ptr.hbm [resolvable:$true] %s31
      %s33 = sshll.u32 [#allocation6], 4
      %s34 = int_to_ptr.vmem [resolvable:$true] %s33
      %39 = dma.hbm_to_vmem [thread:$0]  %s32, 3072, %s34, [#allocation7], 192, 192, 12
    $region9: #{tpu_custom_call.1} parent=1 // pred_fallthru
      _
    // Predicated region
    $region10: #{tpu_custom_call.1} parent=1 // pred_check
      _
    $region11: #{tpu_custom_call.1} parent=1 // pred_check_branch
      %41 = sbr.rel (0) target = $region13
    $region12: #{tpu_custom_call.1} parent=1 // pred_region
      %43 = vsyncadd [#allocation7], 0
      %s45 = sshll.u32 %s2, 4
      %s46 = int_to_ptr.hbm [resolvable:$true] %s45
      %s47 = sshll.u32 [#allocation8], 4
      %s48 = int_to_ptr.vmem [resolvable:$true] %s47
      %50 = dma.hbm_to_vmem [thread:$0]  %s46, 48, %s48, [#allocation7]
    $region13: #{tpu_custom_call.1} parent=1 // pred_fallthru
      _
    // Predicated region
    $region14: #{tpu_custom_call.1} parent=1 // pred_check
      _
    $region15: #{tpu_custom_call.1} parent=1 // pred_check_branch
      %52 = sbr.rel (0) target = $region17
    $region16: #{tpu_custom_call.1} parent=1 // pred_region
      %54 = vsyncadd [#allocation10], 0
      %s55 = sshll.u32 %s3, 4
      %s56 = int_to_ptr.hbm [resolvable:$true] %s55
      %s57 = sshll.u32 [#allocation9], 4
      %s58 = int_to_ptr.vmem [resolvable:$true] %s57
      %63 = dma.hbm_to_vmem [thread:$0]  %s56, 1024, %s58, [#allocation10], 64, 64, 4
    $region17: #{tpu_custom_call.1} parent=1 // pred_fallthru
      _
    // Predicated region
    $region18: #{tpu_custom_call.1} parent=1 // pred_check
      _
    $region19: #{tpu_custom_call.1} parent=1 // pred_check_branch
      %65 = sbr.rel (0) target = $region21
    $region20: #{tpu_custom_call.1} parent=1 // pred_region
      _
    $region21: #{tpu_custom_call.1} parent=1 // pred_fallthru
      _
    // Predicated region
    $region22: #{tpu_custom_call.1} parent=1 // pred_check
      _
    $region23: #{tpu_custom_call.1} parent=1 // pred_check_branch
      %67 = sbr.rel (0) target = $region25
    $region24: #{tpu_custom_call.1} parent=1 // pred_region
      %69 = dma.done [#allocation4], 4096
    $region25: #{tpu_custom_call.1} parent=1 // pred_fallthru
      _
    // Predicated region
    $region26: #{tpu_custom_call.1} parent=1 // pred_check
      _
    $region27: #{tpu_custom_call.1} parent=1 // pred_check_branch
      %71 = sbr.rel (0) target = $region29
    $region28: #{tpu_custom_call.1} parent=1 // pred_region
      %73 = dma.done [#allocation7], 3072
    $region29: #{tpu_custom_call.1} parent=1 // pred_fallthru
      _
    // Predicated region
    $region30: #{tpu_custom_call.1} parent=1 // pred_check
      _
    $region31: #{tpu_custom_call.1} parent=1 // pred_check_branch
      %75 = sbr.rel (0) target = $region33
    $region32: #{tpu_custom_call.1} parent=1 // pred_region
      %77 = dma.done [#allocation7], 48
    $region33: #{tpu_custom_call.1} parent=1 // pred_fallthru
      _
    // Predicated region
    $region34: #{tpu_custom_call.1} parent=1 // pred_check
      _
    $region35: #{tpu_custom_call.1} parent=1 // pred_check_branch
      %79 = sbr.rel (0) target = $region37
    $region36: #{tpu_custom_call.1} parent=1 // pred_region
      %81 = dma.done [#allocation10], 1024
    $region37: #{tpu_custom_call.1} parent=1 // pred_fallthru
      _
    %v83 = vld [vmem:[#allocation3] sm:$0xff]
    %v84 = vld [vmem:[#allocation3 + $0x8] sm:$0xff]
    %v85 = vld [vmem:[#allocation3 + $0x10] sm:$0xff]
    %v86 = vld [vmem:[#allocation3 + $0x18] sm:$0xff]
    %v87 = vld [vmem:[#allocation3 + $0x20] sm:$0xff]
    %v88 = vld [vmem:[#allocation3 + $0x28] sm:$0xff]
    %v89 = vld [vmem:[#allocation3 + $0x30] sm:$0xff]
    %v90 = vld [vmem:[#allocation3 + $0x38] sm:$0xff]
    %v91 = vld [vmem:[#allocation3 + $0x40] sm:$0xff]
    %v92 = vld [vmem:[#allocation3 + $0x48] sm:$0xff]
    %v93 = vld [vmem:[#allocation3 + $0x50] sm:$0xff]
    %v94 = vld [vmem:[#allocation3 + $0x58] sm:$0xff]
    %v95 = vld [vmem:[#allocation3 + $0x60] sm:$0xff]
    %v96 = vld [vmem:[#allocation3 + $0x68] sm:$0xff]
    %v97 = vld [vmem:[#allocation3 + $0x70] sm:$0xff]
    %v98 = vld [vmem:[#allocation3 + $0x78] sm:$0xff]
    %v99 = vld [vmem:[#allocation3 + $0x80] sm:$0xff]
    %v100 = vld [vmem:[#allocation3 + $0x88] sm:$0xff]
    %v101 = vld [vmem:[#allocation3 + $0x90] sm:$0xff]
    %v102 = vld [vmem:[#allocation3 + $0x98] sm:$0xff]
    %v103 = vld [vmem:[#allocation3 + $0xa0] sm:$0xff]
    %v104 = vld [vmem:[#allocation3 + $0xa8] sm:$0xff]
    %v105 = vld [vmem:[#allocation3 + $0xb0] sm:$0xff]
    %v106 = vld [vmem:[#allocation3 + $0xb8] sm:$0xff]
    %v107 = vld [vmem:[#allocation3 + $0xc0] sm:$0xff]
    %v108 = vld [vmem:[#allocation3 + $0xc8] sm:$0xff]
    %v109 = vld [vmem:[#allocation3 + $0xd0] sm:$0xff]
    %v110 = vld [vmem:[#allocation3 + $0xd8] sm:$0xff]
    %v111 = vld [vmem:[#allocation3 + $0xe0] sm:$0xff]
    %v112 = vld [vmem:[#allocation3 + $0xe8] sm:$0xff]
    %v113 = vld [vmem:[#allocation3 + $0xf0] sm:$0xff]
    %v114 = vld [vmem:[#allocation3 + $0xf8] sm:$0xff]
    %v115 = vpack.c.bf16 %v84, %v83
    %v116 = vpack.c.bf16 %v86, %v85
    %v117 = vpack.c.bf16 %v88, %v87
    %v118 = vpack.c.bf16 %v90, %v89
    %v119 = vpack.c.bf16 %v92, %v91
    %v120 = vpack.c.bf16 %v94, %v93
    %v121 = vpack.c.bf16 %v96, %v95
    %v122 = vpack.c.bf16 %v98, %v97
    %v123 = vpack.c.bf16 %v100, %v99
    %v124 = vpack.c.bf16 %v102, %v101
    %v125 = vpack.c.bf16 %v104, %v103
    %v126 = vpack.c.bf16 %v106, %v105
    %v127 = vpack.c.bf16 %v108, %v107
    %v128 = vpack.c.bf16 %v110, %v109
    %v129 = vpack.c.bf16 %v112, %v111
    %v130 = vpack.c.bf16 %v114, %v113
    %v131 = vld [vmem:[#allocation6] sm:$0xff]
    %v132 = vld [vmem:[#allocation6 + $0x8] sm:$0xf]
    %v133 = vld [vmem:[#allocation6 + $0xc] sm:$0xff]
    %v134 = vld [vmem:[#allocation6 + $0x14] sm:$0xf]
    %v135 = vld [vmem:[#allocation6 + $0x18] sm:$0xff]
    %v136 = vld [vmem:[#allocation6 + $0x20] sm:$0xf]
    %v137 = vld [vmem:[#allocation6 + $0x24] sm:$0xff]
    %v138 = vld [vmem:[#allocation6 + $0x2c] sm:$0xf]
    %v139 = vld [vmem:[#allocation6 + $0x30] sm:$0xff]
    %v140 = vld [vmem:[#allocation6 + $0x38] sm:$0xf]
    %v141 = vld [vmem:[#allocation6 + $0x3c] sm:$0xff]
    %v142 = vld [vmem:[#allocation6 + $0x44] sm:$0xf]
    %v143 = vld [vmem:[#allocation6 + $0x48] sm:$0xff]
    %v144 = vld [vmem:[#allocation6 + $0x50] sm:$0xf]
    %v145 = vld [vmem:[#allocation6 + $0x54] sm:$0xff]
    %v146 = vld [vmem:[#allocation6 + $0x5c] sm:$0xf]
    %v147 = vld [vmem:[#allocation6 + $0x60] sm:$0xff]
    %v148 = vld [vmem:[#allocation6 + $0x68] sm:$0xf]
    %v149 = vld [vmem:[#allocation6 + $0x6c] sm:$0xff]
    %v150 = vld [vmem:[#allocation6 + $0x74] sm:$0xf]
    %v151 = vld [vmem:[#allocation6 + $0x78] sm:$0xff]
    %v152 = vld [vmem:[#allocation6 + $0x80] sm:$0xf]
    %v153 = vld [vmem:[#allocation6 + $0x84] sm:$0xff]
    %v154 = vld [vmem:[#allocation6 + $0x8c] sm:$0xf]
    %v155 = vld [vmem:[#allocation6 + $0x90] sm:$0xff]
    %v156 = vld [vmem:[#allocation6 + $0x98] sm:$0xf]
    %v157 = vld [vmem:[#allocation6 + $0x9c] sm:$0xff]
    %v158 = vld [vmem:[#allocation6 + $0xa4] sm:$0xf]
    %v159 = vld [vmem:[#allocation6 + $0xa8] sm:$0xff]
    %v160 = vld [vmem:[#allocation6 + $0xb0] sm:$0xf]
    %v161 = vld [vmem:[#allocation6 + $0xb4] sm:$0xff]
    %v162 = vld [vmem:[#allocation6 + $0xbc] sm:$0xf]
    %v163 = vld [vmem:[#allocation8] sm:$0x7]
    %v165 = vperm.slane %v163, 0
    %v166 = vperm.slane %v163, 1
    %v167 = vperm.slane %v163, 2
    %v203 = vunpack.c.l.b16 %v131
    %v204 = vunpack.c.h.b16 %v131
    %v205 = vunpack.c.l.b16 %v132
    %v206 = vunpack.c.l.b16 %v133
    %v207 = vunpack.c.h.b16 %v133
    %v208 = vunpack.c.l.b16 %v134
    %v209 = vunpack.c.l.b16 %v135
    %v210 = vunpack.c.h.b16 %v135
    %v211 = vunpack.c.l.b16 %v136
    %v212 = vunpack.c.l.b16 %v137
    %v213 = vunpack.c.h.b16 %v137
    %v214 = vunpack.c.l.b16 %v138
    %v215 = vunpack.c.l.b16 %v139
    %v216 = vunpack.c.h.b16 %v139
    %v217 = vunpack.c.l.b16 %v140
    %v218 = vunpack.c.l.b16 %v141
    %v219 = vunpack.c.h.b16 %v141
    %v220 = vunpack.c.l.b16 %v142
    %v221 = vunpack.c.l.b16 %v143
    %v222 = vunpack.c.h.b16 %v143
    %v223 = vunpack.c.l.b16 %v144
    %v224 = vunpack.c.l.b16 %v145
    %v225 = vunpack.c.h.b16 %v145
    %v226 = vunpack.c.l.b16 %v146
    %v227 = vunpack.c.l.b16 %v147
    %v228 = vunpack.c.h.b16 %v147
    %v229 = vunpack.c.l.b16 %v148
    %v230 = vunpack.c.l.b16 %v149
    %v231 = vunpack.c.h.b16 %v149
    %v232 = vunpack.c.l.b16 %v150
    %v233 = vunpack.c.l.b16 %v151
    %v234 = vunpack.c.h.b16 %v151
    %v235 = vunpack.c.l.b16 %v152
    %v236 = vunpack.c.l.b16 %v153
    %v237 = vunpack.c.h.b16 %v153
    %v238 = vunpack.c.l.b16 %v154
    %v239 = vunpack.c.l.b16 %v155
    %v240 = vunpack.c.h.b16 %v155
    %v241 = vunpack.c.l.b16 %v156
    %v242 = vunpack.c.l.b16 %v157
    %v243 = vunpack.c.h.b16 %v157
    %v244 = vunpack.c.l.b16 %v158
    %v245 = vunpack.c.l.b16 %v159
    %v246 = vunpack.c.h.b16 %v159
    %v247 = vunpack.c.l.b16 %v160
    %v248 = vunpack.c.l.b16 %v161
    %v249 = vunpack.c.h.b16 %v161
    %v250 = vunpack.c.l.b16 %v162
    %v251 = vpack.c.b16 %v206, %v203
    %v252 = vpack.c.b16 %v207, %v204
    %v253 = vpack.c.b16 %v208, %v205
    %v254 = vpack.c.b16 %v212, %v209
    %v255 = vpack.c.b16 %v213, %v210
    %v256 = vpack.c.b16 %v214, %v211
    %v257 = vpack.c.b16 %v218, %v215
    %v258 = vpack.c.b16 %v219, %v216
    %v259 = vpack.c.b16 %v220, %v217
    %v260 = vpack.c.b16 %v224, %v221
    %v261 = vpack.c.b16 %v225, %v222
    %v262 = vpack.c.b16 %v226, %v223
    %v263 = vpack.c.b16 %v230, %v227
    %v264 = vpack.c.b16 %v231, %v228
    %v265 = vpack.c.b16 %v232, %v229
    %v266 = vpack.c.b16 %v236, %v233
    %v267 = vpack.c.b16 %v237, %v234
    %v268 = vpack.c.b16 %v238, %v235
    %v269 = vpack.c.b16 %v242, %v239
    %v270 = vpack.c.b16 %v243, %v240
    %v271 = vpack.c.b16 %v244, %v241
    %v272 = vpack.c.b16 %v248, %v245
    %v273 = vpack.c.b16 %v249, %v246
    %v274 = vpack.c.b16 %v250, %v247
    %299 = vmatpush.bf16.msra.mxu0 %v272
    %300 = vmatpush.bf16.msra.mxu0 %v269
    %301 = vmatpush.bf16.msra.mxu0 %v266
    %302 = vmatpush.bf16.msra.mxu0 %v263
    %303 = vmatpush.bf16.msra.mxu0 %v260
    %304 = vmatpush.bf16.msra.mxu0 %v257
    %305 = vmatpush.bf16.msra.mxu0 %v254
    %306 = vmatpush.bf16.msra.mxu0 %v251
    %307 = vmatmul.bf16.gmra.mxu0 %v115
    %v308 = vpop.f32.mrf.mxu0
    %v309 = vadd.f32 %v165, %v308
    %v310 = vpop.f32.mrf.mxu0
    %v311 = vadd.f32 %v165, %v310
    %312 = vmatmul.bf16.gmra.mxu0 %v116
    %v313 = vpop.f32.mrf.mxu0
    %v314 = vadd.f32 %v165, %v313
    %v315 = vpop.f32.mrf.mxu0
    %v316 = vadd.f32 %v165, %v315
    %317 = vmatmul.bf16.gmra.mxu0 %v117
    %v318 = vpop.f32.mrf.mxu0
    %v319 = vadd.f32 %v165, %v318
    %v320 = vpop.f32.mrf.mxu0
    %v321 = vadd.f32 %v165, %v320
    %322 = vmatmul.bf16.gmra.mxu0 %v118
    %v323 = vpop.f32.mrf.mxu0
    %v324 = vadd.f32 %v165, %v323
    %v325 = vpop.f32.mrf.mxu0
    %v326 = vadd.f32 %v165, %v325
    %327 = vmatmul.bf16.gmra.mxu0 %v119
    %v328 = vpop.f32.mrf.mxu0
    %v329 = vadd.f32 %v165, %v328
    %v330 = vpop.f32.mrf.mxu0
    %v331 = vadd.f32 %v165, %v330
    %332 = vmatmul.bf16.gmra.mxu0 %v120
    %v333 = vpop.f32.mrf.mxu0
    %v334 = vadd.f32 %v165, %v333
    %v335 = vpop.f32.mrf.mxu0
    %v336 = vadd.f32 %v165, %v335
    %337 = vmatmul.bf16.gmra.mxu0 %v121
    %v338 = vpop.f32.mrf.mxu0
    %v339 = vadd.f32 %v165, %v338
    %v340 = vpop.f32.mrf.mxu0
    %v341 = vadd.f32 %v165, %v340
    %342 = vmatmul.bf16.gmra.mxu0 %v122
    %v343 = vpop.f32.mrf.mxu0
    %v344 = vadd.f32 %v165, %v343
    %v345 = vpop.f32.mrf.mxu0
    %v346 = vadd.f32 %v165, %v345
    %347 = vmatmul.bf16.gmra.mxu0 %v123
    %v348 = vpop.f32.mrf.mxu0
    %v349 = vadd.f32 %v165, %v348
    %v350 = vpop.f32.mrf.mxu0
    %v351 = vadd.f32 %v165, %v350
    %352 = vmatmul.bf16.gmra.mxu0 %v124
    %v353 = vpop.f32.mrf.mxu0
    %v354 = vadd.f32 %v165, %v353
    %v355 = vpop.f32.mrf.mxu0
    %v356 = vadd.f32 %v165, %v355
    %357 = vmatmul.bf16.gmra.mxu0 %v125
    %v358 = vpop.f32.mrf.mxu0
    %v359 = vadd.f32 %v165, %v358
    %v360 = vpop.f32.mrf.mxu0
    %v361 = vadd.f32 %v165, %v360
    %362 = vmatmul.bf16.gmra.mxu0 %v126
    %v363 = vpop.f32.mrf.mxu0
    %v364 = vadd.f32 %v165, %v363
    %v365 = vpop.f32.mrf.mxu0
    %v366 = vadd.f32 %v165, %v365
    %367 = vmatmul.bf16.gmra.mxu0 %v127
    %v368 = vpop.f32.mrf.mxu0
    %v369 = vadd.f32 %v165, %v368
    %v370 = vpop.f32.mrf.mxu0
    %v371 = vadd.f32 %v165, %v370
    %372 = vmatmul.bf16.gmra.mxu0 %v128
    %v373 = vpop.f32.mrf.mxu0
    %v374 = vadd.f32 %v165, %v373
    %v375 = vpop.f32.mrf.mxu0
    %v376 = vadd.f32 %v165, %v375
    %377 = vmatmul.bf16.gmra.mxu0 %v129
    %v378 = vpop.f32.mrf.mxu0
    %v379 = vadd.f32 %v165, %v378
    %v380 = vpop.f32.mrf.mxu0
    %v381 = vadd.f32 %v165, %v380
    %382 = vmatmul.bf16.gmra.mxu0 %v130
    %v383 = vpop.f32.mrf.mxu0
    %v384 = vadd.f32 %v165, %v383
    %v385 = vpop.f32.mrf.mxu0
    %v386 = vadd.f32 %v165, %v385
    %387 = vdwg.mxu0
    %388 = vmatpush.bf16.msra.mxu0 %v273
    %389 = vmatpush.bf16.msra.mxu0 %v270
    %390 = vmatpush.bf16.msra.mxu0 %v267
    %391 = vmatpush.bf16.msra.mxu0 %v264
    %392 = vmatpush.bf16.msra.mxu0 %v261
    %393 = vmatpush.bf16.msra.mxu0 %v258
    %394 = vmatpush.bf16.msra.mxu0 %v255
    %395 = vmatpush.bf16.msra.mxu0 %v252
    %396 = vmatmul.bf16.gmra.mxu0 %v115
    %v397 = vpop.f32.mrf.mxu0
    %v398 = vadd.f32 %v166, %v397
    %v399 = vpop.f32.mrf.mxu0
    %v400 = vadd.f32 %v166, %v399
    %401 = vmatmul.bf16.gmra.mxu0 %v116
    %v402 = vpop.f32.mrf.mxu0
    %v403 = vadd.f32 %v166, %v402
    %v404 = vpop.f32.mrf.mxu0
    %v405 = vadd.f32 %v166, %v404
    %406 = vmatmul.bf16.gmra.mxu0 %v117
    %v407 = vpop.f32.mrf.mxu0
    %v408 = vadd.f32 %v166, %v407
    %v409 = vpop.f32.mrf.mxu0
    %v410 = vadd.f32 %v166, %v409
    %411 = vmatmul.bf16.gmra.mxu0 %v118
    %v412 = vpop.f32.mrf.mxu0
    %v413 = vadd.f32 %v166, %v412
    %v414 = vpop.f32.mrf.mxu0
    %v415 = vadd.f32 %v166, %v414
    %416 = vmatmul.bf16.gmra.mxu0 %v119
    %v417 = vpop.f32.mrf.mxu0
    %v418 = vadd.f32 %v166, %v417
    %v419 = vpop.f32.mrf.mxu0
    %v420 = vadd.f32 %v166, %v419
    %421 = vmatmul.bf16.gmra.mxu0 %v120
    %v422 = vpop.f32.mrf.mxu0
    %v423 = vadd.f32 %v166, %v422
    %v424 = vpop.f32.mrf.mxu0
    %v425 = vadd.f32 %v166, %v424
    %426 = vmatmul.bf16.gmra.mxu0 %v121
    %v427 = vpop.f32.mrf.mxu0
    %v428 = vadd.f32 %v166, %v427
    %v429 = vpop.f32.mrf.mxu0
    %v430 = vadd.f32 %v166, %v429
    %431 = vmatmul.bf16.gmra.mxu0 %v122
    %v432 = vpop.f32.mrf.mxu0
    %v433 = vadd.f32 %v166, %v432
    %v434 = vpop.f32.mrf.mxu0
    %v435 = vadd.f32 %v166, %v434
    %436 = vmatmul.bf16.gmra.mxu0 %v123
    %v437 = vpop.f32.mrf.mxu0
    %v438 = vadd.f32 %v166, %v437
    %v439 = vpop.f32.mrf.mxu0
    %v440 = vadd.f32 %v166, %v439
    %441 = vmatmul.bf16.gmra.mxu0 %v124
    %v442 = vpop.f32.mrf.mxu0
    %v443 = vadd.f32 %v166, %v442
    %v444 = vpop.f32.mrf.mxu0
    %v445 = vadd.f32 %v166, %v444
    %446 = vmatmul.bf16.gmra.mxu0 %v125
    %v447 = vpop.f32.mrf.mxu0
    %v448 = vadd.f32 %v166, %v447
    %v449 = vpop.f32.mrf.mxu0
    %v450 = vadd.f32 %v166, %v449
    %451 = vmatmul.bf16.gmra.mxu0 %v126
    %v452 = vpop.f32.mrf.mxu0
    %v453 = vadd.f32 %v166, %v452
    %v454 = vpop.f32.mrf.mxu0
    %v455 = vadd.f32 %v166, %v454
    %456 = vmatmul.bf16.gmra.mxu0 %v127
    %v457 = vpop.f32.mrf.mxu0
    %v458 = vadd.f32 %v166, %v457
    %v459 = vpop.f32.mrf.mxu0
    %v460 = vadd.f32 %v166, %v459
    %461 = vmatmul.bf16.gmra.mxu0 %v128
    %v462 = vpop.f32.mrf.mxu0
    %v463 = vadd.f32 %v166, %v462
    %v464 = vpop.f32.mrf.mxu0
    %v465 = vadd.f32 %v166, %v464
    %466 = vmatmul.bf16.gmra.mxu0 %v129
    %v467 = vpop.f32.mrf.mxu0
    %v468 = vadd.f32 %v166, %v467
    %v469 = vpop.f32.mrf.mxu0
    %v470 = vadd.f32 %v166, %v469
    %471 = vmatmul.bf16.gmra.mxu0 %v130
    %v472 = vpop.f32.mrf.mxu0
    %v473 = vadd.f32 %v166, %v472
    %v474 = vpop.f32.mrf.mxu0
    %v475 = vadd.f32 %v166, %v474
    %476 = vdwg.mxu0
    %477 = vmatpush.bf16.msra.mxu0 %v274
    %478 = vmatpush.bf16.msra.mxu0 %v271
    %479 = vmatpush.bf16.msra.mxu0 %v268
    %480 = vmatpush.bf16.msra.mxu0 %v265
    %481 = vmatpush.bf16.msra.mxu0 %v262
    %482 = vmatpush.bf16.msra.mxu0 %v259
    %483 = vmatpush.bf16.msra.mxu0 %v256
    %484 = vmatpush.bf16.msra.mxu0 %v253
    %485 = vmatmul.bf16.gmra.mxu0 %v115
    %v486 = vpop.f32.mrf.mxu0
    %v487 = vadd.f32 %v167, %v486
    %v488 = vpop.f32.mrf.mxu0
    %v489 = vadd.f32 %v167, %v488
    %490 = vmatmul.bf16.gmra.mxu0 %v116
    %v491 = vpop.f32.mrf.mxu0
    %v492 = vadd.f32 %v167, %v491
    %v493 = vpop.f32.mrf.mxu0
    %v494 = vadd.f32 %v167, %v493
    %495 = vmatmul.bf16.gmra.mxu0 %v117
    %v496 = vpop.f32.mrf.mxu0
    %v497 = vadd.f32 %v167, %v496
    %v498 = vpop.f32.mrf.mxu0
    %v499 = vadd.f32 %v167, %v498
    %500 = vmatmul.bf16.gmra.mxu0 %v118
    %v501 = vpop.f32.mrf.mxu0
    %v502 = vadd.f32 %v167, %v501
    %v503 = vpop.f32.mrf.mxu0
    %v504 = vadd.f32 %v167, %v503
    %505 = vmatmul.bf16.gmra.mxu0 %v119
    %v506 = vpop.f32.mrf.mxu0
    %v507 = vadd.f32 %v167, %v506
    %v508 = vpop.f32.mrf.mxu0
    %v509 = vadd.f32 %v167, %v508
    %510 = vmatmul.bf16.gmra.mxu0 %v120
    %v511 = vpop.f32.mrf.mxu0
    %v512 = vadd.f32 %v167, %v511
    %v513 = vpop.f32.mrf.mxu0
    %v514 = vadd.f32 %v167, %v513
    %515 = vmatmul.bf16.gmra.mxu0 %v121
    %v516 = vpop.f32.mrf.mxu0
    %v517 = vadd.f32 %v167, %v516
    %v518 = vpop.f32.mrf.mxu0
    %v519 = vadd.f32 %v167, %v518
    %520 = vmatmul.bf16.gmra.mxu0 %v122
    %v521 = vpop.f32.mrf.mxu0
    %v522 = vadd.f32 %v167, %v521
    %v523 = vpop.f32.mrf.mxu0
    %v524 = vadd.f32 %v167, %v523
    %525 = vmatmul.bf16.gmra.mxu0 %v123
    %v526 = vpop.f32.mrf.mxu0
    %v527 = vadd.f32 %v167, %v526
    %v528 = vpop.f32.mrf.mxu0
    %v529 = vadd.f32 %v167, %v528
    %530 = vmatmul.bf16.gmra.mxu0 %v124
    %v531 = vpop.f32.mrf.mxu0
    %v532 = vadd.f32 %v167, %v531
    %v533 = vpop.f32.mrf.mxu0
    %v534 = vadd.f32 %v167, %v533
    %535 = vmatmul.bf16.gmra.mxu0 %v125
    %v536 = vpop.f32.mrf.mxu0
    %v537 = vadd.f32 %v167, %v536
    %v538 = vpop.f32.mrf.mxu0
    %v539 = vadd.f32 %v167, %v538
    %540 = vmatmul.bf16.gmra.mxu0 %v126
    %v541 = vpop.f32.mrf.mxu0
    %v542 = vadd.f32 %v167, %v541
    %v543 = vpop.f32.mrf.mxu0
    %v544 = vadd.f32 %v167, %v543
    %545 = vmatmul.bf16.gmra.mxu0 %v127
    %v546 = vpop.f32.mrf.mxu0
    %v547 = vadd.f32 %v167, %v546
    %v548 = vpop.f32.mrf.mxu0
    %v549 = vadd.f32 %v167, %v548
    %550 = vmatmul.bf16.gmra.mxu0 %v128
    %v551 = vpop.f32.mrf.mxu0
    %v552 = vadd.f32 %v167, %v551
    %v553 = vpop.f32.mrf.mxu0
    %v554 = vadd.f32 %v167, %v553
    %555 = vmatmul.bf16.gmra.mxu0 %v129
    %v556 = vpop.f32.mrf.mxu0
    %v557 = vadd.f32 %v167, %v556
    %v558 = vpop.f32.mrf.mxu0
    %v559 = vadd.f32 %v167, %v558
    %560 = vmatmul.bf16.gmra.mxu0 %v130
    %v561 = vpop.f32.mrf.mxu0
    %v562 = vadd.f32 %v167, %v561
    %v563 = vpop.f32.mrf.mxu0
    %v564 = vadd.f32 %v167, %v563
    %565 = vdwg.mxu0
    %v566 = vmul.f32 %v309, 0.17677669
    %v567 = vmul.f32 %v311, 0.17677669
    %v568 = vmul.f32 %v314, 0.17677669
    %v569 = vmul.f32 %v316, 0.17677669
    %v570 = vmul.f32 %v319, 0.17677669
    %v571 = vmul.f32 %v321, 0.17677669
    %v572 = vmul.f32 %v324, 0.17677669
    %v573 = vmul.f32 %v326, 0.17677669
    %v574 = vmul.f32 %v329, 0.17677669
    %v575 = vmul.f32 %v331, 0.17677669
    %v576 = vmul.f32 %v334, 0.17677669
    %v577 = vmul.f32 %v336, 0.17677669
    %v578 = vmul.f32 %v339, 0.17677669
    %v579 = vmul.f32 %v341, 0.17677669
    %v580 = vmul.f32 %v344, 0.17677669
    %v581 = vmul.f32 %v346, 0.17677669
    %v582 = vmul.f32 %v349, 0.17677669
    %v583 = vmul.f32 %v351, 0.17677669
    %v584 = vmul.f32 %v354, 0.17677669
    %v585 = vmul.f32 %v356, 0.17677669
    %v586 = vmul.f32 %v359, 0.17677669
    %v587 = vmul.f32 %v361, 0.17677669
    %v588 = vmul.f32 %v364, 0.17677669
    %v589 = vmul.f32 %v366, 0.17677669
    %v590 = vmul.f32 %v369, 0.17677669
    %v591 = vmul.f32 %v371, 0.17677669
    %v592 = vmul.f32 %v374, 0.17677669
    %v593 = vmul.f32 %v376, 0.17677669
    %v594 = vmul.f32 %v379, 0.17677669
    %v595 = vmul.f32 %v381, 0.17677669
    %v596 = vmul.f32 %v384, 0.17677669
    %v597 = vmul.f32 %v386, 0.17677669
    %v598 = vpack.c.bf16 %v567, %v566
    %v599 = vpack.c.bf16 %v569, %v568
    %v600 = vpack.c.bf16 %v571, %v570
    %v601 = vpack.c.bf16 %v573, %v572
    %v602 = vpack.c.bf16 %v400, %v398
    %v603 = vpack.c.bf16 %v405, %v403
    %v604 = vpack.c.bf16 %v410, %v408
    %v605 = vpack.c.bf16 %v415, %v413
    %v606 = vpack.c.bf16 %v489, %v487
    %v607 = vpack.c.bf16 %v494, %v492
    %v608 = vpack.c.bf16 %v499, %v497
    %v609 = vpack.c.bf16 %v504, %v502
    %vm610 = vcmask 261120
    %v612 = vsel %vm610, %v598, 0
    %v615 = vsel %vm610, %v599, 0
    %v618 = vsel %vm610, %v600, 0
    %v621 = vsel %vm610, %v601, 0
    %v624 = vsel %vm610, %v602, 0
    %v627 = vsel %vm610, %v603, 0
    %v630 = vsel %vm610, %v604, 0
    %v633 = vsel %vm610, %v605, 0
    %635 = vmatpush.bf16.xpose.msra.mxu0 0
    %636 = vmatpush.bf16.xpose.msra.mxu0 0
    %637 = vmatpush.bf16.xpose.msra.mxu0 0
    %638 = vmatpush.bf16.xpose.msra.mxu0 0
    %639 = vmatpush.bf16.xpose.msra.mxu0 %v633
    %640 = vmatpush.bf16.xpose.msra.mxu0 %v630
    %641 = vmatpush.bf16.xpose.msra.mxu0 %v627
    %642 = vmatpush.bf16.xpose.msra.mxu0 %v624
    %643 = vmatmul.bf16.gmra.mxu0 %v612
    %v644 = vpop.f32.mrf.mxu0
    %v645 = vadd.f32 0.0, %v644
    %v646 = vpop.f32.mrf.mxu0
    %v647 = vadd.f32 0.0, %v646
    %648 = vmatmul.bf16.gmra.mxu0 %v615
    %v649 = vpop.f32.mrf.mxu0
    %v650 = vadd.f32 0.0, %v649
    %v651 = vpop.f32.mrf.mxu0
    %v652 = vadd.f32 0.0, %v651
    %653 = vmatmul.bf16.gmra.mxu0 %v618
    %v654 = vpop.f32.mrf.mxu0
    %v655 = vadd.f32 0.0, %v654
    %v656 = vpop.f32.mrf.mxu0
    %v657 = vadd.f32 0.0, %v656
    %658 = vmatmul.bf16.gmra.mxu0 %v621
    %v659 = vpop.f32.mrf.mxu0
    %v660 = vadd.f32 0.0, %v659
    %v661 = vpop.f32.mrf.mxu0
    %v662 = vadd.f32 0.0, %v661
    %663 = vdwg.mxu0
    %vm664 = vcmask 523264
    %v665 = vsel %vm664, %v645, -inf
    %666 = vmax.xlane.f32.xlu0 %v665
    %v667 = vpop.xlane.xlu0 %666
    %v668 = vsel %vm664, %v647, -inf
    %669 = vmax.xlane.f32.xlu0 %v668
    %v670 = vpop.xlane.xlu0 %669
    %v671 = vsel %vm664, %v650, -inf
    %672 = vmax.xlane.f32.xlu0 %v671
    %v673 = vpop.xlane.xlu0 %672
    %v674 = vsel %vm664, %v652, -inf
    %675 = vmax.xlane.f32.xlu0 %v674
    %v676 = vpop.xlane.xlu0 %675
    %v677 = vsel %vm664, %v655, -inf
    %678 = vmax.xlane.f32.xlu0 %v677
    %v679 = vpop.xlane.xlu0 %678
    %v680 = vsel %vm664, %v657, -inf
    %681 = vmax.xlane.f32.xlu0 %v680
    %v682 = vpop.xlane.xlu0 %681
    %v683 = vsel %vm664, %v660, -inf
    %684 = vmax.xlane.f32.xlu0 %v683
    %v685 = vpop.xlane.xlu0 %684
    %v686 = vsel %vm664, %v662, -inf
    %687 = vmax.xlane.f32.xlu0 %v686
    %v688 = vpop.xlane.xlu0 %687
    %v689 = vsub.f32 %v645, %v667
    %v690 = vsub.f32 %v647, %v670
    %v691 = vsub.f32 %v650, %v673
    %v692 = vsub.f32 %v652, %v676
    %v693 = vsub.f32 %v655, %v679
    %v694 = vsub.f32 %v657, %v682
    %v695 = vsub.f32 %v660, %v685
    %v696 = vsub.f32 %v662, %v688
    %v697 = vmul.f32 %v689, 1.442695
    %v698 = vpow.pop %v697
    %v699 = vmul.f32 %v690, 1.442695
    %v700 = vpow.pop %v699
    %v701 = vmul.f32 %v691, 1.442695
    %v702 = vpow.pop %v701
    %v703 = vmul.f32 %v692, 1.442695
    %v704 = vpow.pop %v703
    %v705 = vmul.f32 %v693, 1.442695
    %v706 = vpow.pop %v705
    %v707 = vmul.f32 %v694, 1.442695
    %v708 = vpow.pop %v707
    %v709 = vmul.f32 %v695, 1.442695
    %v710 = vpow.pop %v709
    %v711 = vmul.f32 %v696, 1.442695
    %v712 = vpow.pop %v711
    %v713 = vsel %vm664, %v698, 0.0
    %714 = vadd.xlane.f32.xlu0 %v713
    %v715 = vpop.xlane.xlu0 %714
    %v716 = vsel %vm664, %v700, 0.0
    %717 = vadd.xlane.f32.xlu0 %v716
    %v718 = vpop.xlane.xlu0 %717
    %v719 = vsel %vm664, %v702, 0.0
    %720 = vadd.xlane.f32.xlu0 %v719
    %v721 = vpop.xlane.xlu0 %720
    %v722 = vsel %vm664, %v704, 0.0
    %723 = vadd.xlane.f32.xlu0 %v722
    %v724 = vpop.xlane.xlu0 %723
    %v725 = vsel %vm664, %v706, 0.0
    %726 = vadd.xlane.f32.xlu0 %v725
    %v727 = vpop.xlane.xlu0 %726
    %v728 = vsel %vm664, %v708, 0.0
    %729 = vadd.xlane.f32.xlu0 %v728
    %v730 = vpop.xlane.xlu0 %729
    %v731 = vsel %vm664, %v710, 0.0
    %732 = vadd.xlane.f32.xlu0 %v731
    %v733 = vpop.xlane.xlu0 %732
    %v734 = vsel %vm664, %v712, 0.0
    %735 = vadd.xlane.f32.xlu0 %v734
    %v736 = vpop.xlane.xlu0 %735
    %v737 = vrcp.pop %v715
    %v738 = vrcp.pop %v718
    %v739 = vrcp.pop %v721
    %v740 = vrcp.pop %v724
    %v741 = vrcp.pop %v727
    %v742 = vrcp.pop %v730
    %v743 = vrcp.pop %v733
    %v744 = vrcp.pop %v736
    %v745 = vmul.f32 %v698, %v737
    %v746 = vmul.f32 %v700, %v738
    %v747 = vmul.f32 %v702, %v739
    %v748 = vmul.f32 %v704, %v740
    %v749 = vmul.f32 %v706, %v741
    %v750 = vmul.f32 %v708, %v742
    %v751 = vmul.f32 %v710, %v743
    %v752 = vmul.f32 %v712, %v744
    %v753 = vpack.c.bf16 %v746, %v745
    %v754 = vpack.c.bf16 %v748, %v747
    %v755 = vpack.c.bf16 %v750, %v749
    %v756 = vpack.c.bf16 %v752, %v751
    %v758 = vsel %vm664, %v753, 0
    %v761 = vsel %vm664, %v754, 0
    %v764 = vsel %vm664, %v755, 0
    %v767 = vsel %vm664, %v756, 0
    %769 = vmatpush.bf16.msra.mxu0 0
    %770 = vmatpush.bf16.msra.mxu0 0
    %771 = vmatpush.bf16.msra.mxu0 0
    %772 = vmatpush.bf16.msra.mxu0 0
    %773 = vmatpush.bf16.msra.mxu0 %v609
    %774 = vmatpush.bf16.msra.mxu0 %v608
    %775 = vmatpush.bf16.msra.mxu0 %v607
    %776 = vmatpush.bf16.msra.mxu0 %v606
    %777 = vmatmul.bf16.gmra.mxu0 %v758
    %v778 = vpop.f32.mrf.mxu0
    %v779 = vadd.f32 0.0, %v778
    %v780 = vpop.f32.mrf.mxu0
    %v781 = vadd.f32 0.0, %v780
    %782 = vmatmul.bf16.gmra.mxu0 %v761
    %v783 = vpop.f32.mrf.mxu0
    %v784 = vadd.f32 0.0, %v783
    %v785 = vpop.f32.mrf.mxu0
    %v786 = vadd.f32 0.0, %v785
    %787 = vmatmul.bf16.gmra.mxu0 %v764
    %v788 = vpop.f32.mrf.mxu0
    %v789 = vadd.f32 0.0, %v788
    %v790 = vpop.f32.mrf.mxu0
    %v791 = vadd.f32 0.0, %v790
    %792 = vmatmul.bf16.gmra.mxu0 %v767
    %v793 = vpop.f32.mrf.mxu0
    %v794 = vadd.f32 0.0, %v793
    %v795 = vpop.f32.mrf.mxu0
    %v796 = vadd.f32 0.0, %v795
    %797 = vdwg.mxu0
    %v798 = vpack.c.bf16 %v779, %v779
    %v799 = vpack.c.bf16 %v781, %v781
    %v800 = vpack.c.bf16 %v784, %v784
    %v801 = vpack.c.bf16 %v786, %v786
    %v802 = vpack.c.bf16 %v789, %v789
    %v803 = vpack.c.bf16 %v791, %v791
    %v804 = vpack.c.bf16 %v794, %v794
    %v805 = vpack.c.bf16 %v796, %v796
    %vm806 = vcmask 257024
    %807 = vst.msk [vmem:[#allocation2] sm:$0xf] %vm806, %v798
    %808 = vst.msk [vmem:[#allocation2 + $0x4] sm:$0xf] %vm806, %v799
    %809 = vst.msk [vmem:[#allocation2 + $0x8] sm:$0xf] %vm806, %v800
    %810 = vst.msk [vmem:[#allocation2 + $0xc] sm:$0xf] %vm806, %v801
    %811 = vst.msk [vmem:[#allocation2 + $0x10] sm:$0xf] %vm806, %v802
    %812 = vst.msk [vmem:[#allocation2 + $0x14] sm:$0xf] %vm806, %v803
    %813 = vst.msk [vmem:[#allocation2 + $0x18] sm:$0xf] %vm806, %v804
    %814 = vst.msk [vmem:[#allocation2 + $0x1c] sm:$0xf] %vm806, %v805
    %819 = vrot.lane.b32.xlu0 %v598, 96
    %v820 = vpop.permute.xlu0 %819
    %821 = vrot.lane.b32.xlu0 %v599, 96
    %v822 = vpop.permute.xlu0 %821
    %823 = vrot.lane.b32.xlu0 %v600, 96
    %v824 = vpop.permute.xlu0 %823
    %825 = vrot.lane.b32.xlu0 %v601, 96
    %v826 = vpop.permute.xlu0 %825
    %831 = vrot.lane.b32.xlu0 %v602, 96
    %v832 = vpop.permute.xlu0 %831
    %833 = vrot.lane.b32.xlu0 %v603, 96
    %v834 = vpop.permute.xlu0 %833
    %835 = vrot.lane.b32.xlu0 %v604, 96
    %v836 = vpop.permute.xlu0 %835
    %837 = vrot.lane.b32.xlu0 %v605, 96
    %v838 = vpop.permute.xlu0 %837
    %v840 = vsel %vm610, %v820, 0
    %v843 = vsel %vm610, %v822, 0
    %v846 = vsel %vm610, %v824, 0
    %v849 = vsel %vm610, %v826, 0
    %v852 = vsel %vm610, %v832, 0
    %v855 = vsel %vm610, %v834, 0
    %v858 = vsel %vm610, %v836, 0
    %v861 = vsel %vm610, %v838, 0
    %863 = vmatpush.bf16.xpose.msra.mxu0 0
    %864 = vmatpush.bf16.xpose.msra.mxu0 0
    %865 = vmatpush.bf16.xpose.msra.mxu0 0
    %866 = vmatpush.bf16.xpose.msra.mxu0 0
    %867 = vmatpush.bf16.xpose.msra.mxu0 %v861
    %868 = vmatpush.bf16.xpose.msra.mxu0 %v858
    %869 = vmatpush.bf16.xpose.msra.mxu0 %v855
    %870 = vmatpush.bf16.xpose.msra.mxu0 %v852
    %871 = vmatmul.bf16.gmra.mxu0 %v840
    %v872 = vpop.f32.mrf.mxu0
    %v873 = vadd.f32 0.0, %v872
    %v874 = vpop.f32.mrf.mxu0
    %v875 = vadd.f32 0.0, %v874
    %876 = vmatmul.bf16.gmra.mxu0 %v843
    %v877 = vpop.f32.mrf.mxu0
    %v878 = vadd.f32 0.0, %v877
    %v879 = vpop.f32.mrf.mxu0
    %v880 = vadd.f32 0.0, %v879
    %881 = vmatmul.bf16.gmra.mxu0 %v846
    %v882 = vpop.f32.mrf.mxu0
    %v883 = vadd.f32 0.0, %v882
    %v884 = vpop.f32.mrf.mxu0
    %v885 = vadd.f32 0.0, %v884
    %886 = vmatmul.bf16.gmra.mxu0 %v849
    %v887 = vpop.f32.mrf.mxu0
    %v888 = vadd.f32 0.0, %v887
    %v889 = vpop.f32.mrf.mxu0
    %v890 = vadd.f32 0.0, %v889
    %891 = vdwg.mxu0
    %v892 = vsel %vm664, %v873, -inf
    %893 = vmax.xlane.f32.xlu0 %v892
    %v894 = vpop.xlane.xlu0 %893
    %v895 = vsel %vm664, %v875, -inf
    %896 = vmax.xlane.f32.xlu0 %v895
    %v897 = vpop.xlane.xlu0 %896
    %v898 = vsel %vm664, %v878, -inf
    %899 = vmax.xlane.f32.xlu0 %v898
    %v900 = vpop.xlane.xlu0 %899
    %v901 = vsel %vm664, %v880, -inf
    %902 = vmax.xlane.f32.xlu0 %v901
    %v903 = vpop.xlane.xlu0 %902
    %v904 = vsel %vm664, %v883, -inf
    %905 = vmax.xlane.f32.xlu0 %v904
    %v906 = vpop.xlane.xlu0 %905
    %v907 = vsel %vm664, %v885, -inf
    %908 = vmax.xlane.f32.xlu0 %v907
    %v909 = vpop.xlane.xlu0 %908
    %v910 = vsel %vm664, %v888, -inf
    %911 = vmax.xlane.f32.xlu0 %v910
    %v912 = vpop.xlane.xlu0 %911
    %v913 = vsel %vm664, %v890, -inf
    %914 = vmax.xlane.f32.xlu0 %v913
    %v915 = vpop.xlane.xlu0 %914
    %v916 = vsub.f32 %v873, %v894
    %v917 = vsub.f32 %v875, %v897
    %v918 = vsub.f32 %v878, %v900
    %v919 = vsub.f32 %v880, %v903
    %v920 = vsub.f32 %v883, %v906
    %v921 = vsub.f32 %v885, %v909
    %v922 = vsub.f32 %v888, %v912
    %v923 = vsub.f32 %v890, %v915
    %v924 = vmul.f32 %v916, 1.442695
    %v925 = vpow.pop %v924
    %v926 = vmul.f32 %v917, 1.442695
    %v927 = vpow.pop %v926
    %v928 = vmul.f32 %v918, 1.442695
    %v929 = vpow.pop %v928
    %v930 = vmul.f32 %v919, 1.442695
    %v931 = vpow.pop %v930
    %v932 = vmul.f32 %v920, 1.442695
    %v933 = vpow.pop %v932
    %v934 = vmul.f32 %v921, 1.442695
    %v935 = vpow.pop %v934
    %v936 = vmul.f32 %v922, 1.442695
    %v937 = vpow.pop %v936
    %v938 = vmul.f32 %v923, 1.442695
    %v939 = vpow.pop %v938
    %v940 = vsel %vm664, %v925, 0.0
    %941 = vadd.xlane.f32.xlu0 %v940
    %v942 = vpop.xlane.xlu0 %941
    %v943 = vsel %vm664, %v927, 0.0
    %944 = vadd.xlane.f32.xlu0 %v943
    %v945 = vpop.xlane.xlu0 %944
    %v946 = vsel %vm664, %v929, 0.0
    %947 = vadd.xlane.f32.xlu0 %v946
    %v948 = vpop.xlane.xlu0 %947
    %v949 = vsel %vm664, %v931, 0.0
    %950 = vadd.xlane.f32.xlu0 %v949
    %v951 = vpop.xlane.xlu0 %950
    %v952 = vsel %vm664, %v933, 0.0
    %953 = vadd.xlane.f32.xlu0 %v952
    %v954 = vpop.xlane.xlu0 %953
    %v955 = vsel %vm664, %v935, 0.0
    %956 = vadd.xlane.f32.xlu0 %v955
    %v957 = vpop.xlane.xlu0 %956
    %v958 = vsel %vm664, %v937, 0.0
    %959 = vadd.xlane.f32.xlu0 %v958
    %v960 = vpop.xlane.xlu0 %959
    %v961 = vsel %vm664, %v939, 0.0
    %962 = vadd.xlane.f32.xlu0 %v961
    %v963 = vpop.xlane.xlu0 %962
    %v964 = vrcp.pop %v942
    %v965 = vrcp.pop %v945
    %v966 = vrcp.pop %v948
    %v967 = vrcp.pop %v951
    %v968 = vrcp.pop %v954
    %v969 = vrcp.pop %v957
    %v970 = vrcp.pop %v960
    %v971 = vrcp.pop %v963
    %v972 = vmul.f32 %v925, %v964
    %v973 = vmul.f32 %v927, %v965
    %v974 = vmul.f32 %v929, %v966
    %v975 = vmul.f32 %v931, %v967
    %v976 = vmul.f32 %v933, %v968
    %v977 = vmul.f32 %v935, %v969
    %v978 = vmul.f32 %v937, %v970
    %v979 = vmul.f32 %v939, %v971
    %v980 = vpack.c.bf16 %v973, %v972
    %v981 = vpack.c.bf16 %v975, %v974
    %v982 = vpack.c.bf16 %v977, %v976
    %v983 = vpack.c.bf16 %v979, %v978
    %988 = vrot.lane.b32.xlu0 %v606, 96
    %v989 = vpop.permute.xlu0 %988
    %990 = vrot.lane.b32.xlu0 %v607, 96
    %v991 = vpop.permute.xlu0 %990
    %992 = vrot.lane.b32.xlu0 %v608, 96
    %v993 = vpop.permute.xlu0 %992
    %994 = vrot.lane.b32.xlu0 %v609, 96
    %v995 = vpop.permute.xlu0 %994
    %v1001 = vsel %vm664, %v980, 0
    %v1004 = vsel %vm664, %v981, 0
    %v1007 = vsel %vm664, %v982, 0
    %v1010 = vsel %vm664, %v983, 0
    %1012 = vmatpush.bf16.msra.mxu0 0
    %1013 = vmatpush.bf16.msra.mxu0 0
    %1014 = vmatpush.bf16.msra.mxu0 0
    %1015 = vmatpush.bf16.msra.mxu0 0
    %1016 = vmatpush.bf16.msra.mxu0 %v995
    %1017 = vmatpush.bf16.msra.mxu0 %v993
    %1018 = vmatpush.bf16.msra.mxu0 %v991
    %1019 = vmatpush.bf16.msra.mxu0 %v989
    %1020 = vmatmul.bf16.gmra.mxu0 %v1001
    %v1021 = vpop.f32.mrf.mxu0
    %v1022 = vadd.f32 0.0, %v1021
    %v1023 = vpop.f32.mrf.mxu0
    %v1024 = vadd.f32 0.0, %v1023
    %1025 = vmatmul.bf16.gmra.mxu0 %v1004
    %v1026 = vpop.f32.mrf.mxu0
    %v1027 = vadd.f32 0.0, %v1026
    %v1028 = vpop.f32.mrf.mxu0
    %v1029 = vadd.f32 0.0, %v1028
    %1030 = vmatmul.bf16.gmra.mxu0 %v1007
    %v1031 = vpop.f32.mrf.mxu0
    %v1032 = vadd.f32 0.0, %v1031
    %v1033 = vpop.f32.mrf.mxu0
    %v1034 = vadd.f32 0.0, %v1033
    %1035 = vmatmul.bf16.gmra.mxu0 %v1010
    %v1036 = vpop.f32.mrf.mxu0
    %v1037 = vadd.f32 0.0, %v1036
    %v1038 = vpop.f32.mrf.mxu0
    %v1039 = vadd.f32 0.0, %v1038
    %1040 = vdwg.mxu0
    %v1041 = vpack.c.bf16 %v1022, %v1022
    %v1042 = vpack.c.bf16 %v1024, %v1024
    %v1043 = vpack.c.bf16 %v1027, %v1027
    %v1044 = vpack.c.bf16 %v1029, %v1029
    %v1045 = vpack.c.bf16 %v1032, %v1032
    %v1046 = vpack.c.bf16 %v1034, %v1034
    %v1047 = vpack.c.bf16 %v1037, %v1037
    %v1048 = vpack.c.bf16 %v1039, %v1039
    %1057 = vrot.lane.b32.xlu0 %v1041, 32
    %v1058 = vpop.permute.xlu0 %1057
    %1059 = vrot.lane.b32.xlu0 %v1042, 32
    %v1060 = vpop.permute.xlu0 %1059
    %1061 = vrot.lane.b32.xlu0 %v1043, 32
    %v1062 = vpop.permute.xlu0 %1061
    %1063 = vrot.lane.b32.xlu0 %v1044, 32
    %v1064 = vpop.permute.xlu0 %1063
    %1065 = vrot.lane.b32.xlu0 %v1045, 32
    %v1066 = vpop.permute.xlu0 %1065
    %1067 = vrot.lane.b32.xlu0 %v1046, 32
    %v1068 = vpop.permute.xlu0 %1067
    %1069 = vrot.lane.b32.xlu0 %v1047, 32
    %v1070 = vpop.permute.xlu0 %1069
    %1071 = vrot.lane.b32.xlu0 %v1048, 32
    %v1072 = vpop.permute.xlu0 %1071
    %vm1081 = vcmask 519424
    %1082 = vst.msk [vmem:[#allocation2] sm:$0xf] %vm1081, %v1058
    %1083 = vst.msk [vmem:[#allocation2 + $0x4] sm:$0xf] %vm1081, %v1060
    %1084 = vst.msk [vmem:[#allocation2 + $0x8] sm:$0xf] %vm1081, %v1062
    %1085 = vst.msk [vmem:[#allocation2 + $0xc] sm:$0xf] %vm1081, %v1064
    %1086 = vst.msk [vmem:[#allocation2 + $0x10] sm:$0xf] %vm1081, %v1066
    %1087 = vst.msk [vmem:[#allocation2 + $0x14] sm:$0xf] %vm1081, %v1068
    %1088 = vst.msk [vmem:[#allocation2 + $0x18] sm:$0xf] %vm1081, %v1070
    %1089 = vst.msk [vmem:[#allocation2 + $0x1c] sm:$0xf] %vm1081, %v1072
    %1090 = vrot.lane.b32.xlu0 %v598, 64
    %v1091 = vpop.permute.xlu0 %1090
    %1092 = vrot.lane.b32.xlu0 %v599, 64
    %v1093 = vpop.permute.xlu0 %1092
    %1094 = vrot.lane.b32.xlu0 %v600, 64
    %v1095 = vpop.permute.xlu0 %1094
    %1096 = vrot.lane.b32.xlu0 %v601, 64
    %v1097 = vpop.permute.xlu0 %1096
    %1098 = vrot.lane.b32.xlu0 %v602, 64
    %v1099 = vpop.permute.xlu0 %1098
    %1100 = vrot.lane.b32.xlu0 %v603, 64
    %v1101 = vpop.permute.xlu0 %1100
    %1102 = vrot.lane.b32.xlu0 %v604, 64
    %v1103 = vpop.permute.xlu0 %1102
    %1104 = vrot.lane.b32.xlu0 %v605, 64
    %v1105 = vpop.permute.xlu0 %1104
    %v1107 = vsel %vm610, %v1091, 0
    %v1110 = vsel %vm610, %v1093, 0
    %v1113 = vsel %vm610, %v1095, 0
    %v1116 = vsel %vm610, %v1097, 0
    %v1119 = vsel %vm610, %v1099, 0
    %v1122 = vsel %vm610, %v1101, 0
    %v1125 = vsel %vm610, %v1103, 0
    %v1128 = vsel %vm610, %v1105, 0
    %1130 = vmatpush.bf16.xpose.msra.mxu0 0
    %1131 = vmatpush.bf16.xpose.msra.mxu0 0
    %1132 = vmatpush.bf16.xpose.msra.mxu0 0
    %1133 = vmatpush.bf16.xpose.msra.mxu0 0
    %1134 = vmatpush.bf16.xpose.msra.mxu0 %v1128
    %1135 = vmatpush.bf16.xpose.msra.mxu0 %v1125
    %1136 = vmatpush.bf16.xpose.msra.mxu0 %v1122
    %1137 = vmatpush.bf16.xpose.msra.mxu0 %v1119
    %1138 = vmatmul.bf16.gmra.mxu0 %v1107
    %v1139 = vpop.f32.mrf.mxu0
    %v1140 = vadd.f32 0.0, %v1139
    %v1141 = vpop.f32.mrf.mxu0
    %v1142 = vadd.f32 0.0, %v1141
    %1143 = vmatmul.bf16.gmra.mxu0 %v1110
    %v1144 = vpop.f32.mrf.mxu0
    %v1145 = vadd.f32 0.0, %v1144
    %v1146 = vpop.f32.mrf.mxu0
    %v1147 = vadd.f32 0.0, %v1146
    %1148 = vmatmul.bf16.gmra.mxu0 %v1113
    %v1149 = vpop.f32.mrf.mxu0
    %v1150 = vadd.f32 0.0, %v1149
    %v1151 = vpop.f32.mrf.mxu0
    %v1152 = vadd.f32 0.0, %v1151
    %1153 = vmatmul.bf16.gmra.mxu0 %v1116
    %v1154 = vpop.f32.mrf.mxu0
    %v1155 = vadd.f32 0.0, %v1154
    %v1156 = vpop.f32.mrf.mxu0
    %v1157 = vadd.f32 0.0, %v1156
    %1158 = vdwg.mxu0
    %v1159 = vsel %vm664, %v1140, -inf
    %1160 = vmax.xlane.f32.xlu0 %v1159
    %v1161 = vpop.xlane.xlu0 %1160
    %v1162 = vsel %vm664, %v1142, -inf
    %1163 = vmax.xlane.f32.xlu0 %v1162
    %v1164 = vpop.xlane.xlu0 %1163
    %v1165 = vsel %vm664, %v1145, -inf
    %1166 = vmax.xlane.f32.xlu0 %v1165
    %v1167 = vpop.xlane.xlu0 %1166
    %v1168 = vsel %vm664, %v1147, -inf
    %1169 = vmax.xlane.f32.xlu0 %v1168
    %v1170 = vpop.xlane.xlu0 %1169
    %v1171 = vsel %vm664, %v1150, -inf
    %1172 = vmax.xlane.f32.xlu0 %v1171
    %v1173 = vpop.xlane.xlu0 %1172
    %v1174 = vsel %vm664, %v1152, -inf
    %1175 = vmax.xlane.f32.xlu0 %v1174
    %v1176 = vpop.xlane.xlu0 %1175
    %v1177 = vsel %vm664, %v1155, -inf
    %1178 = vmax.xlane.f32.xlu0 %v1177
    %v1179 = vpop.xlane.xlu0 %1178
    %v1180 = vsel %vm664, %v1157, -inf
    %1181 = vmax.xlane.f32.xlu0 %v1180
    %v1182 = vpop.xlane.xlu0 %1181
    %v1183 = vsub.f32 %v1140, %v1161
    %v1184 = vsub.f32 %v1142, %v1164
    %v1185 = vsub.f32 %v1145, %v1167
    %v1186 = vsub.f32 %v1147, %v1170
    %v1187 = vsub.f32 %v1150, %v1173
    %v1188 = vsub.f32 %v1152, %v1176
    %v1189 = vsub.f32 %v1155, %v1179
    %v1190 = vsub.f32 %v1157, %v1182
    %v1191 = vmul.f32 %v1183, 1.442695
    %v1192 = vpow.pop %v1191
    %v1193 = vmul.f32 %v1184, 1.442695
    %v1194 = vpow.pop %v1193
    %v1195 = vmul.f32 %v1185, 1.442695
    %v1196 = vpow.pop %v1195
    %v1197 = vmul.f32 %v1186, 1.442695
    %v1198 = vpow.pop %v1197
    %v1199 = vmul.f32 %v1187, 1.442695
    %v1200 = vpow.pop %v1199
    %v1201 = vmul.f32 %v1188, 1.442695
    %v1202 = vpow.pop %v1201
    %v1203 = vmul.f32 %v1189, 1.442695
    %v1204 = vpow.pop %v1203
    %v1205 = vmul.f32 %v1190, 1.442695
    %v1206 = vpow.pop %v1205
    %v1207 = vsel %vm664, %v1192, 0.0
    %1208 = vadd.xlane.f32.xlu0 %v1207
    %v1209 = vpop.xlane.xlu0 %1208
    %v1210 = vsel %vm664, %v1194, 0.0
    %1211 = vadd.xlane.f32.xlu0 %v1210
    %v1212 = vpop.xlane.xlu0 %1211
    %v1213 = vsel %vm664, %v1196, 0.0
    %1214 = vadd.xlane.f32.xlu0 %v1213
    %v1215 = vpop.xlane.xlu0 %1214
    %v1216 = vsel %vm664, %v1198, 0.0
    %1217 = vadd.xlane.f32.xlu0 %v1216
    %v1218 = vpop.xlane.xlu0 %1217
    %v1219 = vsel %vm664, %v1200, 0.0
    %1220 = vadd.xlane.f32.xlu0 %v1219
    %v1221 = vpop.xlane.xlu0 %1220
    %v1222 = vsel %vm664, %v1202, 0.0
    %1223 = vadd.xlane.f32.xlu0 %v1222
    %v1224 = vpop.xlane.xlu0 %1223
    %v1225 = vsel %vm664, %v1204, 0.0
    %1226 = vadd.xlane.f32.xlu0 %v1225
    %v1227 = vpop.xlane.xlu0 %1226
    %v1228 = vsel %vm664, %v1206, 0.0
    %1229 = vadd.xlane.f32.xlu0 %v1228
    %v1230 = vpop.xlane.xlu0 %1229
    %v1231 = vrcp.pop %v1209
    %v1232 = vrcp.pop %v1212
    %v1233 = vrcp.pop %v1215
    %v1234 = vrcp.pop %v1218
    %v1235 = vrcp.pop %v1221
    %v1236 = vrcp.pop %v1224
    %v1237 = vrcp.pop %v1227
    %v1238 = vrcp.pop %v1230
    %v1239 = vmul.f32 %v1192, %v1231
    %v1240 = vmul.f32 %v1194, %v1232
    %v1241 = vmul.f32 %v1196, %v1233
    %v1242 = vmul.f32 %v1198, %v1234
    %v1243 = vmul.f32 %v1200, %v1235
    %v1244 = vmul.f32 %v1202, %v1236
    %v1245 = vmul.f32 %v1204, %v1237
    %v1246 = vmul.f32 %v1206, %v1238
    %v1247 = vpack.c.bf16 %v1240, %v1239
    %v1248 = vpack.c.bf16 %v1242, %v1241
    %v1249 = vpack.c.bf16 %v1244, %v1243
    %v1250 = vpack.c.bf16 %v1246, %v1245
    %1251 = vrot.lane.b32.xlu0 %v606, 64
    %v1252 = vpop.permute.xlu0 %1251
    %1253 = vrot.lane.b32.xlu0 %v607, 64
    %v1254 = vpop.permute.xlu0 %1253
    %1255 = vrot.lane.b32.xlu0 %v608, 64
    %v1256 = vpop.permute.xlu0 %1255
    %1257 = vrot.lane.b32.xlu0 %v609, 64
    %v1258 = vpop.permute.xlu0 %1257
    %v1264 = vsel %vm664, %v1247, 0
    %v1267 = vsel %vm664, %v1248, 0
    %v1270 = vsel %vm664, %v1249, 0
    %v1273 = vsel %vm664, %v1250, 0
    %1275 = vmatpush.bf16.msra.mxu0 0
    %1276 = vmatpush.bf16.msra.mxu0 0
    %1277 = vmatpush.bf16.msra.mxu0 0
    %1278 = vmatpush.bf16.msra.mxu0 0
    %1279 = vmatpush.bf16.msra.mxu0 %v1258
    %1280 = vmatpush.bf16.msra.mxu0 %v1256
    %1281 = vmatpush.bf16.msra.mxu0 %v1254
    %1282 = vmatpush.bf16.msra.mxu0 %v1252
    %1283 = vmatmul.bf16.gmra.mxu0 %v1264
    %v1284 = vpop.f32.mrf.mxu0
    %v1285 = vadd.f32 0.0, %v1284
    %v1286 = vpop.f32.mrf.mxu0
    %v1287 = vadd.f32 0.0, %v1286
    %1288 = vmatmul.bf16.gmra.mxu0 %v1267
    %v1289 = vpop.f32.mrf.mxu0
    %v1290 = vadd.f32 0.0, %v1289
    %v1291 = vpop.f32.mrf.mxu0
    %v1292 = vadd.f32 0.0, %v1291
    %1293 = vmatmul.bf16.gmra.mxu0 %v1270
    %v1294 = vpop.f32.mrf.mxu0
    %v1295 = vadd.f32 0.0, %v1294
    %v1296 = vpop.f32.mrf.mxu0
    %v1297 = vadd.f32 0.0, %v1296
    %1298 = vmatmul.bf16.gmra.mxu0 %v1273
    %v1299 = vpop.f32.mrf.mxu0
    %v1300 = vadd.f32 0.0, %v1299
    %v1301 = vpop.f32.mrf.mxu0
    %v1302 = vadd.f32 0.0, %v1301
    %1303 = vdwg.mxu0
    %v1304 = vpack.c.bf16 %v1285, %v1285
    %v1305 = vpack.c.bf16 %v1287, %v1287
    %v1306 = vpack.c.bf16 %v1290, %v1290
    %v1307 = vpack.c.bf16 %v1292, %v1292
    %v1308 = vpack.c.bf16 %v1295, %v1295
    %v1309 = vpack.c.bf16 %v1297, %v1297
    %v1310 = vpack.c.bf16 %v1300, %v1300
    %v1311 = vpack.c.bf16 %v1302, %v1302
    %1320 = vrot.lane.b32.xlu0 %v1304, 64
    %v1321 = vpop.permute.xlu0 %1320
    %1322 = vrot.lane.b32.xlu0 %v1305, 64
    %v1323 = vpop.permute.xlu0 %1322
    %1324 = vrot.lane.b32.xlu0 %v1306, 64
    %v1325 = vpop.permute.xlu0 %1324
    %1326 = vrot.lane.b32.xlu0 %v1307, 64
    %v1327 = vpop.permute.xlu0 %1326
    %1328 = vrot.lane.b32.xlu0 %v1308, 64
    %v1329 = vpop.permute.xlu0 %1328
    %1330 = vrot.lane.b32.xlu0 %v1309, 64
    %v1331 = vpop.permute.xlu0 %1330
    %1332 = vrot.lane.b32.xlu0 %v1310, 64
    %v1333 = vpop.permute.xlu0 %1332
    %1334 = vrot.lane.b32.xlu0 %v1311, 64
    %v1335 = vpop.permute.xlu0 %1334
    %vm1344 = vcmask 781824
    %1345 = vst.msk [vmem:[#allocation2] sm:$0xf] %vm1344, %v1321
    %1346 = vst.msk [vmem:[#allocation2 + $0x4] sm:$0xf] %vm1344, %v1323
    %1347 = vst.msk [vmem:[#allocation2 + $0x8] sm:$0xf] %vm1344, %v1325
    %1348 = vst.msk [vmem:[#allocation2 + $0xc] sm:$0xf] %vm1344, %v1327
    %1349 = vst.msk [vmem:[#allocation2 + $0x10] sm:$0xf] %vm1344, %v1329
    %1350 = vst.msk [vmem:[#allocation2 + $0x14] sm:$0xf] %vm1344, %v1331
    %1351 = vst.msk [vmem:[#allocation2 + $0x18] sm:$0xf] %vm1344, %v1333
    %1352 = vst.msk [vmem:[#allocation2 + $0x1c] sm:$0xf] %vm1344, %v1335
    %1353 = vrot.lane.b32.xlu0 %v598, 32
    %v1354 = vpop.permute.xlu0 %1353
    %1355 = vrot.lane.b32.xlu0 %v599, 32
    %v1356 = vpop.permute.xlu0 %1355
    %1357 = vrot.lane.b32.xlu0 %v600, 32
    %v1358 = vpop.permute.xlu0 %1357
    %1359 = vrot.lane.b32.xlu0 %v601, 32
    %v1360 = vpop.permute.xlu0 %1359
    %1361 = vrot.lane.b32.xlu0 %v602, 32
    %v1362 = vpop.permute.xlu0 %1361
    %1363 = vrot.lane.b32.xlu0 %v603, 32
    %v1364 = vpop.permute.xlu0 %1363
    %1365 = vrot.lane.b32.xlu0 %v604, 32
    %v1366 = vpop.permute.xlu0 %1365
    %1367 = vrot.lane.b32.xlu0 %v605, 32
    %v1368 = vpop.permute.xlu0 %1367
    %v1370 = vsel %vm610, %v1354, 0
    %v1373 = vsel %vm610, %v1356, 0
    %v1376 = vsel %vm610, %v1358, 0
    %v1379 = vsel %vm610, %v1360, 0
    %v1382 = vsel %vm610, %v1362, 0
    %v1385 = vsel %vm610, %v1364, 0
    %v1388 = vsel %vm610, %v1366, 0
    %v1391 = vsel %vm610, %v1368, 0
    %1393 = vmatpush.bf16.xpose.msra.mxu0 0
    %1394 = vmatpush.bf16.xpose.msra.mxu0 0
    %1395 = vmatpush.bf16.xpose.msra.mxu0 0
    %1396 = vmatpush.bf16.xpose.msra.mxu0 0
    %1397 = vmatpush.bf16.xpose.msra.mxu0 %v1391
    %1398 = vmatpush.bf16.xpose.msra.mxu0 %v1388
    %1399 = vmatpush.bf16.xpose.msra.mxu0 %v1385
    %1400 = vmatpush.bf16.xpose.msra.mxu0 %v1382
    %1401 = vmatmul.bf16.gmra.mxu0 %v1370
    %v1402 = vpop.f32.mrf.mxu0
    %v1403 = vadd.f32 0.0, %v1402
    %v1404 = vpop.f32.mrf.mxu0
    %v1405 = vadd.f32 0.0, %v1404
    %1406 = vmatmul.bf16.gmra.mxu0 %v1373
    %v1407 = vpop.f32.mrf.mxu0
    %v1408 = vadd.f32 0.0, %v1407
    %v1409 = vpop.f32.mrf.mxu0
    %v1410 = vadd.f32 0.0, %v1409
    %1411 = vmatmul.bf16.gmra.mxu0 %v1376
    %v1412 = vpop.f32.mrf.mxu0
    %v1413 = vadd.f32 0.0, %v1412
    %v1414 = vpop.f32.mrf.mxu0
    %v1415 = vadd.f32 0.0, %v1414
    %1416 = vmatmul.bf16.gmra.mxu0 %v1379
    %v1417 = vpop.f32.mrf.mxu0
    %v1418 = vadd.f32 0.0, %v1417
    %v1419 = vpop.f32.mrf.mxu0
    %v1420 = vadd.f32 0.0, %v1419
    %1421 = vdwg.mxu0
    %v1422 = vsel %vm664, %v1403, -inf
    %1423 = vmax.xlane.f32.xlu0 %v1422
    %v1424 = vpop.xlane.xlu0 %1423
    %v1425 = vsel %vm664, %v1405, -inf
    %1426 = vmax.xlane.f32.xlu0 %v1425
    %v1427 = vpop.xlane.xlu0 %1426
    %v1428 = vsel %vm664, %v1408, -inf
    %1429 = vmax.xlane.f32.xlu0 %v1428
    %v1430 = vpop.xlane.xlu0 %1429
    %v1431 = vsel %vm664, %v1410, -inf
    %1432 = vmax.xlane.f32.xlu0 %v1431
    %v1433 = vpop.xlane.xlu0 %1432
    %v1434 = vsel %vm664, %v1413, -inf
    %1435 = vmax.xlane.f32.xlu0 %v1434
    %v1436 = vpop.xlane.xlu0 %1435
    %v1437 = vsel %vm664, %v1415, -inf
    %1438 = vmax.xlane.f32.xlu0 %v1437
    %v1439 = vpop.xlane.xlu0 %1438
    %v1440 = vsel %vm664, %v1418, -inf
    %1441 = vmax.xlane.f32.xlu0 %v1440
    %v1442 = vpop.xlane.xlu0 %1441
    %v1443 = vsel %vm664, %v1420, -inf
    %1444 = vmax.xlane.f32.xlu0 %v1443
    %v1445 = vpop.xlane.xlu0 %1444
    %v1446 = vsub.f32 %v1403, %v1424
    %v1447 = vsub.f32 %v1405, %v1427
    %v1448 = vsub.f32 %v1408, %v1430
    %v1449 = vsub.f32 %v1410, %v1433
    %v1450 = vsub.f32 %v1413, %v1436
    %v1451 = vsub.f32 %v1415, %v1439
    %v1452 = vsub.f32 %v1418, %v1442
    %v1453 = vsub.f32 %v1420, %v1445
    %v1454 = vmul.f32 %v1446, 1.442695
    %v1455 = vpow.pop %v1454
    %v1456 = vmul.f32 %v1447, 1.442695
    %v1457 = vpow.pop %v1456
    %v1458 = vmul.f32 %v1448, 1.442695
    %v1459 = vpow.pop %v1458
    %v1460 = vmul.f32 %v1449, 1.442695
    %v1461 = vpow.pop %v1460
    %v1462 = vmul.f32 %v1450, 1.442695
    %v1463 = vpow.pop %v1462
    %v1464 = vmul.f32 %v1451, 1.442695
    %v1465 = vpow.pop %v1464
    %v1466 = vmul.f32 %v1452, 1.442695
    %v1467 = vpow.pop %v1466
    %v1468 = vmul.f32 %v1453, 1.442695
    %v1469 = vpow.pop %v1468
    %v1470 = vsel %vm664, %v1455, 0.0
    %1471 = vadd.xlane.f32.xlu0 %v1470
    %v1472 = vpop.xlane.xlu0 %1471
    %v1473 = vsel %vm664, %v1457, 0.0
    %1474 = vadd.xlane.f32.xlu0 %v1473
    %v1475 = vpop.xlane.xlu0 %1474
    %v1476 = vsel %vm664, %v1459, 0.0
    %1477 = vadd.xlane.f32.xlu0 %v1476
    %v1478 = vpop.xlane.xlu0 %1477
    %v1479 = vsel %vm664, %v1461, 0.0
    %1480 = vadd.xlane.f32.xlu0 %v1479
    %v1481 = vpop.xlane.xlu0 %1480
    %v1482 = vsel %vm664, %v1463, 0.0
    %1483 = vadd.xlane.f32.xlu0 %v1482
    %v1484 = vpop.xlane.xlu0 %1483
    %v1485 = vsel %vm664, %v1465, 0.0
    %1486 = vadd.xlane.f32.xlu0 %v1485
    %v1487 = vpop.xlane.xlu0 %1486
    %v1488 = vsel %vm664, %v1467, 0.0
    %1489 = vadd.xlane.f32.xlu0 %v1488
    %v1490 = vpop.xlane.xlu0 %1489
    %v1491 = vsel %vm664, %v1469, 0.0
    %1492 = vadd.xlane.f32.xlu0 %v1491
    %v1493 = vpop.xlane.xlu0 %1492
    %v1494 = vrcp.pop %v1472
    %v1495 = vrcp.pop %v1475
    %v1496 = vrcp.pop %v1478
    %v1497 = vrcp.pop %v1481
    %v1498 = vrcp.pop %v1484
    %v1499 = vrcp.pop %v1487
    %v1500 = vrcp.pop %v1490
    %v1501 = vrcp.pop %v1493
    %v1502 = vmul.f32 %v1455, %v1494
    %v1503 = vmul.f32 %v1457, %v1495
    %v1504 = vmul.f32 %v1459, %v1496
    %v1505 = vmul.f32 %v1461, %v1497
    %v1506 = vmul.f32 %v1463, %v1498
    %v1507 = vmul.f32 %v1465, %v1499
    %v1508 = vmul.f32 %v1467, %v1500
    %v1509 = vmul.f32 %v1469, %v1501
    %v1510 = vpack.c.bf16 %v1503, %v1502
    %v1511 = vpack.c.bf16 %v1505, %v1504
    %v1512 = vpack.c.bf16 %v1507, %v1506
    %v1513 = vpack.c.bf16 %v1509, %v1508
    %1514 = vrot.lane.b32.xlu0 %v606, 32
    %v1515 = vpop.permute.xlu0 %1514
    %1516 = vrot.lane.b32.xlu0 %v607, 32
    %v1517 = vpop.permute.xlu0 %1516
    %1518 = vrot.lane.b32.xlu0 %v608, 32
    %v1519 = vpop.permute.xlu0 %1518
    %1520 = vrot.lane.b32.xlu0 %v609, 32
    %v1521 = vpop.permute.xlu0 %1520
    %v1527 = vsel %vm664, %v1510, 0
    %v1530 = vsel %vm664, %v1511, 0
    %v1533 = vsel %vm664, %v1512, 0
    %v1536 = vsel %vm664, %v1513, 0
    %1538 = vmatpush.bf16.msra.mxu0 0
    %1539 = vmatpush.bf16.msra.mxu0 0
    %1540 = vmatpush.bf16.msra.mxu0 0
    %1541 = vmatpush.bf16.msra.mxu0 0
    %1542 = vmatpush.bf16.msra.mxu0 %v1521
    %1543 = vmatpush.bf16.msra.mxu0 %v1519
    %1544 = vmatpush.bf16.msra.mxu0 %v1517
    %1545 = vmatpush.bf16.msra.mxu0 %v1515
    %1546 = vmatmul.bf16.gmra.mxu0 %v1527
    %v1547 = vpop.f32.mrf.mxu0
    %v1548 = vadd.f32 0.0, %v1547
    %v1549 = vpop.f32.mrf.mxu0
    %v1550 = vadd.f32 0.0, %v1549
    %1551 = vmatmul.bf16.gmra.mxu0 %v1530
    %v1552 = vpop.f32.mrf.mxu0
    %v1553 = vadd.f32 0.0, %v1552
    %v1554 = vpop.f32.mrf.mxu0
    %v1555 = vadd.f32 0.0, %v1554
    %1556 = vmatmul.bf16.gmra.mxu0 %v1533
    %v1557 = vpop.f32.mrf.mxu0
    %v1558 = vadd.f32 0.0, %v1557
    %v1559 = vpop.f32.mrf.mxu0
    %v1560 = vadd.f32 0.0, %v1559
    %1561 = vmatmul.bf16.gmra.mxu0 %v1536
    %v1562 = vpop.f32.mrf.mxu0
    %v1563 = vadd.f32 0.0, %v1562
    %v1564 = vpop.f32.mrf.mxu0
    %v1565 = vadd.f32 0.0, %v1564
    %1566 = vdwg.mxu0
    %v1567 = vpack.c.bf16 %v1548, %v1548
    %v1568 = vpack.c.bf16 %v1550, %v1550
    %v1569 = vpack.c.bf16 %v1553, %v1553
    %v1570 = vpack.c.bf16 %v1555, %v1555
    %v1571 = vpack.c.bf16 %v1558, %v1558
    %v1572 = vpack.c.bf16 %v1560, %v1560
    %v1573 = vpack.c.bf16 %v1563, %v1563
    %v1574 = vpack.c.bf16 %v1565, %v1565
    %1583 = vrot.lane.b32.xlu0 %v1567, 96
    %v1584 = vpop.permute.xlu0 %1583
    %1585 = vrot.lane.b32.xlu0 %v1568, 96
    %v1586 = vpop.permute.xlu0 %1585
    %1587 = vrot.lane.b32.xlu0 %v1569, 96
    %v1588 = vpop.permute.xlu0 %1587
    %1589 = vrot.lane.b32.xlu0 %v1570, 96
    %v1590 = vpop.permute.xlu0 %1589
    %1591 = vrot.lane.b32.xlu0 %v1571, 96
    %v1592 = vpop.permute.xlu0 %1591
    %1593 = vrot.lane.b32.xlu0 %v1572, 96
    %v1594 = vpop.permute.xlu0 %1593
    %1595 = vrot.lane.b32.xlu0 %v1573, 96
    %v1596 = vpop.permute.xlu0 %1595
    %1597 = vrot.lane.b32.xlu0 %v1574, 96
    %v1598 = vpop.permute.xlu0 %1597
    %vm1607 = vcmask 1044224
    %1608 = vst.msk [vmem:[#allocation2] sm:$0xf] %vm1607, %v1584
    %1609 = vst.msk [vmem:[#allocation2 + $0x4] sm:$0xf] %vm1607, %v1586
    %1610 = vst.msk [vmem:[#allocation2 + $0x8] sm:$0xf] %vm1607, %v1588
    %1611 = vst.msk [vmem:[#allocation2 + $0xc] sm:$0xf] %vm1607, %v1590
    %1612 = vst.msk [vmem:[#allocation2 + $0x10] sm:$0xf] %vm1607, %v1592
    %1613 = vst.msk [vmem:[#allocation2 + $0x14] sm:$0xf] %vm1607, %v1594
    %1614 = vst.msk [vmem:[#allocation2 + $0x18] sm:$0xf] %vm1607, %v1596
    %1615 = vst.msk [vmem:[#allocation2 + $0x1c] sm:$0xf] %vm1607, %v1598
    %v1616 = vpack.c.bf16 %v575, %v574
    %v1617 = vpack.c.bf16 %v577, %v576
    %v1618 = vpack.c.bf16 %v579, %v578
    %v1619 = vpack.c.bf16 %v581, %v580
    %v1620 = vpack.c.bf16 %v420, %v418
    %v1621 = vpack.c.bf16 %v425, %v423
    %v1622 = vpack.c.bf16 %v430, %v428
    %v1623 = vpack.c.bf16 %v435, %v433
    %v1624 = vpack.c.bf16 %v509, %v507
    %v1625 = vpack.c.bf16 %v514, %v512
    %v1626 = vpack.c.bf16 %v519, %v517
    %v1627 = vpack.c.bf16 %v524, %v522
    %v1629 = vsel %vm610, %v1616, 0
    %v1632 = vsel %vm610, %v1617, 0
    %v1635 = vsel %vm610, %v1618, 0
    %v1638 = vsel %vm610, %v1619, 0
    %v1641 = vsel %vm610, %v1620, 0
    %v1644 = vsel %vm610, %v1621, 0
    %v1647 = vsel %vm610, %v1622, 0
    %v1650 = vsel %vm610, %v1623, 0
    %1652 = vmatpush.bf16.xpose.msra.mxu0 0
    %1653 = vmatpush.bf16.xpose.msra.mxu0 0
    %1654 = vmatpush.bf16.xpose.msra.mxu0 0
    %1655 = vmatpush.bf16.xpose.msra.mxu0 0
    %1656 = vmatpush.bf16.xpose.msra.mxu0 %v1650
    %1657 = vmatpush.bf16.xpose.msra.mxu0 %v1647
    %1658 = vmatpush.bf16.xpose.msra.mxu0 %v1644
    %1659 = vmatpush.bf16.xpose.msra.mxu0 %v1641
    %1660 = vmatmul.bf16.gmra.mxu0 %v1629
    %v1661 = vpop.f32.mrf.mxu0
    %v1662 = vadd.f32 0.0, %v1661
    %v1663 = vpop.f32.mrf.mxu0
    %v1664 = vadd.f32 0.0, %v1663
    %1665 = vmatmul.bf16.gmra.mxu0 %v1632
    %v1666 = vpop.f32.mrf.mxu0
    %v1667 = vadd.f32 0.0, %v1666
    %v1668 = vpop.f32.mrf.mxu0
    %v1669 = vadd.f32 0.0, %v1668
    %1670 = vmatmul.bf16.gmra.mxu0 %v1635
    %v1671 = vpop.f32.mrf.mxu0
    %v1672 = vadd.f32 0.0, %v1671
    %v1673 = vpop.f32.mrf.mxu0
    %v1674 = vadd.f32 0.0, %v1673
    %1675 = vmatmul.bf16.gmra.mxu0 %v1638
    %v1676 = vpop.f32.mrf.mxu0
    %v1677 = vadd.f32 0.0, %v1676
    %v1678 = vpop.f32.mrf.mxu0
    %v1679 = vadd.f32 0.0, %v1678
    %1680 = vdwg.mxu0
    %v1681 = vsel %vm664, %v1662, -inf
    %1682 = vmax.xlane.f32.xlu0 %v1681
    %v1683 = vpop.xlane.xlu0 %1682
    %v1684 = vsel %vm664, %v1664, -inf
    %1685 = vmax.xlane.f32.xlu0 %v1684
    %v1686 = vpop.xlane.xlu0 %1685
    %v1687 = vsel %vm664, %v1667, -inf
    %1688 = vmax.xlane.f32.xlu0 %v1687
    %v1689 = vpop.xlane.xlu0 %1688
    %v1690 = vsel %vm664, %v1669, -inf
    %1691 = vmax.xlane.f32.xlu0 %v1690
    %v1692 = vpop.xlane.xlu0 %1691
    %v1693 = vsel %vm664, %v1672, -inf
    %1694 = vmax.xlane.f32.xlu0 %v1693
    %v1695 = vpop.xlane.xlu0 %1694
    %v1696 = vsel %vm664, %v1674, -inf
    %1697 = vmax.xlane.f32.xlu0 %v1696
    %v1698 = vpop.xlane.xlu0 %1697
    %v1699 = vsel %vm664, %v1677, -inf
    %1700 = vmax.xlane.f32.xlu0 %v1699
    %v1701 = vpop.xlane.xlu0 %1700
    %v1702 = vsel %vm664, %v1679, -inf
    %1703 = vmax.xlane.f32.xlu0 %v1702
    %v1704 = vpop.xlane.xlu0 %1703
    %v1705 = vsub.f32 %v1662, %v1683
    %v1706 = vsub.f32 %v1664, %v1686
    %v1707 = vsub.f32 %v1667, %v1689
    %v1708 = vsub.f32 %v1669, %v1692
    %v1709 = vsub.f32 %v1672, %v1695
    %v1710 = vsub.f32 %v1674, %v1698
    %v1711 = vsub.f32 %v1677, %v1701
    %v1712 = vsub.f32 %v1679, %v1704
    %v1713 = vmul.f32 %v1705, 1.442695
    %v1714 = vpow.pop %v1713
    %v1715 = vmul.f32 %v1706, 1.442695
    %v1716 = vpow.pop %v1715
    %v1717 = vmul.f32 %v1707, 1.442695
    %v1718 = vpow.pop %v1717
    %v1719 = vmul.f32 %v1708, 1.442695
    %v1720 = vpow.pop %v1719
    %v1721 = vmul.f32 %v1709, 1.442695
    %v1722 = vpow.pop %v1721
    %v1723 = vmul.f32 %v1710, 1.442695
    %v1724 = vpow.pop %v1723
    %v1725 = vmul.f32 %v1711, 1.442695
    %v1726 = vpow.pop %v1725
    %v1727 = vmul.f32 %v1712, 1.442695
    %v1728 = vpow.pop %v1727
    %v1729 = vsel %vm664, %v1714, 0.0
    %1730 = vadd.xlane.f32.xlu0 %v1729
    %v1731 = vpop.xlane.xlu0 %1730
    %v1732 = vsel %vm664, %v1716, 0.0
    %1733 = vadd.xlane.f32.xlu0 %v1732
    %v1734 = vpop.xlane.xlu0 %1733
    %v1735 = vsel %vm664, %v1718, 0.0
    %1736 = vadd.xlane.f32.xlu0 %v1735
    %v1737 = vpop.xlane.xlu0 %1736
    %v1738 = vsel %vm664, %v1720, 0.0
    %1739 = vadd.xlane.f32.xlu0 %v1738
    %v1740 = vpop.xlane.xlu0 %1739
    %v1741 = vsel %vm664, %v1722, 0.0
    %1742 = vadd.xlane.f32.xlu0 %v1741
    %v1743 = vpop.xlane.xlu0 %1742
    %v1744 = vsel %vm664, %v1724, 0.0
    %1745 = vadd.xlane.f32.xlu0 %v1744
    %v1746 = vpop.xlane.xlu0 %1745
    %v1747 = vsel %vm664, %v1726, 0.0
    %1748 = vadd.xlane.f32.xlu0 %v1747
    %v1749 = vpop.xlane.xlu0 %1748
    %v1750 = vsel %vm664, %v1728, 0.0
    %1751 = vadd.xlane.f32.xlu0 %v1750
    %v1752 = vpop.xlane.xlu0 %1751
    %v1753 = vrcp.pop %v1731
    %v1754 = vrcp.pop %v1734
    %v1755 = vrcp.pop %v1737
    %v1756 = vrcp.pop %v1740
    %v1757 = vrcp.pop %v1743
    %v1758 = vrcp.pop %v1746
    %v1759 = vrcp.pop %v1749
    %v1760 = vrcp.pop %v1752
    %v1761 = vmul.f32 %v1714, %v1753
    %v1762 = vmul.f32 %v1716, %v1754
    %v1763 = vmul.f32 %v1718, %v1755
    %v1764 = vmul.f32 %v1720, %v1756
    %v1765 = vmul.f32 %v1722, %v1757
    %v1766 = vmul.f32 %v1724, %v1758
    %v1767 = vmul.f32 %v1726, %v1759
    %v1768 = vmul.f32 %v1728, %v1760
    %v1769 = vpack.c.bf16 %v1762, %v1761
    %v1770 = vpack.c.bf16 %v1764, %v1763
    %v1771 = vpack.c.bf16 %v1766, %v1765
    %v1772 = vpack.c.bf16 %v1768, %v1767
    %v1774 = vsel %vm664, %v1769, 0
    %v1777 = vsel %vm664, %v1770, 0
    %v1780 = vsel %vm664, %v1771, 0
    %v1783 = vsel %vm664, %v1772, 0
    %1785 = vmatpush.bf16.msra.mxu0 0
    %1786 = vmatpush.bf16.msra.mxu0 0
    %1787 = vmatpush.bf16.msra.mxu0 0
    %1788 = vmatpush.bf16.msra.mxu0 0
    %1789 = vmatpush.bf16.msra.mxu0 %v1627
    %1790 = vmatpush.bf16.msra.mxu0 %v1626
    %1791 = vmatpush.bf16.msra.mxu0 %v1625
    %1792 = vmatpush.bf16.msra.mxu0 %v1624
    %1793 = vmatmul.bf16.gmra.mxu0 %v1774
    %v1794 = vpop.f32.mrf.mxu0
    %v1795 = vadd.f32 0.0, %v1794
    %v1796 = vpop.f32.mrf.mxu0
    %v1797 = vadd.f32 0.0, %v1796
    %1798 = vmatmul.bf16.gmra.mxu0 %v1777
    %v1799 = vpop.f32.mrf.mxu0
    %v1800 = vadd.f32 0.0, %v1799
    %v1801 = vpop.f32.mrf.mxu0
    %v1802 = vadd.f32 0.0, %v1801
    %1803 = vmatmul.bf16.gmra.mxu0 %v1780
    %v1804 = vpop.f32.mrf.mxu0
    %v1805 = vadd.f32 0.0, %v1804
    %v1806 = vpop.f32.mrf.mxu0
    %v1807 = vadd.f32 0.0, %v1806
    %1808 = vmatmul.bf16.gmra.mxu0 %v1783
    %v1809 = vpop.f32.mrf.mxu0
    %v1810 = vadd.f32 0.0, %v1809
    %v1811 = vpop.f32.mrf.mxu0
    %v1812 = vadd.f32 0.0, %v1811
    %1813 = vdwg.mxu0
    %v1814 = vpack.c.bf16 %v1795, %v1795
    %v1815 = vpack.c.bf16 %v1797, %v1797
    %v1816 = vpack.c.bf16 %v1800, %v1800
    %v1817 = vpack.c.bf16 %v1802, %v1802
    %v1818 = vpack.c.bf16 %v1805, %v1805
    %v1819 = vpack.c.bf16 %v1807, %v1807
    %v1820 = vpack.c.bf16 %v1810, %v1810
    %v1821 = vpack.c.bf16 %v1812, %v1812
    %1822 = vst.msk [vmem:[#allocation2 + $0x20] sm:$0xf] %vm806, %v1814
    %1823 = vst.msk [vmem:[#allocation2 + $0x24] sm:$0xf] %vm806, %v1815
    %1824 = vst.msk [vmem:[#allocation2 + $0x28] sm:$0xf] %vm806, %v1816
    %1825 = vst.msk [vmem:[#allocation2 + $0x2c] sm:$0xf] %vm806, %v1817
    %1826 = vst.msk [vmem:[#allocation2 + $0x30] sm:$0xf] %vm806, %v1818
    %1827 = vst.msk [vmem:[#allocation2 + $0x34] sm:$0xf] %vm806, %v1819
    %1828 = vst.msk [vmem:[#allocation2 + $0x38] sm:$0xf] %vm806, %v1820
    %1829 = vst.msk [vmem:[#allocation2 + $0x3c] sm:$0xf] %vm806, %v1821
    %1834 = vrot.lane.b32.xlu0 %v1616, 96
    %v1835 = vpop.permute.xlu0 %1834
    %1836 = vrot.lane.b32.xlu0 %v1617, 96
    %v1837 = vpop.permute.xlu0 %1836
    %1838 = vrot.lane.b32.xlu0 %v1618, 96
    %v1839 = vpop.permute.xlu0 %1838
    %1840 = vrot.lane.b32.xlu0 %v1619, 96
    %v1841 = vpop.permute.xlu0 %1840
    %1846 = vrot.lane.b32.xlu0 %v1620, 96
    %v1847 = vpop.permute.xlu0 %1846
    %1848 = vrot.lane.b32.xlu0 %v1621, 96
    %v1849 = vpop.permute.xlu0 %1848
    %1850 = vrot.lane.b32.xlu0 %v1622, 96
    %v1851 = vpop.permute.xlu0 %1850
    %1852 = vrot.lane.b32.xlu0 %v1623, 96
    %v1853 = vpop.permute.xlu0 %1852
    %v1855 = vsel %vm610, %v1835, 0
    %v1858 = vsel %vm610, %v1837, 0
    %v1861 = vsel %vm610, %v1839, 0
    %v1864 = vsel %vm610, %v1841, 0
    %v1867 = vsel %vm610, %v1847, 0
    %v1870 = vsel %vm610, %v1849, 0
    %v1873 = vsel %vm610, %v1851, 0
    %v1876 = vsel %vm610, %v1853, 0
    %1878 = vmatpush.bf16.xpose.msra.mxu0 0
    %1879 = vmatpush.bf16.xpose.msra.mxu0 0
    %1880 = vmatpush.bf16.xpose.msra.mxu0 0
    %1881 = vmatpush.bf16.xpose.msra.mxu0 0
    %1882 = vmatpush.bf16.xpose.msra.mxu0 %v1876
    %1883 = vmatpush.bf16.xpose.msra.mxu0 %v1873
    %1884 = vmatpush.bf16.xpose.msra.mxu0 %v1870
    %1885 = vmatpush.bf16.xpose.msra.mxu0 %v1867
    %1886 = vmatmul.bf16.gmra.mxu0 %v1855
    %v1887 = vpop.f32.mrf.mxu0
    %v1888 = vadd.f32 0.0, %v1887
    %v1889 = vpop.f32.mrf.mxu0
    %v1890 = vadd.f32 0.0, %v1889
    %1891 = vmatmul.bf16.gmra.mxu0 %v1858
    %v1892 = vpop.f32.mrf.mxu0
    %v1893 = vadd.f32 0.0, %v1892
    %v1894 = vpop.f32.mrf.mxu0
    %v1895 = vadd.f32 0.0, %v1894
    %1896 = vmatmul.bf16.gmra.mxu0 %v1861
    %v1897 = vpop.f32.mrf.mxu0
    %v1898 = vadd.f32 0.0, %v1897
    %v1899 = vpop.f32.mrf.mxu0
    %v1900 = vadd.f32 0.0, %v1899
    %1901 = vmatmul.bf16.gmra.mxu0 %v1864
    %v1902 = vpop.f32.mrf.mxu0
    %v1903 = vadd.f32 0.0, %v1902
    %v1904 = vpop.f32.mrf.mxu0
    %v1905 = vadd.f32 0.0, %v1904
    %1906 = vdwg.mxu0
    %v1907 = vsel %vm664, %v1888, -inf
    %1908 = vmax.xlane.f32.xlu0 %v1907
    %v1909 = vpop.xlane.xlu0 %1908
    %v1910 = vsel %vm664, %v1890, -inf
    %1911 = vmax.xlane.f32.xlu0 %v1910
    %v1912 = vpop.xlane.xlu0 %1911
    %v1913 = vsel %vm664, %v1893, -inf
    %1914 = vmax.xlane.f32.xlu0 %v1913
    %v1915 = vpop.xlane.xlu0 %1914
    %v1916 = vsel %vm664, %v1895, -inf
    %1917 = vmax.xlane.f32.xlu0 %v1916
    %v1918 = vpop.xlane.xlu0 %1917
    %v1919 = vsel %vm664, %v1898, -inf
    %1920 = vmax.xlane.f32.xlu0 %v1919
    %v1921 = vpop.xlane.xlu0 %1920
    %v1922 = vsel %vm664, %v1900, -inf
    %1923 = vmax.xlane.f32.xlu0 %v1922
    %v1924 = vpop.xlane.xlu0 %1923
    %v1925 = vsel %vm664, %v1903, -inf
    %1926 = vmax.xlane.f32.xlu0 %v1925
    %v1927 = vpop.xlane.xlu0 %1926
    %v1928 = vsel %vm664, %v1905, -inf
    %1929 = vmax.xlane.f32.xlu0 %v1928
    %v1930 = vpop.xlane.xlu0 %1929
    %v1931 = vsub.f32 %v1888, %v1909
    %v1932 = vsub.f32 %v1890, %v1912
    %v1933 = vsub.f32 %v1893, %v1915
    %v1934 = vsub.f32 %v1895, %v1918
    %v1935 = vsub.f32 %v1898, %v1921
    %v1936 = vsub.f32 %v1900, %v1924
    %v1937 = vsub.f32 %v1903, %v1927
    %v1938 = vsub.f32 %v1905, %v1930
    %v1939 = vmul.f32 %v1931, 1.442695
    %v1940 = vpow.pop %v1939
    %v1941 = vmul.f32 %v1932, 1.442695
    %v1942 = vpow.pop %v1941
    %v1943 = vmul.f32 %v1933, 1.442695
    %v1944 = vpow.pop %v1943
    %v1945 = vmul.f32 %v1934, 1.442695
    %v1946 = vpow.pop %v1945
    %v1947 = vmul.f32 %v1935, 1.442695
    %v1948 = vpow.pop %v1947
    %v1949 = vmul.f32 %v1936, 1.442695
    %v1950 = vpow.pop %v1949
    %v1951 = vmul.f32 %v1937, 1.442695
    %v1952 = vpow.pop %v1951
    %v1953 = vmul.f32 %v1938, 1.442695
    %v1954 = vpow.pop %v1953
    %v1955 = vsel %vm664, %v1940, 0.0
    %1956 = vadd.xlane.f32.xlu0 %v1955
    %v1957 = vpop.xlane.xlu0 %1956
    %v1958 = vsel %vm664, %v1942, 0.0
    %1959 = vadd.xlane.f32.xlu0 %v1958
    %v1960 = vpop.xlane.xlu0 %1959
    %v1961 = vsel %vm664, %v1944, 0.0
    %1962 = vadd.xlane.f32.xlu0 %v1961
    %v1963 = vpop.xlane.xlu0 %1962
    %v1964 = vsel %vm664, %v1946, 0.0
    %1965 = vadd.xlane.f32.xlu0 %v1964
    %v1966 = vpop.xlane.xlu0 %1965
    %v1967 = vsel %vm664, %v1948, 0.0
    %1968 = vadd.xlane.f32.xlu0 %v1967
    %v1969 = vpop.xlane.xlu0 %1968
    %v1970 = vsel %vm664, %v1950, 0.0
    %1971 = vadd.xlane.f32.xlu0 %v1970
    %v1972 = vpop.xlane.xlu0 %1971
    %v1973 = vsel %vm664, %v1952, 0.0
    %1974 = vadd.xlane.f32.xlu0 %v1973
    %v1975 = vpop.xlane.xlu0 %1974
    %v1976 = vsel %vm664, %v1954, 0.0
    %1977 = vadd.xlane.f32.xlu0 %v1976
    %v1978 = vpop.xlane.xlu0 %1977
    %v1979 = vrcp.pop %v1957
    %v1980 = vrcp.pop %v1960
    %v1981 = vrcp.pop %v1963
    %v1982 = vrcp.pop %v1966
    %v1983 = vrcp.pop %v1969
    %v1984 = vrcp.pop %v1972
    %v1985 = vrcp.pop %v1975
    %v1986 = vrcp.pop %v1978
    %v1987 = vmul.f32 %v1940, %v1979
    %v1988 = vmul.f32 %v1942, %v1980
    %v1989 = vmul.f32 %v1944, %v1981
    %v1990 = vmul.f32 %v1946, %v1982
    %v1991 = vmul.f32 %v1948, %v1983
    %v1992 = vmul.f32 %v1950, %v1984
    %v1993 = vmul.f32 %v1952, %v1985
    %v1994 = vmul.f32 %v1954, %v1986
    %v1995 = vpack.c.bf16 %v1988, %v1987
    %v1996 = vpack.c.bf16 %v1990, %v1989
    %v1997 = vpack.c.bf16 %v1992, %v1991
    %v1998 = vpack.c.bf16 %v1994, %v1993
    %2003 = vrot.lane.b32.xlu0 %v1624, 96
    %v2004 = vpop.permute.xlu0 %2003
    %2005 = vrot.lane.b32.xlu0 %v1625, 96
    %v2006 = vpop.permute.xlu0 %2005
    %2007 = vrot.lane.b32.xlu0 %v1626, 96
    %v2008 = vpop.permute.xlu0 %2007
    %2009 = vrot.lane.b32.xlu0 %v1627, 96
    %v2010 = vpop.permute.xlu0 %2009
    %v2016 = vsel %vm664, %v1995, 0
    %v2019 = vsel %vm664, %v1996, 0
    %v2022 = vsel %vm664, %v1997, 0
    %v2025 = vsel %vm664, %v1998, 0
    %2027 = vmatpush.bf16.msra.mxu0 0
    %2028 = vmatpush.bf16.msra.mxu0 0
    %2029 = vmatpush.bf16.msra.mxu0 0
    %2030 = vmatpush.bf16.msra.mxu0 0
    %2031 = vmatpush.bf16.msra.mxu0 %v2010
    %2032 = vmatpush.bf16.msra.mxu0 %v2008
    %2033 = vmatpush.bf16.msra.mxu0 %v2006
    %2034 = vmatpush.bf16.msra.mxu0 %v2004
    %2035 = vmatmul.bf16.gmra.mxu0 %v2016
    %v2036 = vpop.f32.mrf.mxu0
    %v2037 = vadd.f32 0.0, %v2036
    %v2038 = vpop.f32.mrf.mxu0
    %v2039 = vadd.f32 0.0, %v2038
    %2040 = vmatmul.bf16.gmra.mxu0 %v2019
    %v2041 = vpop.f32.mrf.mxu0
    %v2042 = vadd.f32 0.0, %v2041
    %v2043 = vpop.f32.mrf.mxu0
    %v2044 = vadd.f32 0.0, %v2043
    %2045 = vmatmul.bf16.gmra.mxu0 %v2022
    %v2046 = vpop.f32.mrf.mxu0
    %v2047 = vadd.f32 0.0, %v2046
    %v2048 = vpop.f32.mrf.mxu0
    %v2049 = vadd.f32 0.0, %v2048
    %2050 = vmatmul.bf16.gmra.mxu0 %v2025
    %v2051 = vpop.f32.mrf.mxu0
    %v2052 = vadd.f32 0.0, %v2051
    %v2053 = vpop.f32.mrf.mxu0
    %v2054 = vadd.f32 0.0, %v2053
    %2055 = vdwg.mxu0
    %v2056 = vpack.c.bf16 %v2037, %v2037
    %v2057 = vpack.c.bf16 %v2039, %v2039
    %v2058 = vpack.c.bf16 %v2042, %v2042
    %v2059 = vpack.c.bf16 %v2044, %v2044
    %v2060 = vpack.c.bf16 %v2047, %v2047
    %v2061 = vpack.c.bf16 %v2049, %v2049
    %v2062 = vpack.c.bf16 %v2052, %v2052
    %v2063 = vpack.c.bf16 %v2054, %v2054
    %2072 = vrot.lane.b32.xlu0 %v2056, 32
    %v2073 = vpop.permute.xlu0 %2072
    %2074 = vrot.lane.b32.xlu0 %v2057, 32
    %v2075 = vpop.permute.xlu0 %2074
    %2076 = vrot.lane.b32.xlu0 %v2058, 32
    %v2077 = vpop.permute.xlu0 %2076
    %2078 = vrot.lane.b32.xlu0 %v2059, 32
    %v2079 = vpop.permute.xlu0 %2078
    %2080 = vrot.lane.b32.xlu0 %v2060, 32
    %v2081 = vpop.permute.xlu0 %2080
    %2082 = vrot.lane.b32.xlu0 %v2061, 32
    %v2083 = vpop.permute.xlu0 %2082
    %2084 = vrot.lane.b32.xlu0 %v2062, 32
    %v2085 = vpop.permute.xlu0 %2084
    %2086 = vrot.lane.b32.xlu0 %v2063, 32
    %v2087 = vpop.permute.xlu0 %2086
    %2096 = vst.msk [vmem:[#allocation2 + $0x20] sm:$0xf] %vm1081, %v2073
    %2097 = vst.msk [vmem:[#allocation2 + $0x24] sm:$0xf] %vm1081, %v2075
    %2098 = vst.msk [vmem:[#allocation2 + $0x28] sm:$0xf] %vm1081, %v2077
    %2099 = vst.msk [vmem:[#allocation2 + $0x2c] sm:$0xf] %vm1081, %v2079
    %2100 = vst.msk [vmem:[#allocation2 + $0x30] sm:$0xf] %vm1081, %v2081
    %2101 = vst.msk [vmem:[#allocation2 + $0x34] sm:$0xf] %vm1081, %v2083
    %2102 = vst.msk [vmem:[#allocation2 + $0x38] sm:$0xf] %vm1081, %v2085
    %2103 = vst.msk [vmem:[#allocation2 + $0x3c] sm:$0xf] %vm1081, %v2087
    %2104 = vrot.lane.b32.xlu0 %v1616, 64
    %v2105 = vpop.permute.xlu0 %2104
    %2106 = vrot.lane.b32.xlu0 %v1617, 64
    %v2107 = vpop.permute.xlu0 %2106
    %2108 = vrot.lane.b32.xlu0 %v1618, 64
    %v2109 = vpop.permute.xlu0 %2108
    %2110 = vrot.lane.b32.xlu0 %v1619, 64
    %v2111 = vpop.permute.xlu0 %2110
    %2112 = vrot.lane.b32.xlu0 %v1620, 64
    %v2113 = vpop.permute.xlu0 %2112
    %2114 = vrot.lane.b32.xlu0 %v1621, 64
    %v2115 = vpop.permute.xlu0 %2114
    %2116 = vrot.lane.b32.xlu0 %v1622, 64
    %v2117 = vpop.permute.xlu0 %2116
    %2118 = vrot.lane.b32.xlu0 %v1623, 64
    %v2119 = vpop.permute.xlu0 %2118
    %v2121 = vsel %vm610, %v2105, 0
    %v2124 = vsel %vm610, %v2107, 0
    %v2127 = vsel %vm610, %v2109, 0
    %v2130 = vsel %vm610, %v2111, 0
    %v2133 = vsel %vm610, %v2113, 0
    %v2136 = vsel %vm610, %v2115, 0
    %v2139 = vsel %vm610, %v2117, 0
    %v2142 = vsel %vm610, %v2119, 0
    %2144 = vmatpush.bf16.xpose.msra.mxu0 0
    %2145 = vmatpush.bf16.xpose.msra.mxu0 0
    %2146 = vmatpush.bf16.xpose.msra.mxu0 0
    %2147 = vmatpush.bf16.xpose.msra.mxu0 0
    %2148 = vmatpush.bf16.xpose.msra.mxu0 %v2142
    %2149 = vmatpush.bf16.xpose.msra.mxu0 %v2139
    %2150 = vmatpush.bf16.xpose.msra.mxu0 %v2136
    %2151 = vmatpush.bf16.xpose.msra.mxu0 %v2133
    %2152 = vmatmul.bf16.gmra.mxu0 %v2121
    %v2153 = vpop.f32.mrf.mxu0
    %v2154 = vadd.f32 0.0, %v2153
    %v2155 = vpop.f32.mrf.mxu0
    %v2156 = vadd.f32 0.0, %v2155
    %2157 = vmatmul.bf16.gmra.mxu0 %v2124
    %v2158 = vpop.f32.mrf.mxu0
    %v2159 = vadd.f32 0.0, %v2158
    %v2160 = vpop.f32.mrf.mxu0
    %v2161 = vadd.f32 0.0, %v2160
    %2162 = vmatmul.bf16.gmra.mxu0 %v2127
    %v2163 = vpop.f32.mrf.mxu0
    %v2164 = vadd.f32 0.0, %v2163
    %v2165 = vpop.f32.mrf.mxu0
    %v2166 = vadd.f32 0.0, %v2165
    %2167 = vmatmul.bf16.gmra.mxu0 %v2130
    %v2168 = vpop.f32.mrf.mxu0
    %v2169 = vadd.f32 0.0, %v2168
    %v2170 = vpop.f32.mrf.mxu0
    %v2171 = vadd.f32 0.0, %v2170
    %2172 = vdwg.mxu0
    %v2173 = vsel %vm664, %v2154, -inf
    %2174 = vmax.xlane.f32.xlu0 %v2173
    %v2175 = vpop.xlane.xlu0 %2174
    %v2176 = vsel %vm664, %v2156, -inf
    %2177 = vmax.xlane.f32.xlu0 %v2176
    %v2178 = vpop.xlane.xlu0 %2177
    %v2179 = vsel %vm664, %v2159, -inf
    %2180 = vmax.xlane.f32.xlu0 %v2179
    %v2181 = vpop.xlane.xlu0 %2180
    %v2182 = vsel %vm664, %v2161, -inf
    %2183 = vmax.xlane.f32.xlu0 %v2182
    %v2184 = vpop.xlane.xlu0 %2183
    %v2185 = vsel %vm664, %v2164, -inf
    %2186 = vmax.xlane.f32.xlu0 %v2185
    %v2187 = vpop.xlane.xlu0 %2186
    %v2188 = vsel %vm664, %v2166, -inf
    %2189 = vmax.xlane.f32.xlu0 %v2188
    %v2190 = vpop.xlane.xlu0 %2189
    %v2191 = vsel %vm664, %v2169, -inf
    %2192 = vmax.xlane.f32.xlu0 %v2191
    %v2193 = vpop.xlane.xlu0 %2192
    %v2194 = vsel %vm664, %v2171, -inf
    %2195 = vmax.xlane.f32.xlu0 %v2194
    %v2196 = vpop.xlane.xlu0 %2195
    %v2197 = vsub.f32 %v2154, %v2175
    %v2198 = vsub.f32 %v2156, %v2178
    %v2199 = vsub.f32 %v2159, %v2181
    %v2200 = vsub.f32 %v2161, %v2184
    %v2201 = vsub.f32 %v2164, %v2187
    %v2202 = vsub.f32 %v2166, %v2190
    %v2203 = vsub.f32 %v2169, %v2193
    %v2204 = vsub.f32 %v2171, %v2196
    %v2205 = vmul.f32 %v2197, 1.442695
    %v2206 = vpow.pop %v2205
    %v2207 = vmul.f32 %v2198, 1.442695
    %v2208 = vpow.pop %v2207
    %v2209 = vmul.f32 %v2199, 1.442695
    %v2210 = vpow.pop %v2209
    %v2211 = vmul.f32 %v2200, 1.442695
    %v2212 = vpow.pop %v2211
    %v2213 = vmul.f32 %v2201, 1.442695
    %v2214 = vpow.pop %v2213
    %v2215 = vmul.f32 %v2202, 1.442695
    %v2216 = vpow.pop %v2215
    %v2217 = vmul.f32 %v2203, 1.442695
    %v2218 = vpow.pop %v2217
    %v2219 = vmul.f32 %v2204, 1.442695
    %v2220 = vpow.pop %v2219
    %v2221 = vsel %vm664, %v2206, 0.0
    %2222 = vadd.xlane.f32.xlu0 %v2221
    %v2223 = vpop.xlane.xlu0 %2222
    %v2224 = vsel %vm664, %v2208, 0.0
    %2225 = vadd.xlane.f32.xlu0 %v2224
    %v2226 = vpop.xlane.xlu0 %2225
    %v2227 = vsel %vm664, %v2210, 0.0
    %2228 = vadd.xlane.f32.xlu0 %v2227
    %v2229 = vpop.xlane.xlu0 %2228
    %v2230 = vsel %vm664, %v2212, 0.0
    %2231 = vadd.xlane.f32.xlu0 %v2230
    %v2232 = vpop.xlane.xlu0 %2231
    %v2233 = vsel %vm664, %v2214, 0.0
    %2234 = vadd.xlane.f32.xlu0 %v2233
    %v2235 = vpop.xlane.xlu0 %2234
    %v2236 = vsel %vm664, %v2216, 0.0
    %2237 = vadd.xlane.f32.xlu0 %v2236
    %v2238 = vpop.xlane.xlu0 %2237
    %v2239 = vsel %vm664, %v2218, 0.0
    %2240 = vadd.xlane.f32.xlu0 %v2239
    %v2241 = vpop.xlane.xlu0 %2240
    %v2242 = vsel %vm664, %v2220, 0.0
    %2243 = vadd.xlane.f32.xlu0 %v2242
    %v2244 = vpop.xlane.xlu0 %2243
    %v2245 = vrcp.pop %v2223
    %v2246 = vrcp.pop %v2226
    %v2247 = vrcp.pop %v2229
    %v2248 = vrcp.pop %v2232
    %v2249 = vrcp.pop %v2235
    %v2250 = vrcp.pop %v2238
    %v2251 = vrcp.pop %v2241
    %v2252 = vrcp.pop %v2244
    %v2253 = vmul.f32 %v2206, %v2245
    %v2254 = vmul.f32 %v2208, %v2246
    %v2255 = vmul.f32 %v2210, %v2247
    %v2256 = vmul.f32 %v2212, %v2248
    %v2257 = vmul.f32 %v2214, %v2249
    %v2258 = vmul.f32 %v2216, %v2250
    %v2259 = vmul.f32 %v2218, %v2251
    %v2260 = vmul.f32 %v2220, %v2252
    %v2261 = vpack.c.bf16 %v2254, %v2253
    %v2262 = vpack.c.bf16 %v2256, %v2255
    %v2263 = vpack.c.bf16 %v2258, %v2257
    %v2264 = vpack.c.bf16 %v2260, %v2259
    %2265 = vrot.lane.b32.xlu0 %v1624, 64
    %v2266 = vpop.permute.xlu0 %2265
    %2267 = vrot.lane.b32.xlu0 %v1625, 64
    %v2268 = vpop.permute.xlu0 %2267
    %2269 = vrot.lane.b32.xlu0 %v1626, 64
    %v2270 = vpop.permute.xlu0 %2269
    %2271 = vrot.lane.b32.xlu0 %v1627, 64
    %v2272 = vpop.permute.xlu0 %2271
    %v2278 = vsel %vm664, %v2261, 0
    %v2281 = vsel %vm664, %v2262, 0
    %v2284 = vsel %vm664, %v2263, 0
    %v2287 = vsel %vm664, %v2264, 0
    %2289 = vmatpush.bf16.msra.mxu0 0
    %2290 = vmatpush.bf16.msra.mxu0 0
    %2291 = vmatpush.bf16.msra.mxu0 0
    %2292 = vmatpush.bf16.msra.mxu0 0
    %2293 = vmatpush.bf16.msra.mxu0 %v2272
    %2294 = vmatpush.bf16.msra.mxu0 %v2270
    %2295 = vmatpush.bf16.msra.mxu0 %v2268
    %2296 = vmatpush.bf16.msra.mxu0 %v2266
    %2297 = vmatmul.bf16.gmra.mxu0 %v2278
    %v2298 = vpop.f32.mrf.mxu0
    %v2299 = vadd.f32 0.0, %v2298
    %v2300 = vpop.f32.mrf.mxu0
    %v2301 = vadd.f32 0.0, %v2300
    %2302 = vmatmul.bf16.gmra.mxu0 %v2281
    %v2303 = vpop.f32.mrf.mxu0
    %v2304 = vadd.f32 0.0, %v2303
    %v2305 = vpop.f32.mrf.mxu0
    %v2306 = vadd.f32 0.0, %v2305
    %2307 = vmatmul.bf16.gmra.mxu0 %v2284
    %v2308 = vpop.f32.mrf.mxu0
    %v2309 = vadd.f32 0.0, %v2308
    %v2310 = vpop.f32.mrf.mxu0
    %v2311 = vadd.f32 0.0, %v2310
    %2312 = vmatmul.bf16.gmra.mxu0 %v2287
    %v2313 = vpop.f32.mrf.mxu0
    %v2314 = vadd.f32 0.0, %v2313
    %v2315 = vpop.f32.mrf.mxu0
    %v2316 = vadd.f32 0.0, %v2315
    %2317 = vdwg.mxu0
    %v2318 = vpack.c.bf16 %v2299, %v2299
    %v2319 = vpack.c.bf16 %v2301, %v2301
    %v2320 = vpack.c.bf16 %v2304, %v2304
    %v2321 = vpack.c.bf16 %v2306, %v2306
    %v2322 = vpack.c.bf16 %v2309, %v2309
    %v2323 = vpack.c.bf16 %v2311, %v2311
    %v2324 = vpack.c.bf16 %v2314, %v2314
    %v2325 = vpack.c.bf16 %v2316, %v2316
    %2334 = vrot.lane.b32.xlu0 %v2318, 64
    %v2335 = vpop.permute.xlu0 %2334
    %2336 = vrot.lane.b32.xlu0 %v2319, 64
    %v2337 = vpop.permute.xlu0 %2336
    %2338 = vrot.lane.b32.xlu0 %v2320, 64
    %v2339 = vpop.permute.xlu0 %2338
    %2340 = vrot.lane.b32.xlu0 %v2321, 64
    %v2341 = vpop.permute.xlu0 %2340
    %2342 = vrot.lane.b32.xlu0 %v2322, 64
    %v2343 = vpop.permute.xlu0 %2342
    %2344 = vrot.lane.b32.xlu0 %v2323, 64
    %v2345 = vpop.permute.xlu0 %2344
    %2346 = vrot.lane.b32.xlu0 %v2324, 64
    %v2347 = vpop.permute.xlu0 %2346
    %2348 = vrot.lane.b32.xlu0 %v2325, 64
    %v2349 = vpop.permute.xlu0 %2348
    %2358 = vst.msk [vmem:[#allocation2 + $0x20] sm:$0xf] %vm1344, %v2335
    %2359 = vst.msk [vmem:[#allocation2 + $0x24] sm:$0xf] %vm1344, %v2337
    %2360 = vst.msk [vmem:[#allocation2 + $0x28] sm:$0xf] %vm1344, %v2339
    %2361 = vst.msk [vmem:[#allocation2 + $0x2c] sm:$0xf] %vm1344, %v2341
    %2362 = vst.msk [vmem:[#allocation2 + $0x30] sm:$0xf] %vm1344, %v2343
    %2363 = vst.msk [vmem:[#allocation2 + $0x34] sm:$0xf] %vm1344, %v2345
    %2364 = vst.msk [vmem:[#allocation2 + $0x38] sm:$0xf] %vm1344, %v2347
    %2365 = vst.msk [vmem:[#allocation2 + $0x3c] sm:$0xf] %vm1344, %v2349
    %2366 = vrot.lane.b32.xlu0 %v1616, 32
    %v2367 = vpop.permute.xlu0 %2366
    %2368 = vrot.lane.b32.xlu0 %v1617, 32
    %v2369 = vpop.permute.xlu0 %2368
    %2370 = vrot.lane.b32.xlu0 %v1618, 32
    %v2371 = vpop.permute.xlu0 %2370
    %2372 = vrot.lane.b32.xlu0 %v1619, 32
    %v2373 = vpop.permute.xlu0 %2372
    %2374 = vrot.lane.b32.xlu0 %v1620, 32
    %v2375 = vpop.permute.xlu0 %2374
    %2376 = vrot.lane.b32.xlu0 %v1621, 32
    %v2377 = vpop.permute.xlu0 %2376
    %2378 = vrot.lane.b32.xlu0 %v1622, 32
    %v2379 = vpop.permute.xlu0 %2378
    %2380 = vrot.lane.b32.xlu0 %v1623, 32
    %v2381 = vpop.permute.xlu0 %2380
    %v2383 = vsel %vm610, %v2367, 0
    %v2386 = vsel %vm610, %v2369, 0
    %v2389 = vsel %vm610, %v2371, 0
    %v2392 = vsel %vm610, %v2373, 0
    %v2395 = vsel %vm610, %v2375, 0
    %v2398 = vsel %vm610, %v2377, 0
    %v2401 = vsel %vm610, %v2379, 0
    %v2404 = vsel %vm610, %v2381, 0
    %2406 = vmatpush.bf16.xpose.msra.mxu0 0
    %2407 = vmatpush.bf16.xpose.msra.mxu0 0
    %2408 = vmatpush.bf16.xpose.msra.mxu0 0
    %2409 = vmatpush.bf16.xpose.msra.mxu0 0
    %2410 = vmatpush.bf16.xpose.msra.mxu0 %v2404
    %2411 = vmatpush.bf16.xpose.msra.mxu0 %v2401
    %2412 = vmatpush.bf16.xpose.msra.mxu0 %v2398
    %2413 = vmatpush.bf16.xpose.msra.mxu0 %v2395
    %2414 = vmatmul.bf16.gmra.mxu0 %v2383
    %v2415 = vpop.f32.mrf.mxu0
    %v2416 = vadd.f32 0.0, %v2415
    %v2417 = vpop.f32.mrf.mxu0
    %v2418 = vadd.f32 0.0, %v2417
    %2419 = vmatmul.bf16.gmra.mxu0 %v2386
    %v2420 = vpop.f32.mrf.mxu0
    %v2421 = vadd.f32 0.0, %v2420
    %v2422 = vpop.f32.mrf.mxu0
    %v2423 = vadd.f32 0.0, %v2422
    %2424 = vmatmul.bf16.gmra.mxu0 %v2389
    %v2425 = vpop.f32.mrf.mxu0
    %v2426 = vadd.f32 0.0, %v2425
    %v2427 = vpop.f32.mrf.mxu0
    %v2428 = vadd.f32 0.0, %v2427
    %2429 = vmatmul.bf16.gmra.mxu0 %v2392
    %v2430 = vpop.f32.mrf.mxu0
    %v2431 = vadd.f32 0.0, %v2430
    %v2432 = vpop.f32.mrf.mxu0
    %v2433 = vadd.f32 0.0, %v2432
    %2434 = vdwg.mxu0
    %v2435 = vsel %vm664, %v2416, -inf
    %2436 = vmax.xlane.f32.xlu0 %v2435
    %v2437 = vpop.xlane.xlu0 %2436
    %v2438 = vsel %vm664, %v2418, -inf
    %2439 = vmax.xlane.f32.xlu0 %v2438
    %v2440 = vpop.xlane.xlu0 %2439
    %v2441 = vsel %vm664, %v2421, -inf
    %2442 = vmax.xlane.f32.xlu0 %v2441
    %v2443 = vpop.xlane.xlu0 %2442
    %v2444 = vsel %vm664, %v2423, -inf
    %2445 = vmax.xlane.f32.xlu0 %v2444
    %v2446 = vpop.xlane.xlu0 %2445
    %v2447 = vsel %vm664, %v2426, -inf
    %2448 = vmax.xlane.f32.xlu0 %v2447
    %v2449 = vpop.xlane.xlu0 %2448
    %v2450 = vsel %vm664, %v2428, -inf
    %2451 = vmax.xlane.f32.xlu0 %v2450
    %v2452 = vpop.xlane.xlu0 %2451
    %v2453 = vsel %vm664, %v2431, -inf
    %2454 = vmax.xlane.f32.xlu0 %v2453
    %v2455 = vpop.xlane.xlu0 %2454
    %v2456 = vsel %vm664, %v2433, -inf
    %2457 = vmax.xlane.f32.xlu0 %v2456
    %v2458 = vpop.xlane.xlu0 %2457
    %v2459 = vsub.f32 %v2416, %v2437
    %v2460 = vsub.f32 %v2418, %v2440
    %v2461 = vsub.f32 %v2421, %v2443
    %v2462 = vsub.f32 %v2423, %v2446
    %v2463 = vsub.f32 %v2426, %v2449
    %v2464 = vsub.f32 %v2428, %v2452
    %v2465 = vsub.f32 %v2431, %v2455
    %v2466 = vsub.f32 %v2433, %v2458
    %v2467 = vmul.f32 %v2459, 1.442695
    %v2468 = vpow.pop %v2467
    %v2469 = vmul.f32 %v2460, 1.442695
    %v2470 = vpow.pop %v2469
    %v2471 = vmul.f32 %v2461, 1.442695
    %v2472 = vpow.pop %v2471
    %v2473 = vmul.f32 %v2462, 1.442695
    %v2474 = vpow.pop %v2473
    %v2475 = vmul.f32 %v2463, 1.442695
    %v2476 = vpow.pop %v2475
    %v2477 = vmul.f32 %v2464, 1.442695
    %v2478 = vpow.pop %v2477
    %v2479 = vmul.f32 %v2465, 1.442695
    %v2480 = vpow.pop %v2479
    %v2481 = vmul.f32 %v2466, 1.442695
    %v2482 = vpow.pop %v2481
    %v2483 = vsel %vm664, %v2468, 0.0
    %2484 = vadd.xlane.f32.xlu0 %v2483
    %v2485 = vpop.xlane.xlu0 %2484
    %v2486 = vsel %vm664, %v2470, 0.0
    %2487 = vadd.xlane.f32.xlu0 %v2486
    %v2488 = vpop.xlane.xlu0 %2487
    %v2489 = vsel %vm664, %v2472, 0.0
    %2490 = vadd.xlane.f32.xlu0 %v2489
    %v2491 = vpop.xlane.xlu0 %2490
    %v2492 = vsel %vm664, %v2474, 0.0
    %2493 = vadd.xlane.f32.xlu0 %v2492
    %v2494 = vpop.xlane.xlu0 %2493
    %v2495 = vsel %vm664, %v2476, 0.0
    %2496 = vadd.xlane.f32.xlu0 %v2495
    %v2497 = vpop.xlane.xlu0 %2496
    %v2498 = vsel %vm664, %v2478, 0.0
    %2499 = vadd.xlane.f32.xlu0 %v2498
    %v2500 = vpop.xlane.xlu0 %2499
    %v2501 = vsel %vm664, %v2480, 0.0
    %2502 = vadd.xlane.f32.xlu0 %v2501
    %v2503 = vpop.xlane.xlu0 %2502
    %v2504 = vsel %vm664, %v2482, 0.0
    %2505 = vadd.xlane.f32.xlu0 %v2504
    %v2506 = vpop.xlane.xlu0 %2505
    %v2507 = vrcp.pop %v2485
    %v2508 = vrcp.pop %v2488
    %v2509 = vrcp.pop %v2491
    %v2510 = vrcp.pop %v2494
    %v2511 = vrcp.pop %v2497
    %v2512 = vrcp.pop %v2500
    %v2513 = vrcp.pop %v2503
    %v2514 = vrcp.pop %v2506
    %v2515 = vmul.f32 %v2468, %v2507
    %v2516 = vmul.f32 %v2470, %v2508
    %v2517 = vmul.f32 %v2472, %v2509
    %v2518 = vmul.f32 %v2474, %v2510
    %v2519 = vmul.f32 %v2476, %v2511
    %v2520 = vmul.f32 %v2478, %v2512
    %v2521 = vmul.f32 %v2480, %v2513
    %v2522 = vmul.f32 %v2482, %v2514
    %v2523 = vpack.c.bf16 %v2516, %v2515
    %v2524 = vpack.c.bf16 %v2518, %v2517
    %v2525 = vpack.c.bf16 %v2520, %v2519
    %v2526 = vpack.c.bf16 %v2522, %v2521
    %2527 = vrot.lane.b32.xlu0 %v1624, 32
    %v2528 = vpop.permute.xlu0 %2527
    %2529 = vrot.lane.b32.xlu0 %v1625, 32
    %v2530 = vpop.permute.xlu0 %2529
    %2531 = vrot.lane.b32.xlu0 %v1626, 32
    %v2532 = vpop.permute.xlu0 %2531
    %2533 = vrot.lane.b32.xlu0 %v1627, 32
    %v2534 = vpop.permute.xlu0 %2533
    %v2540 = vsel %vm664, %v2523, 0
    %v2543 = vsel %vm664, %v2524, 0
    %v2546 = vsel %vm664, %v2525, 0
    %v2549 = vsel %vm664, %v2526, 0
    %2551 = vmatpush.bf16.msra.mxu0 0
    %2552 = vmatpush.bf16.msra.mxu0 0
    %2553 = vmatpush.bf16.msra.mxu0 0
    %2554 = vmatpush.bf16.msra.mxu0 0
    %2555 = vmatpush.bf16.msra.mxu0 %v2534
    %2556 = vmatpush.bf16.msra.mxu0 %v2532
    %2557 = vmatpush.bf16.msra.mxu0 %v2530
    %2558 = vmatpush.bf16.msra.mxu0 %v2528
    %2559 = vmatmul.bf16.gmra.mxu0 %v2540
    %v2560 = vpop.f32.mrf.mxu0
    %v2561 = vadd.f32 0.0, %v2560
    %v2562 = vpop.f32.mrf.mxu0
    %v2563 = vadd.f32 0.0, %v2562
    %2564 = vmatmul.bf16.gmra.mxu0 %v2543
    %v2565 = vpop.f32.mrf.mxu0
    %v2566 = vadd.f32 0.0, %v2565
    %v2567 = vpop.f32.mrf.mxu0
    %v2568 = vadd.f32 0.0, %v2567
    %2569 = vmatmul.bf16.gmra.mxu0 %v2546
    %v2570 = vpop.f32.mrf.mxu0
    %v2571 = vadd.f32 0.0, %v2570
    %v2572 = vpop.f32.mrf.mxu0
    %v2573 = vadd.f32 0.0, %v2572
    %2574 = vmatmul.bf16.gmra.mxu0 %v2549
    %v2575 = vpop.f32.mrf.mxu0
    %v2576 = vadd.f32 0.0, %v2575
    %v2577 = vpop.f32.mrf.mxu0
    %v2578 = vadd.f32 0.0, %v2577
    %2579 = vdwg.mxu0
    %v2580 = vpack.c.bf16 %v2561, %v2561
    %v2581 = vpack.c.bf16 %v2563, %v2563
    %v2582 = vpack.c.bf16 %v2566, %v2566
    %v2583 = vpack.c.bf16 %v2568, %v2568
    %v2584 = vpack.c.bf16 %v2571, %v2571
    %v2585 = vpack.c.bf16 %v2573, %v2573
    %v2586 = vpack.c.bf16 %v2576, %v2576
    %v2587 = vpack.c.bf16 %v2578, %v2578
    %2596 = vrot.lane.b32.xlu0 %v2580, 96
    %v2597 = vpop.permute.xlu0 %2596
    %2598 = vrot.lane.b32.xlu0 %v2581, 96
    %v2599 = vpop.permute.xlu0 %2598
    %2600 = vrot.lane.b32.xlu0 %v2582, 96
    %v2601 = vpop.permute.xlu0 %2600
    %2602 = vrot.lane.b32.xlu0 %v2583, 96
    %v2603 = vpop.permute.xlu0 %2602
    %2604 = vrot.lane.b32.xlu0 %v2584, 96
    %v2605 = vpop.permute.xlu0 %2604
    %2606 = vrot.lane.b32.xlu0 %v2585, 96
    %v2607 = vpop.permute.xlu0 %2606
    %2608 = vrot.lane.b32.xlu0 %v2586, 96
    %v2609 = vpop.permute.xlu0 %2608
    %2610 = vrot.lane.b32.xlu0 %v2587, 96
    %v2611 = vpop.permute.xlu0 %2610
    %2620 = vst.msk [vmem:[#allocation2 + $0x20] sm:$0xf] %vm1607, %v2597
    %2621 = vst.msk [vmem:[#allocation2 + $0x24] sm:$0xf] %vm1607, %v2599
    %2622 = vst.msk [vmem:[#allocation2 + $0x28] sm:$0xf] %vm1607, %v2601
    %2623 = vst.msk [vmem:[#allocation2 + $0x2c] sm:$0xf] %vm1607, %v2603
    %2624 = vst.msk [vmem:[#allocation2 + $0x30] sm:$0xf] %vm1607, %v2605
    %2625 = vst.msk [vmem:[#allocation2 + $0x34] sm:$0xf] %vm1607, %v2607
    %2626 = vst.msk [vmem:[#allocation2 + $0x38] sm:$0xf] %vm1607, %v2609
    %2627 = vst.msk [vmem:[#allocation2 + $0x3c] sm:$0xf] %vm1607, %v2611
    %v2628 = vpack.c.bf16 %v583, %v582
    %v2629 = vpack.c.bf16 %v585, %v584
    %v2630 = vpack.c.bf16 %v587, %v586
    %v2631 = vpack.c.bf16 %v589, %v588
    %v2632 = vpack.c.bf16 %v440, %v438
    %v2633 = vpack.c.bf16 %v445, %v443
    %v2634 = vpack.c.bf16 %v450, %v448
    %v2635 = vpack.c.bf16 %v455, %v453
    %v2636 = vpack.c.bf16 %v529, %v527
    %v2637 = vpack.c.bf16 %v534, %v532
    %v2638 = vpack.c.bf16 %v539, %v537
    %v2639 = vpack.c.bf16 %v544, %v542
    %v2641 = vsel %vm610, %v2628, 0
    %v2644 = vsel %vm610, %v2629, 0
    %v2647 = vsel %vm610, %v2630, 0
    %v2650 = vsel %vm610, %v2631, 0
    %v2653 = vsel %vm610, %v2632, 0
    %v2656 = vsel %vm610, %v2633, 0
    %v2659 = vsel %vm610, %v2634, 0
    %v2662 = vsel %vm610, %v2635, 0
    %2664 = vmatpush.bf16.xpose.msra.mxu0 0
    %2665 = vmatpush.bf16.xpose.msra.mxu0 0
    %2666 = vmatpush.bf16.xpose.msra.mxu0 0
    %2667 = vmatpush.bf16.xpose.msra.mxu0 0
    %2668 = vmatpush.bf16.xpose.msra.mxu0 %v2662
    %2669 = vmatpush.bf16.xpose.msra.mxu0 %v2659
    %2670 = vmatpush.bf16.xpose.msra.mxu0 %v2656
    %2671 = vmatpush.bf16.xpose.msra.mxu0 %v2653
    %2672 = vmatmul.bf16.gmra.mxu0 %v2641
    %v2673 = vpop.f32.mrf.mxu0
    %v2674 = vadd.f32 0.0, %v2673
    %v2675 = vpop.f32.mrf.mxu0
    %v2676 = vadd.f32 0.0, %v2675
    %2677 = vmatmul.bf16.gmra.mxu0 %v2644
    %v2678 = vpop.f32.mrf.mxu0
    %v2679 = vadd.f32 0.0, %v2678
    %v2680 = vpop.f32.mrf.mxu0
    %v2681 = vadd.f32 0.0, %v2680
    %2682 = vmatmul.bf16.gmra.mxu0 %v2647
    %v2683 = vpop.f32.mrf.mxu0
    %v2684 = vadd.f32 0.0, %v2683
    %v2685 = vpop.f32.mrf.mxu0
    %v2686 = vadd.f32 0.0, %v2685
    %2687 = vmatmul.bf16.gmra.mxu0 %v2650
    %v2688 = vpop.f32.mrf.mxu0
    %v2689 = vadd.f32 0.0, %v2688
    %v2690 = vpop.f32.mrf.mxu0
    %v2691 = vadd.f32 0.0, %v2690
    %2692 = vdwg.mxu0
    %v2693 = vsel %vm664, %v2674, -inf
    %2694 = vmax.xlane.f32.xlu0 %v2693
    %v2695 = vpop.xlane.xlu0 %2694
    %v2696 = vsel %vm664, %v2676, -inf
    %2697 = vmax.xlane.f32.xlu0 %v2696
    %v2698 = vpop.xlane.xlu0 %2697
    %v2699 = vsel %vm664, %v2679, -inf
    %2700 = vmax.xlane.f32.xlu0 %v2699
    %v2701 = vpop.xlane.xlu0 %2700
    %v2702 = vsel %vm664, %v2681, -inf
    %2703 = vmax.xlane.f32.xlu0 %v2702
    %v2704 = vpop.xlane.xlu0 %2703
    %v2705 = vsel %vm664, %v2684, -inf
    %2706 = vmax.xlane.f32.xlu0 %v2705
    %v2707 = vpop.xlane.xlu0 %2706
    %v2708 = vsel %vm664, %v2686, -inf
    %2709 = vmax.xlane.f32.xlu0 %v2708
    %v2710 = vpop.xlane.xlu0 %2709
    %v2711 = vsel %vm664, %v2689, -inf
    %2712 = vmax.xlane.f32.xlu0 %v2711
    %v2713 = vpop.xlane.xlu0 %2712
    %v2714 = vsel %vm664, %v2691, -inf
    %2715 = vmax.xlane.f32.xlu0 %v2714
    %v2716 = vpop.xlane.xlu0 %2715
    %v2717 = vsub.f32 %v2674, %v2695
    %v2718 = vsub.f32 %v2676, %v2698
    %v2719 = vsub.f32 %v2679, %v2701
    %v2720 = vsub.f32 %v2681, %v2704
    %v2721 = vsub.f32 %v2684, %v2707
    %v2722 = vsub.f32 %v2686, %v2710
    %v2723 = vsub.f32 %v2689, %v2713
    %v2724 = vsub.f32 %v2691, %v2716
    %v2725 = vmul.f32 %v2717, 1.442695
    %v2726 = vpow.pop %v2725
    %v2727 = vmul.f32 %v2718, 1.442695
    %v2728 = vpow.pop %v2727
    %v2729 = vmul.f32 %v2719, 1.442695
    %v2730 = vpow.pop %v2729
    %v2731 = vmul.f32 %v2720, 1.442695
    %v2732 = vpow.pop %v2731
    %v2733 = vmul.f32 %v2721, 1.442695
    %v2734 = vpow.pop %v2733
    %v2735 = vmul.f32 %v2722, 1.442695
    %v2736 = vpow.pop %v2735
    %v2737 = vmul.f32 %v2723, 1.442695
    %v2738 = vpow.pop %v2737
    %v2739 = vmul.f32 %v2724, 1.442695
    %v2740 = vpow.pop %v2739
    %v2741 = vsel %vm664, %v2726, 0.0
    %2742 = vadd.xlane.f32.xlu0 %v2741
    %v2743 = vpop.xlane.xlu0 %2742
    %v2744 = vsel %vm664, %v2728, 0.0
    %2745 = vadd.xlane.f32.xlu0 %v2744
    %v2746 = vpop.xlane.xlu0 %2745
    %v2747 = vsel %vm664, %v2730, 0.0
    %2748 = vadd.xlane.f32.xlu0 %v2747
    %v2749 = vpop.xlane.xlu0 %2748
    %v2750 = vsel %vm664, %v2732, 0.0
    %2751 = vadd.xlane.f32.xlu0 %v2750
    %v2752 = vpop.xlane.xlu0 %2751
    %v2753 = vsel %vm664, %v2734, 0.0
    %2754 = vadd.xlane.f32.xlu0 %v2753
    %v2755 = vpop.xlane.xlu0 %2754
    %v2756 = vsel %vm664, %v2736, 0.0
    %2757 = vadd.xlane.f32.xlu0 %v2756
    %v2758 = vpop.xlane.xlu0 %2757
    %v2759 = vsel %vm664, %v2738, 0.0
    %2760 = vadd.xlane.f32.xlu0 %v2759
    %v2761 = vpop.xlane.xlu0 %2760
    %v2762 = vsel %vm664, %v2740, 0.0
    %2763 = vadd.xlane.f32.xlu0 %v2762
    %v2764 = vpop.xlane.xlu0 %2763
    %v2765 = vrcp.pop %v2743
    %v2766 = vrcp.pop %v2746
    %v2767 = vrcp.pop %v2749
    %v2768 = vrcp.pop %v2752
    %v2769 = vrcp.pop %v2755
    %v2770 = vrcp.pop %v2758
    %v2771 = vrcp.pop %v2761
    %v2772 = vrcp.pop %v2764
    %v2773 = vmul.f32 %v2726, %v2765
    %v2774 = vmul.f32 %v2728, %v2766
    %v2775 = vmul.f32 %v2730, %v2767
    %v2776 = vmul.f32 %v2732, %v2768
    %v2777 = vmul.f32 %v2734, %v2769
    %v2778 = vmul.f32 %v2736, %v2770
    %v2779 = vmul.f32 %v2738, %v2771
    %v2780 = vmul.f32 %v2740, %v2772
    %v2781 = vpack.c.bf16 %v2774, %v2773
    %v2782 = vpack.c.bf16 %v2776, %v2775
    %v2783 = vpack.c.bf16 %v2778, %v2777
    %v2784 = vpack.c.bf16 %v2780, %v2779
    %v2786 = vsel %vm664, %v2781, 0
    %v2789 = vsel %vm664, %v2782, 0
    %v2792 = vsel %vm664, %v2783, 0
    %v2795 = vsel %vm664, %v2784, 0
    %2797 = vmatpush.bf16.msra.mxu0 0
    %2798 = vmatpush.bf16.msra.mxu0 0
    %2799 = vmatpush.bf16.msra.mxu0 0
    %2800 = vmatpush.bf16.msra.mxu0 0
    %2801 = vmatpush.bf16.msra.mxu0 %v2639
    %2802 = vmatpush.bf16.msra.mxu0 %v2638
    %2803 = vmatpush.bf16.msra.mxu0 %v2637
    %2804 = vmatpush.bf16.msra.mxu0 %v2636
    %2805 = vmatmul.bf16.gmra.mxu0 %v2786
    %v2806 = vpop.f32.mrf.mxu0
    %v2807 = vadd.f32 0.0, %v2806
    %v2808 = vpop.f32.mrf.mxu0
    %v2809 = vadd.f32 0.0, %v2808
    %2810 = vmatmul.bf16.gmra.mxu0 %v2789
    %v2811 = vpop.f32.mrf.mxu0
    %v2812 = vadd.f32 0.0, %v2811
    %v2813 = vpop.f32.mrf.mxu0
    %v2814 = vadd.f32 0.0, %v2813
    %2815 = vmatmul.bf16.gmra.mxu0 %v2792
    %v2816 = vpop.f32.mrf.mxu0
    %v2817 = vadd.f32 0.0, %v2816
    %v2818 = vpop.f32.mrf.mxu0
    %v2819 = vadd.f32 0.0, %v2818
    %2820 = vmatmul.bf16.gmra.mxu0 %v2795
    %v2821 = vpop.f32.mrf.mxu0
    %v2822 = vadd.f32 0.0, %v2821
    %v2823 = vpop.f32.mrf.mxu0
    %v2824 = vadd.f32 0.0, %v2823
    %2825 = vdwg.mxu0
    %v2826 = vpack.c.bf16 %v2807, %v2807
    %v2827 = vpack.c.bf16 %v2809, %v2809
    %v2828 = vpack.c.bf16 %v2812, %v2812
    %v2829 = vpack.c.bf16 %v2814, %v2814
    %v2830 = vpack.c.bf16 %v2817, %v2817
    %v2831 = vpack.c.bf16 %v2819, %v2819
    %v2832 = vpack.c.bf16 %v2822, %v2822
    %v2833 = vpack.c.bf16 %v2824, %v2824
    %2834 = vst.msk [vmem:[#allocation2 + $0x40] sm:$0xf] %vm806, %v2826
    %2835 = vst.msk [vmem:[#allocation2 + $0x44] sm:$0xf] %vm806, %v2827
    %2836 = vst.msk [vmem:[#allocation2 + $0x48] sm:$0xf] %vm806, %v2828
    %2837 = vst.msk [vmem:[#allocation2 + $0x4c] sm:$0xf] %vm806, %v2829
    %2838 = vst.msk [vmem:[#allocation2 + $0x50] sm:$0xf] %vm806, %v2830
    %2839 = vst.msk [vmem:[#allocation2 + $0x54] sm:$0xf] %vm806, %v2831
    %2840 = vst.msk [vmem:[#allocation2 + $0x58] sm:$0xf] %vm806, %v2832
    %2841 = vst.msk [vmem:[#allocation2 + $0x5c] sm:$0xf] %vm806, %v2833
    %2846 = vrot.lane.b32.xlu0 %v2628, 96
    %v2847 = vpop.permute.xlu0 %2846
    %2848 = vrot.lane.b32.xlu0 %v2629, 96
    %v2849 = vpop.permute.xlu0 %2848
    %2850 = vrot.lane.b32.xlu0 %v2630, 96
    %v2851 = vpop.permute.xlu0 %2850
    %2852 = vrot.lane.b32.xlu0 %v2631, 96
    %v2853 = vpop.permute.xlu0 %2852
    %2858 = vrot.lane.b32.xlu0 %v2632, 96
    %v2859 = vpop.permute.xlu0 %2858
    %2860 = vrot.lane.b32.xlu0 %v2633, 96
    %v2861 = vpop.permute.xlu0 %2860
    %2862 = vrot.lane.b32.xlu0 %v2634, 96
    %v2863 = vpop.permute.xlu0 %2862
    %2864 = vrot.lane.b32.xlu0 %v2635, 96
    %v2865 = vpop.permute.xlu0 %2864
    %v2867 = vsel %vm610, %v2847, 0
    %v2870 = vsel %vm610, %v2849, 0
    %v2873 = vsel %vm610, %v2851, 0
    %v2876 = vsel %vm610, %v2853, 0
    %v2879 = vsel %vm610, %v2859, 0
    %v2882 = vsel %vm610, %v2861, 0
    %v2885 = vsel %vm610, %v2863, 0
    %v2888 = vsel %vm610, %v2865, 0
    %2890 = vmatpush.bf16.xpose.msra.mxu0 0
    %2891 = vmatpush.bf16.xpose.msra.mxu0 0
    %2892 = vmatpush.bf16.xpose.msra.mxu0 0
    %2893 = vmatpush.bf16.xpose.msra.mxu0 0
    %2894 = vmatpush.bf16.xpose.msra.mxu0 %v2888
    %2895 = vmatpush.bf16.xpose.msra.mxu0 %v2885
    %2896 = vmatpush.bf16.xpose.msra.mxu0 %v2882
    %2897 = vmatpush.bf16.xpose.msra.mxu0 %v2879
    %2898 = vmatmul.bf16.gmra.mxu0 %v2867
    %v2899 = vpop.f32.mrf.mxu0
    %v2900 = vadd.f32 0.0, %v2899
    %v2901 = vpop.f32.mrf.mxu0
    %v2902 = vadd.f32 0.0, %v2901
    %2903 = vmatmul.bf16.gmra.mxu0 %v2870
    %v2904 = vpop.f32.mrf.mxu0
    %v2905 = vadd.f32 0.0, %v2904
    %v2906 = vpop.f32.mrf.mxu0
    %v2907 = vadd.f32 0.0, %v2906
    %2908 = vmatmul.bf16.gmra.mxu0 %v2873
    %v2909 = vpop.f32.mrf.mxu0
    %v2910 = vadd.f32 0.0, %v2909
    %v2911 = vpop.f32.mrf.mxu0
    %v2912 = vadd.f32 0.0, %v2911
    %2913 = vmatmul.bf16.gmra.mxu0 %v2876
    %v2914 = vpop.f32.mrf.mxu0
    %v2915 = vadd.f32 0.0, %v2914
    %v2916 = vpop.f32.mrf.mxu0
    %v2917 = vadd.f32 0.0, %v2916
    %2918 = vdwg.mxu0
    %v2919 = vsel %vm664, %v2900, -inf
    %2920 = vmax.xlane.f32.xlu0 %v2919
    %v2921 = vpop.xlane.xlu0 %2920
    %v2922 = vsel %vm664, %v2902, -inf
    %2923 = vmax.xlane.f32.xlu0 %v2922
    %v2924 = vpop.xlane.xlu0 %2923
    %v2925 = vsel %vm664, %v2905, -inf
    %2926 = vmax.xlane.f32.xlu0 %v2925
    %v2927 = vpop.xlane.xlu0 %2926
    %v2928 = vsel %vm664, %v2907, -inf
    %2929 = vmax.xlane.f32.xlu0 %v2928
    %v2930 = vpop.xlane.xlu0 %2929
    %v2931 = vsel %vm664, %v2910, -inf
    %2932 = vmax.xlane.f32.xlu0 %v2931
    %v2933 = vpop.xlane.xlu0 %2932
    %v2934 = vsel %vm664, %v2912, -inf
    %2935 = vmax.xlane.f32.xlu0 %v2934
    %v2936 = vpop.xlane.xlu0 %2935
    %v2937 = vsel %vm664, %v2915, -inf
    %2938 = vmax.xlane.f32.xlu0 %v2937
    %v2939 = vpop.xlane.xlu0 %2938
    %v2940 = vsel %vm664, %v2917, -inf
    %2941 = vmax.xlane.f32.xlu0 %v2940
    %v2942 = vpop.xlane.xlu0 %2941
    %v2943 = vsub.f32 %v2900, %v2921
    %v2944 = vsub.f32 %v2902, %v2924
    %v2945 = vsub.f32 %v2905, %v2927
    %v2946 = vsub.f32 %v2907, %v2930
    %v2947 = vsub.f32 %v2910, %v2933
    %v2948 = vsub.f32 %v2912, %v2936
    %v2949 = vsub.f32 %v2915, %v2939
    %v2950 = vsub.f32 %v2917, %v2942
    %v2951 = vmul.f32 %v2943, 1.442695
    %v2952 = vpow.pop %v2951
    %v2953 = vmul.f32 %v2944, 1.442695
    %v2954 = vpow.pop %v2953
    %v2955 = vmul.f32 %v2945, 1.442695
    %v2956 = vpow.pop %v2955
    %v2957 = vmul.f32 %v2946, 1.442695
    %v2958 = vpow.pop %v2957
    %v2959 = vmul.f32 %v2947, 1.442695
    %v2960 = vpow.pop %v2959
    %v2961 = vmul.f32 %v2948, 1.442695
    %v2962 = vpow.pop %v2961
    %v2963 = vmul.f32 %v2949, 1.442695
    %v2964 = vpow.pop %v2963
    %v2965 = vmul.f32 %v2950, 1.442695
    %v2966 = vpow.pop %v2965
    %v2967 = vsel %vm664, %v2952, 0.0
    %2968 = vadd.xlane.f32.xlu0 %v2967
    %v2969 = vpop.xlane.xlu0 %2968
    %v2970 = vsel %vm664, %v2954, 0.0
    %2971 = vadd.xlane.f32.xlu0 %v2970
    %v2972 = vpop.xlane.xlu0 %2971
    %v2973 = vsel %vm664, %v2956, 0.0
    %2974 = vadd.xlane.f32.xlu0 %v2973
    %v2975 = vpop.xlane.xlu0 %2974
    %v2976 = vsel %vm664, %v2958, 0.0
    %2977 = vadd.xlane.f32.xlu0 %v2976
    %v2978 = vpop.xlane.xlu0 %2977
    %v2979 = vsel %vm664, %v2960, 0.0
    %2980 = vadd.xlane.f32.xlu0 %v2979
    %v2981 = vpop.xlane.xlu0 %2980
    %v2982 = vsel %vm664, %v2962, 0.0
    %2983 = vadd.xlane.f32.xlu0 %v2982
    %v2984 = vpop.xlane.xlu0 %2983
    %v2985 = vsel %vm664, %v2964, 0.0
    %2986 = vadd.xlane.f32.xlu0 %v2985
    %v2987 = vpop.xlane.xlu0 %2986
    %v2988 = vsel %vm664, %v2966, 0.0
    %2989 = vadd.xlane.f32.xlu0 %v2988
    %v2990 = vpop.xlane.xlu0 %2989
    %v2991 = vrcp.pop %v2969
    %v2992 = vrcp.pop %v2972
    %v2993 = vrcp.pop %v2975
    %v2994 = vrcp.pop %v2978
    %v2995 = vrcp.pop %v2981
    %v2996 = vrcp.pop %v2984
    %v2997 = vrcp.pop %v2987
    %v2998 = vrcp.pop %v2990
    %v2999 = vmul.f32 %v2952, %v2991
    %v3000 = vmul.f32 %v2954, %v2992
    %v3001 = vmul.f32 %v2956, %v2993
    %v3002 = vmul.f32 %v2958, %v2994
    %v3003 = vmul.f32 %v2960, %v2995
    %v3004 = vmul.f32 %v2962, %v2996
    %v3005 = vmul.f32 %v2964, %v2997
    %v3006 = vmul.f32 %v2966, %v2998
    %v3007 = vpack.c.bf16 %v3000, %v2999
    %v3008 = vpack.c.bf16 %v3002, %v3001
    %v3009 = vpack.c.bf16 %v3004, %v3003
    %v3010 = vpack.c.bf16 %v3006, %v3005
    %3015 = vrot.lane.b32.xlu0 %v2636, 96
    %v3016 = vpop.permute.xlu0 %3015
    %3017 = vrot.lane.b32.xlu0 %v2637, 96
    %v3018 = vpop.permute.xlu0 %3017
    %3019 = vrot.lane.b32.xlu0 %v2638, 96
    %v3020 = vpop.permute.xlu0 %3019
    %3021 = vrot.lane.b32.xlu0 %v2639, 96
    %v3022 = vpop.permute.xlu0 %3021
    %v3028 = vsel %vm664, %v3007, 0
    %v3031 = vsel %vm664, %v3008, 0
    %v3034 = vsel %vm664, %v3009, 0
    %v3037 = vsel %vm664, %v3010, 0
    %3039 = vmatpush.bf16.msra.mxu0 0
    %3040 = vmatpush.bf16.msra.mxu0 0
    %3041 = vmatpush.bf16.msra.mxu0 0
    %3042 = vmatpush.bf16.msra.mxu0 0
    %3043 = vmatpush.bf16.msra.mxu0 %v3022
    %3044 = vmatpush.bf16.msra.mxu0 %v3020
    %3045 = vmatpush.bf16.msra.mxu0 %v3018
    %3046 = vmatpush.bf16.msra.mxu0 %v3016
    %3047 = vmatmul.bf16.gmra.mxu0 %v3028
    %v3048 = vpop.f32.mrf.mxu0
    %v3049 = vadd.f32 0.0, %v3048
    %v3050 = vpop.f32.mrf.mxu0
    %v3051 = vadd.f32 0.0, %v3050
    %3052 = vmatmul.bf16.gmra.mxu0 %v3031
    %v3053 = vpop.f32.mrf.mxu0
    %v3054 = vadd.f32 0.0, %v3053
    %v3055 = vpop.f32.mrf.mxu0
    %v3056 = vadd.f32 0.0, %v3055
    %3057 = vmatmul.bf16.gmra.mxu0 %v3034
    %v3058 = vpop.f32.mrf.mxu0
    %v3059 = vadd.f32 0.0, %v3058
    %v3060 = vpop.f32.mrf.mxu0
    %v3061 = vadd.f32 0.0, %v3060
    %3062 = vmatmul.bf16.gmra.mxu0 %v3037
    %v3063 = vpop.f32.mrf.mxu0
    %v3064 = vadd.f32 0.0, %v3063
    %v3065 = vpop.f32.mrf.mxu0
    %v3066 = vadd.f32 0.0, %v3065
    %3067 = vdwg.mxu0
    %v3068 = vpack.c.bf16 %v3049, %v3049
    %v3069 = vpack.c.bf16 %v3051, %v3051
    %v3070 = vpack.c.bf16 %v3054, %v3054
    %v3071 = vpack.c.bf16 %v3056, %v3056
    %v3072 = vpack.c.bf16 %v3059, %v3059
    %v3073 = vpack.c.bf16 %v3061, %v3061
    %v3074 = vpack.c.bf16 %v3064, %v3064
    %v3075 = vpack.c.bf16 %v3066, %v3066
    %3084 = vrot.lane.b32.xlu0 %v3068, 32
    %v3085 = vpop.permute.xlu0 %3084
    %3086 = vrot.lane.b32.xlu0 %v3069, 32
    %v3087 = vpop.permute.xlu0 %3086
    %3088 = vrot.lane.b32.xlu0 %v3070, 32
    %v3089 = vpop.permute.xlu0 %3088
    %3090 = vrot.lane.b32.xlu0 %v3071, 32
    %v3091 = vpop.permute.xlu0 %3090
    %3092 = vrot.lane.b32.xlu0 %v3072, 32
    %v3093 = vpop.permute.xlu0 %3092
    %3094 = vrot.lane.b32.xlu0 %v3073, 32
    %v3095 = vpop.permute.xlu0 %3094
    %3096 = vrot.lane.b32.xlu0 %v3074, 32
    %v3097 = vpop.permute.xlu0 %3096
    %3098 = vrot.lane.b32.xlu0 %v3075, 32
    %v3099 = vpop.permute.xlu0 %3098
    %3108 = vst.msk [vmem:[#allocation2 + $0x40] sm:$0xf] %vm1081, %v3085
    %3109 = vst.msk [vmem:[#allocation2 + $0x44] sm:$0xf] %vm1081, %v3087
    %3110 = vst.msk [vmem:[#allocation2 + $0x48] sm:$0xf] %vm1081, %v3089
    %3111 = vst.msk [vmem:[#allocation2 + $0x4c] sm:$0xf] %vm1081, %v3091
    %3112 = vst.msk [vmem:[#allocation2 + $0x50] sm:$0xf] %vm1081, %v3093
    %3113 = vst.msk [vmem:[#allocation2 + $0x54] sm:$0xf] %vm1081, %v3095
    %3114 = vst.msk [vmem:[#allocation2 + $0x58] sm:$0xf] %vm1081, %v3097
    %3115 = vst.msk [vmem:[#allocation2 + $0x5c] sm:$0xf] %vm1081, %v3099
    %3116 = vrot.lane.b32.xlu0 %v2628, 64
    %v3117 = vpop.permute.xlu0 %3116
    %3118 = vrot.lane.b32.xlu0 %v2629, 64
    %v3119 = vpop.permute.xlu0 %3118
    %3120 = vrot.lane.b32.xlu0 %v2630, 64
    %v3121 = vpop.permute.xlu0 %3120
    %3122 = vrot.lane.b32.xlu0 %v2631, 64
    %v3123 = vpop.permute.xlu0 %3122
    %3124 = vrot.lane.b32.xlu0 %v2632, 64
    %v3125 = vpop.permute.xlu0 %3124
    %3126 = vrot.lane.b32.xlu0 %v2633, 64
    %v3127 = vpop.permute.xlu0 %3126
    %3128 = vrot.lane.b32.xlu0 %v2634, 64
    %v3129 = vpop.permute.xlu0 %3128
    %3130 = vrot.lane.b32.xlu0 %v2635, 64
    %v3131 = vpop.permute.xlu0 %3130
    %v3133 = vsel %vm610, %v3117, 0
    %v3136 = vsel %vm610, %v3119, 0
    %v3139 = vsel %vm610, %v3121, 0
    %v3142 = vsel %vm610, %v3123, 0
    %v3145 = vsel %vm610, %v3125, 0
    %v3148 = vsel %vm610, %v3127, 0
    %v3151 = vsel %vm610, %v3129, 0
    %v3154 = vsel %vm610, %v3131, 0
    %3156 = vmatpush.bf16.xpose.msra.mxu0 0
    %3157 = vmatpush.bf16.xpose.msra.mxu0 0
    %3158 = vmatpush.bf16.xpose.msra.mxu0 0
    %3159 = vmatpush.bf16.xpose.msra.mxu0 0
    %3160 = vmatpush.bf16.xpose.msra.mxu0 %v3154
    %3161 = vmatpush.bf16.xpose.msra.mxu0 %v3151
    %3162 = vmatpush.bf16.xpose.msra.mxu0 %v3148
    %3163 = vmatpush.bf16.xpose.msra.mxu0 %v3145
    %3164 = vmatmul.bf16.gmra.mxu0 %v3133
    %v3165 = vpop.f32.mrf.mxu0
    %v3166 = vadd.f32 0.0, %v3165
    %v3167 = vpop.f32.mrf.mxu0
    %v3168 = vadd.f32 0.0, %v3167
    %3169 = vmatmul.bf16.gmra.mxu0 %v3136
    %v3170 = vpop.f32.mrf.mxu0
    %v3171 = vadd.f32 0.0, %v3170
    %v3172 = vpop.f32.mrf.mxu0
    %v3173 = vadd.f32 0.0, %v3172
    %3174 = vmatmul.bf16.gmra.mxu0 %v3139
    %v3175 = vpop.f32.mrf.mxu0
    %v3176 = vadd.f32 0.0, %v3175
    %v3177 = vpop.f32.mrf.mxu0
    %v3178 = vadd.f32 0.0, %v3177
    %3179 = vmatmul.bf16.gmra.mxu0 %v3142
    %v3180 = vpop.f32.mrf.mxu0
    %v3181 = vadd.f32 0.0, %v3180
    %v3182 = vpop.f32.mrf.mxu0
    %v3183 = vadd.f32 0.0, %v3182
    %3184 = vdwg.mxu0
    %v3185 = vsel %vm664, %v3166, -inf
    %3186 = vmax.xlane.f32.xlu0 %v3185
    %v3187 = vpop.xlane.xlu0 %3186
    %v3188 = vsel %vm664, %v3168, -inf
    %3189 = vmax.xlane.f32.xlu0 %v3188
    %v3190 = vpop.xlane.xlu0 %3189
    %v3191 = vsel %vm664, %v3171, -inf
    %3192 = vmax.xlane.f32.xlu0 %v3191
    %v3193 = vpop.xlane.xlu0 %3192
    %v3194 = vsel %vm664, %v3173, -inf
    %3195 = vmax.xlane.f32.xlu0 %v3194
    %v3196 = vpop.xlane.xlu0 %3195
    %v3197 = vsel %vm664, %v3176, -inf
    %3198 = vmax.xlane.f32.xlu0 %v3197
    %v3199 = vpop.xlane.xlu0 %3198
    %v3200 = vsel %vm664, %v3178, -inf
    %3201 = vmax.xlane.f32.xlu0 %v3200
    %v3202 = vpop.xlane.xlu0 %3201
    %v3203 = vsel %vm664, %v3181, -inf
    %3204 = vmax.xlane.f32.xlu0 %v3203
    %v3205 = vpop.xlane.xlu0 %3204
    %v3206 = vsel %vm664, %v3183, -inf
    %3207 = vmax.xlane.f32.xlu0 %v3206
    %v3208 = vpop.xlane.xlu0 %3207
    %v3209 = vsub.f32 %v3166, %v3187
    %v3210 = vsub.f32 %v3168, %v3190
    %v3211 = vsub.f32 %v3171, %v3193
    %v3212 = vsub.f32 %v3173, %v3196
    %v3213 = vsub.f32 %v3176, %v3199
    %v3214 = vsub.f32 %v3178, %v3202
    %v3215 = vsub.f32 %v3181, %v3205
    %v3216 = vsub.f32 %v3183, %v3208
    %v3217 = vmul.f32 %v3209, 1.442695
    %v3218 = vpow.pop %v3217
    %v3219 = vmul.f32 %v3210, 1.442695
    %v3220 = vpow.pop %v3219
    %v3221 = vmul.f32 %v3211, 1.442695
    %v3222 = vpow.pop %v3221
    %v3223 = vmul.f32 %v3212, 1.442695
    %v3224 = vpow.pop %v3223
    %v3225 = vmul.f32 %v3213, 1.442695
    %v3226 = vpow.pop %v3225
    %v3227 = vmul.f32 %v3214, 1.442695
    %v3228 = vpow.pop %v3227
    %v3229 = vmul.f32 %v3215, 1.442695
    %v3230 = vpow.pop %v3229
    %v3231 = vmul.f32 %v3216, 1.442695
    %v3232 = vpow.pop %v3231
    %v3233 = vsel %vm664, %v3218, 0.0
    %3234 = vadd.xlane.f32.xlu0 %v3233
    %v3235 = vpop.xlane.xlu0 %3234
    %v3236 = vsel %vm664, %v3220, 0.0
    %3237 = vadd.xlane.f32.xlu0 %v3236
    %v3238 = vpop.xlane.xlu0 %3237
    %v3239 = vsel %vm664, %v3222, 0.0
    %3240 = vadd.xlane.f32.xlu0 %v3239
    %v3241 = vpop.xlane.xlu0 %3240
    %v3242 = vsel %vm664, %v3224, 0.0
    %3243 = vadd.xlane.f32.xlu0 %v3242
    %v3244 = vpop.xlane.xlu0 %3243
    %v3245 = vsel %vm664, %v3226, 0.0
    %3246 = vadd.xlane.f32.xlu0 %v3245
    %v3247 = vpop.xlane.xlu0 %3246
    %v3248 = vsel %vm664, %v3228, 0.0
    %3249 = vadd.xlane.f32.xlu0 %v3248
    %v3250 = vpop.xlane.xlu0 %3249
    %v3251 = vsel %vm664, %v3230, 0.0
    %3252 = vadd.xlane.f32.xlu0 %v3251
    %v3253 = vpop.xlane.xlu0 %3252
    %v3254 = vsel %vm664, %v3232, 0.0
    %3255 = vadd.xlane.f32.xlu0 %v3254
    %v3256 = vpop.xlane.xlu0 %3255
    %v3257 = vrcp.pop %v3235
    %v3258 = vrcp.pop %v3238
    %v3259 = vrcp.pop %v3241
    %v3260 = vrcp.pop %v3244
    %v3261 = vrcp.pop %v3247
    %v3262 = vrcp.pop %v3250
    %v3263 = vrcp.pop %v3253
    %v3264 = vrcp.pop %v3256
    %v3265 = vmul.f32 %v3218, %v3257
    %v3266 = vmul.f32 %v3220, %v3258
    %v3267 = vmul.f32 %v3222, %v3259
    %v3268 = vmul.f32 %v3224, %v3260
    %v3269 = vmul.f32 %v3226, %v3261
    %v3270 = vmul.f32 %v3228, %v3262
    %v3271 = vmul.f32 %v3230, %v3263
    %v3272 = vmul.f32 %v3232, %v3264
    %v3273 = vpack.c.bf16 %v3266, %v3265
    %v3274 = vpack.c.bf16 %v3268, %v3267
    %v3275 = vpack.c.bf16 %v3270, %v3269
    %v3276 = vpack.c.bf16 %v3272, %v3271
    %3277 = vrot.lane.b32.xlu0 %v2636, 64
    %v3278 = vpop.permute.xlu0 %3277
    %3279 = vrot.lane.b32.xlu0 %v2637, 64
    %v3280 = vpop.permute.xlu0 %3279
    %3281 = vrot.lane.b32.xlu0 %v2638, 64
    %v3282 = vpop.permute.xlu0 %3281
    %3283 = vrot.lane.b32.xlu0 %v2639, 64
    %v3284 = vpop.permute.xlu0 %3283
    %v3290 = vsel %vm664, %v3273, 0
    %v3293 = vsel %vm664, %v3274, 0
    %v3296 = vsel %vm664, %v3275, 0
    %v3299 = vsel %vm664, %v3276, 0
    %3301 = vmatpush.bf16.msra.mxu0 0
    %3302 = vmatpush.bf16.msra.mxu0 0
    %3303 = vmatpush.bf16.msra.mxu0 0
    %3304 = vmatpush.bf16.msra.mxu0 0
    %3305 = vmatpush.bf16.msra.mxu0 %v3284
    %3306 = vmatpush.bf16.msra.mxu0 %v3282
    %3307 = vmatpush.bf16.msra.mxu0 %v3280
    %3308 = vmatpush.bf16.msra.mxu0 %v3278
    %3309 = vmatmul.bf16.gmra.mxu0 %v3290
    %v3310 = vpop.f32.mrf.mxu0
    %v3311 = vadd.f32 0.0, %v3310
    %v3312 = vpop.f32.mrf.mxu0
    %v3313 = vadd.f32 0.0, %v3312
    %3314 = vmatmul.bf16.gmra.mxu0 %v3293
    %v3315 = vpop.f32.mrf.mxu0
    %v3316 = vadd.f32 0.0, %v3315
    %v3317 = vpop.f32.mrf.mxu0
    %v3318 = vadd.f32 0.0, %v3317
    %3319 = vmatmul.bf16.gmra.mxu0 %v3296
    %v3320 = vpop.f32.mrf.mxu0
    %v3321 = vadd.f32 0.0, %v3320
    %v3322 = vpop.f32.mrf.mxu0
    %v3323 = vadd.f32 0.0, %v3322
    %3324 = vmatmul.bf16.gmra.mxu0 %v3299
    %v3325 = vpop.f32.mrf.mxu0
    %v3326 = vadd.f32 0.0, %v3325
    %v3327 = vpop.f32.mrf.mxu0
    %v3328 = vadd.f32 0.0, %v3327
    %3329 = vdwg.mxu0
    %v3330 = vpack.c.bf16 %v3311, %v3311
    %v3331 = vpack.c.bf16 %v3313, %v3313
    %v3332 = vpack.c.bf16 %v3316, %v3316
    %v3333 = vpack.c.bf16 %v3318, %v3318
    %v3334 = vpack.c.bf16 %v3321, %v3321
    %v3335 = vpack.c.bf16 %v3323, %v3323
    %v3336 = vpack.c.bf16 %v3326, %v3326
    %v3337 = vpack.c.bf16 %v3328, %v3328
    %3346 = vrot.lane.b32.xlu0 %v3330, 64
    %v3347 = vpop.permute.xlu0 %3346
    %3348 = vrot.lane.b32.xlu0 %v3331, 64
    %v3349 = vpop.permute.xlu0 %3348
    %3350 = vrot.lane.b32.xlu0 %v3332, 64
    %v3351 = vpop.permute.xlu0 %3350
    %3352 = vrot.lane.b32.xlu0 %v3333, 64
    %v3353 = vpop.permute.xlu0 %3352
    %3354 = vrot.lane.b32.xlu0 %v3334, 64
    %v3355 = vpop.permute.xlu0 %3354
    %3356 = vrot.lane.b32.xlu0 %v3335, 64
    %v3357 = vpop.permute.xlu0 %3356
    %3358 = vrot.lane.b32.xlu0 %v3336, 64
    %v3359 = vpop.permute.xlu0 %3358
    %3360 = vrot.lane.b32.xlu0 %v3337, 64
    %v3361 = vpop.permute.xlu0 %3360
    %3370 = vst.msk [vmem:[#allocation2 + $0x40] sm:$0xf] %vm1344, %v3347
    %3371 = vst.msk [vmem:[#allocation2 + $0x44] sm:$0xf] %vm1344, %v3349
    %3372 = vst.msk [vmem:[#allocation2 + $0x48] sm:$0xf] %vm1344, %v3351
    %3373 = vst.msk [vmem:[#allocation2 + $0x4c] sm:$0xf] %vm1344, %v3353
    %3374 = vst.msk [vmem:[#allocation2 + $0x50] sm:$0xf] %vm1344, %v3355
    %3375 = vst.msk [vmem:[#allocation2 + $0x54] sm:$0xf] %vm1344, %v3357
    %3376 = vst.msk [vmem:[#allocation2 + $0x58] sm:$0xf] %vm1344, %v3359
    %3377 = vst.msk [vmem:[#allocation2 + $0x5c] sm:$0xf] %vm1344, %v3361
    %3378 = vrot.lane.b32.xlu0 %v2628, 32
    %v3379 = vpop.permute.xlu0 %3378
    %3380 = vrot.lane.b32.xlu0 %v2629, 32
    %v3381 = vpop.permute.xlu0 %3380
    %3382 = vrot.lane.b32.xlu0 %v2630, 32
    %v3383 = vpop.permute.xlu0 %3382
    %3384 = vrot.lane.b32.xlu0 %v2631, 32
    %v3385 = vpop.permute.xlu0 %3384
    %3386 = vrot.lane.b32.xlu0 %v2632, 32
    %v3387 = vpop.permute.xlu0 %3386
    %3388 = vrot.lane.b32.xlu0 %v2633, 32
    %v3389 = vpop.permute.xlu0 %3388
    %3390 = vrot.lane.b32.xlu0 %v2634, 32
    %v3391 = vpop.permute.xlu0 %3390
    %3392 = vrot.lane.b32.xlu0 %v2635, 32
    %v3393 = vpop.permute.xlu0 %3392
    %v3395 = vsel %vm610, %v3379, 0
    %v3398 = vsel %vm610, %v3381, 0
    %v3401 = vsel %vm610, %v3383, 0
    %v3404 = vsel %vm610, %v3385, 0
    %v3407 = vsel %vm610, %v3387, 0
    %v3410 = vsel %vm610, %v3389, 0
    %v3413 = vsel %vm610, %v3391, 0
    %v3416 = vsel %vm610, %v3393, 0
    %3418 = vmatpush.bf16.xpose.msra.mxu0 0
    %3419 = vmatpush.bf16.xpose.msra.mxu0 0
    %3420 = vmatpush.bf16.xpose.msra.mxu0 0
    %3421 = vmatpush.bf16.xpose.msra.mxu0 0
    %3422 = vmatpush.bf16.xpose.msra.mxu0 %v3416
    %3423 = vmatpush.bf16.xpose.msra.mxu0 %v3413
    %3424 = vmatpush.bf16.xpose.msra.mxu0 %v3410
    %3425 = vmatpush.bf16.xpose.msra.mxu0 %v3407
    %3426 = vmatmul.bf16.gmra.mxu0 %v3395
    %v3427 = vpop.f32.mrf.mxu0
    %v3428 = vadd.f32 0.0, %v3427
    %v3429 = vpop.f32.mrf.mxu0
    %v3430 = vadd.f32 0.0, %v3429
    %3431 = vmatmul.bf16.gmra.mxu0 %v3398
    %v3432 = vpop.f32.mrf.mxu0
    %v3433 = vadd.f32 0.0, %v3432
    %v3434 = vpop.f32.mrf.mxu0
    %v3435 = vadd.f32 0.0, %v3434
    %3436 = vmatmul.bf16.gmra.mxu0 %v3401
    %v3437 = vpop.f32.mrf.mxu0
    %v3438 = vadd.f32 0.0, %v3437
    %v3439 = vpop.f32.mrf.mxu0
    %v3440 = vadd.f32 0.0, %v3439
    %3441 = vmatmul.bf16.gmra.mxu0 %v3404
    %v3442 = vpop.f32.mrf.mxu0
    %v3443 = vadd.f32 0.0, %v3442
    %v3444 = vpop.f32.mrf.mxu0
    %v3445 = vadd.f32 0.0, %v3444
    %3446 = vdwg.mxu0
    %v3447 = vsel %vm664, %v3428, -inf
    %3448 = vmax.xlane.f32.xlu0 %v3447
    %v3449 = vpop.xlane.xlu0 %3448
    %v3450 = vsel %vm664, %v3430, -inf
    %3451 = vmax.xlane.f32.xlu0 %v3450
    %v3452 = vpop.xlane.xlu0 %3451
    %v3453 = vsel %vm664, %v3433, -inf
    %3454 = vmax.xlane.f32.xlu0 %v3453
    %v3455 = vpop.xlane.xlu0 %3454
    %v3456 = vsel %vm664, %v3435, -inf
    %3457 = vmax.xlane.f32.xlu0 %v3456
    %v3458 = vpop.xlane.xlu0 %3457
    %v3459 = vsel %vm664, %v3438, -inf
    %3460 = vmax.xlane.f32.xlu0 %v3459
    %v3461 = vpop.xlane.xlu0 %3460
    %v3462 = vsel %vm664, %v3440, -inf
    %3463 = vmax.xlane.f32.xlu0 %v3462
    %v3464 = vpop.xlane.xlu0 %3463
    %v3465 = vsel %vm664, %v3443, -inf
    %3466 = vmax.xlane.f32.xlu0 %v3465
    %v3467 = vpop.xlane.xlu0 %3466
    %v3468 = vsel %vm664, %v3445, -inf
    %3469 = vmax.xlane.f32.xlu0 %v3468
    %v3470 = vpop.xlane.xlu0 %3469
    %v3471 = vsub.f32 %v3428, %v3449
    %v3472 = vsub.f32 %v3430, %v3452
    %v3473 = vsub.f32 %v3433, %v3455
    %v3474 = vsub.f32 %v3435, %v3458
    %v3475 = vsub.f32 %v3438, %v3461
    %v3476 = vsub.f32 %v3440, %v3464
    %v3477 = vsub.f32 %v3443, %v3467
    %v3478 = vsub.f32 %v3445, %v3470
    %v3479 = vmul.f32 %v3471, 1.442695
    %v3480 = vpow.pop %v3479
    %v3481 = vmul.f32 %v3472, 1.442695
    %v3482 = vpow.pop %v3481
    %v3483 = vmul.f32 %v3473, 1.442695
    %v3484 = vpow.pop %v3483
    %v3485 = vmul.f32 %v3474, 1.442695
    %v3486 = vpow.pop %v3485
    %v3487 = vmul.f32 %v3475, 1.442695
    %v3488 = vpow.pop %v3487
    %v3489 = vmul.f32 %v3476, 1.442695
    %v3490 = vpow.pop %v3489
    %v3491 = vmul.f32 %v3477, 1.442695
    %v3492 = vpow.pop %v3491
    %v3493 = vmul.f32 %v3478, 1.442695
    %v3494 = vpow.pop %v3493
    %v3495 = vsel %vm664, %v3480, 0.0
    %3496 = vadd.xlane.f32.xlu0 %v3495
    %v3497 = vpop.xlane.xlu0 %3496
    %v3498 = vsel %vm664, %v3482, 0.0
    %3499 = vadd.xlane.f32.xlu0 %v3498
    %v3500 = vpop.xlane.xlu0 %3499
    %v3501 = vsel %vm664, %v3484, 0.0
    %3502 = vadd.xlane.f32.xlu0 %v3501
    %v3503 = vpop.xlane.xlu0 %3502
    %v3504 = vsel %vm664, %v3486, 0.0
    %3505 = vadd.xlane.f32.xlu0 %v3504
    %v3506 = vpop.xlane.xlu0 %3505
    %v3507 = vsel %vm664, %v3488, 0.0
    %3508 = vadd.xlane.f32.xlu0 %v3507
    %v3509 = vpop.xlane.xlu0 %3508
    %v3510 = vsel %vm664, %v3490, 0.0
    %3511 = vadd.xlane.f32.xlu0 %v3510
    %v3512 = vpop.xlane.xlu0 %3511
    %v3513 = vsel %vm664, %v3492, 0.0
    %3514 = vadd.xlane.f32.xlu0 %v3513
    %v3515 = vpop.xlane.xlu0 %3514
    %v3516 = vsel %vm664, %v3494, 0.0
    %3517 = vadd.xlane.f32.xlu0 %v3516
    %v3518 = vpop.xlane.xlu0 %3517
    %v3519 = vrcp.pop %v3497
    %v3520 = vrcp.pop %v3500
    %v3521 = vrcp.pop %v3503
    %v3522 = vrcp.pop %v3506
    %v3523 = vrcp.pop %v3509
    %v3524 = vrcp.pop %v3512
    %v3525 = vrcp.pop %v3515
    %v3526 = vrcp.pop %v3518
    %v3527 = vmul.f32 %v3480, %v3519
    %v3528 = vmul.f32 %v3482, %v3520
    %v3529 = vmul.f32 %v3484, %v3521
    %v3530 = vmul.f32 %v3486, %v3522
    %v3531 = vmul.f32 %v3488, %v3523
    %v3532 = vmul.f32 %v3490, %v3524
    %v3533 = vmul.f32 %v3492, %v3525
    %v3534 = vmul.f32 %v3494, %v3526
    %v3535 = vpack.c.bf16 %v3528, %v3527
    %v3536 = vpack.c.bf16 %v3530, %v3529
    %v3537 = vpack.c.bf16 %v3532, %v3531
    %v3538 = vpack.c.bf16 %v3534, %v3533
    %3539 = vrot.lane.b32.xlu0 %v2636, 32
    %v3540 = vpop.permute.xlu0 %3539
    %3541 = vrot.lane.b32.xlu0 %v2637, 32
    %v3542 = vpop.permute.xlu0 %3541
    %3543 = vrot.lane.b32.xlu0 %v2638, 32
    %v3544 = vpop.permute.xlu0 %3543
    %3545 = vrot.lane.b32.xlu0 %v2639, 32
    %v3546 = vpop.permute.xlu0 %3545
    %v3552 = vsel %vm664, %v3535, 0
    %v3555 = vsel %vm664, %v3536, 0
    %v3558 = vsel %vm664, %v3537, 0
    %v3561 = vsel %vm664, %v3538, 0
    %3563 = vmatpush.bf16.msra.mxu0 0
    %3564 = vmatpush.bf16.msra.mxu0 0
    %3565 = vmatpush.bf16.msra.mxu0 0
    %3566 = vmatpush.bf16.msra.mxu0 0
    %3567 = vmatpush.bf16.msra.mxu0 %v3546
    %3568 = vmatpush.bf16.msra.mxu0 %v3544
    %3569 = vmatpush.bf16.msra.mxu0 %v3542
    %3570 = vmatpush.bf16.msra.mxu0 %v3540
    %3571 = vmatmul.bf16.gmra.mxu0 %v3552
    %v3572 = vpop.f32.mrf.mxu0
    %v3573 = vadd.f32 0.0, %v3572
    %v3574 = vpop.f32.mrf.mxu0
    %v3575 = vadd.f32 0.0, %v3574
    %3576 = vmatmul.bf16.gmra.mxu0 %v3555
    %v3577 = vpop.f32.mrf.mxu0
    %v3578 = vadd.f32 0.0, %v3577
    %v3579 = vpop.f32.mrf.mxu0
    %v3580 = vadd.f32 0.0, %v3579
    %3581 = vmatmul.bf16.gmra.mxu0 %v3558
    %v3582 = vpop.f32.mrf.mxu0
    %v3583 = vadd.f32 0.0, %v3582
    %v3584 = vpop.f32.mrf.mxu0
    %v3585 = vadd.f32 0.0, %v3584
    %3586 = vmatmul.bf16.gmra.mxu0 %v3561
    %v3587 = vpop.f32.mrf.mxu0
    %v3588 = vadd.f32 0.0, %v3587
    %v3589 = vpop.f32.mrf.mxu0
    %v3590 = vadd.f32 0.0, %v3589
    %3591 = vdwg.mxu0
    %v3592 = vpack.c.bf16 %v3573, %v3573
    %v3593 = vpack.c.bf16 %v3575, %v3575
    %v3594 = vpack.c.bf16 %v3578, %v3578
    %v3595 = vpack.c.bf16 %v3580, %v3580
    %v3596 = vpack.c.bf16 %v3583, %v3583
    %v3597 = vpack.c.bf16 %v3585, %v3585
    %v3598 = vpack.c.bf16 %v3588, %v3588
    %v3599 = vpack.c.bf16 %v3590, %v3590
    %3608 = vrot.lane.b32.xlu0 %v3592, 96
    %v3609 = vpop.permute.xlu0 %3608
    %3610 = vrot.lane.b32.xlu0 %v3593, 96
    %v3611 = vpop.permute.xlu0 %3610
    %3612 = vrot.lane.b32.xlu0 %v3594, 96
    %v3613 = vpop.permute.xlu0 %3612
    %3614 = vrot.lane.b32.xlu0 %v3595, 96
    %v3615 = vpop.permute.xlu0 %3614
    %3616 = vrot.lane.b32.xlu0 %v3596, 96
    %v3617 = vpop.permute.xlu0 %3616
    %3618 = vrot.lane.b32.xlu0 %v3597, 96
    %v3619 = vpop.permute.xlu0 %3618
    %3620 = vrot.lane.b32.xlu0 %v3598, 96
    %v3621 = vpop.permute.xlu0 %3620
    %3622 = vrot.lane.b32.xlu0 %v3599, 96
    %v3623 = vpop.permute.xlu0 %3622
    %3632 = vst.msk [vmem:[#allocation2 + $0x40] sm:$0xf] %vm1607, %v3609
    %3633 = vst.msk [vmem:[#allocation2 + $0x44] sm:$0xf] %vm1607, %v3611
    %3634 = vst.msk [vmem:[#allocation2 + $0x48] sm:$0xf] %vm1607, %v3613
    %3635 = vst.msk [vmem:[#allocation2 + $0x4c] sm:$0xf] %vm1607, %v3615
    %3636 = vst.msk [vmem:[#allocation2 + $0x50] sm:$0xf] %vm1607, %v3617
    %3637 = vst.msk [vmem:[#allocation2 + $0x54] sm:$0xf] %vm1607, %v3619
    %3638 = vst.msk [vmem:[#allocation2 + $0x58] sm:$0xf] %vm1607, %v3621
    %3639 = vst.msk [vmem:[#allocation2 + $0x5c] sm:$0xf] %vm1607, %v3623
    %v3640 = vpack.c.bf16 %v591, %v590
    %v3641 = vpack.c.bf16 %v593, %v592
    %v3642 = vpack.c.bf16 %v595, %v594
    %v3643 = vpack.c.bf16 %v597, %v596
    %v3644 = vpack.c.bf16 %v460, %v458
    %v3645 = vpack.c.bf16 %v465, %v463
    %v3646 = vpack.c.bf16 %v470, %v468
    %v3647 = vpack.c.bf16 %v475, %v473
    %v3648 = vpack.c.bf16 %v549, %v547
    %v3649 = vpack.c.bf16 %v554, %v552
    %v3650 = vpack.c.bf16 %v559, %v557
    %v3651 = vpack.c.bf16 %v564, %v562
    %v3653 = vsel %vm610, %v3640, 0
    %v3656 = vsel %vm610, %v3641, 0
    %v3659 = vsel %vm610, %v3642, 0
    %v3662 = vsel %vm610, %v3643, 0
    %v3665 = vsel %vm610, %v3644, 0
    %v3668 = vsel %vm610, %v3645, 0
    %v3671 = vsel %vm610, %v3646, 0
    %v3674 = vsel %vm610, %v3647, 0
    %3676 = vmatpush.bf16.xpose.msra.mxu0 0
    %3677 = vmatpush.bf16.xpose.msra.mxu0 0
    %3678 = vmatpush.bf16.xpose.msra.mxu0 0
    %3679 = vmatpush.bf16.xpose.msra.mxu0 0
    %3680 = vmatpush.bf16.xpose.msra.mxu0 %v3674
    %3681 = vmatpush.bf16.xpose.msra.mxu0 %v3671
    %3682 = vmatpush.bf16.xpose.msra.mxu0 %v3668
    %3683 = vmatpush.bf16.xpose.msra.mxu0 %v3665
    %3684 = vmatmul.bf16.gmra.mxu0 %v3653
    %v3685 = vpop.f32.mrf.mxu0
    %v3686 = vadd.f32 0.0, %v3685
    %v3687 = vpop.f32.mrf.mxu0
    %v3688 = vadd.f32 0.0, %v3687
    %3689 = vmatmul.bf16.gmra.mxu0 %v3656
    %v3690 = vpop.f32.mrf.mxu0
    %v3691 = vadd.f32 0.0, %v3690
    %v3692 = vpop.f32.mrf.mxu0
    %v3693 = vadd.f32 0.0, %v3692
    %3694 = vmatmul.bf16.gmra.mxu0 %v3659
    %v3695 = vpop.f32.mrf.mxu0
    %v3696 = vadd.f32 0.0, %v3695
    %v3697 = vpop.f32.mrf.mxu0
    %v3698 = vadd.f32 0.0, %v3697
    %3699 = vmatmul.bf16.gmra.mxu0 %v3662
    %v3700 = vpop.f32.mrf.mxu0
    %v3701 = vadd.f32 0.0, %v3700
    %v3702 = vpop.f32.mrf.mxu0
    %v3703 = vadd.f32 0.0, %v3702
    %3704 = vdwg.mxu0
    %v3705 = vsel %vm664, %v3686, -inf
    %3706 = vmax.xlane.f32.xlu0 %v3705
    %v3707 = vpop.xlane.xlu0 %3706
    %v3708 = vsel %vm664, %v3688, -inf
    %3709 = vmax.xlane.f32.xlu0 %v3708
    %v3710 = vpop.xlane.xlu0 %3709
    %v3711 = vsel %vm664, %v3691, -inf
    %3712 = vmax.xlane.f32.xlu0 %v3711
    %v3713 = vpop.xlane.xlu0 %3712
    %v3714 = vsel %vm664, %v3693, -inf
    %3715 = vmax.xlane.f32.xlu0 %v3714
    %v3716 = vpop.xlane.xlu0 %3715
    %v3717 = vsel %vm664, %v3696, -inf
    %3718 = vmax.xlane.f32.xlu0 %v3717
    %v3719 = vpop.xlane.xlu0 %3718
    %v3720 = vsel %vm664, %v3698, -inf
    %3721 = vmax.xlane.f32.xlu0 %v3720
    %v3722 = vpop.xlane.xlu0 %3721
    %v3723 = vsel %vm664, %v3701, -inf
    %3724 = vmax.xlane.f32.xlu0 %v3723
    %v3725 = vpop.xlane.xlu0 %3724
    %v3726 = vsel %vm664, %v3703, -inf
    %3727 = vmax.xlane.f32.xlu0 %v3726
    %v3728 = vpop.xlane.xlu0 %3727
    %v3729 = vsub.f32 %v3686, %v3707
    %v3730 = vsub.f32 %v3688, %v3710
    %v3731 = vsub.f32 %v3691, %v3713
    %v3732 = vsub.f32 %v3693, %v3716
    %v3733 = vsub.f32 %v3696, %v3719
    %v3734 = vsub.f32 %v3698, %v3722
    %v3735 = vsub.f32 %v3701, %v3725
    %v3736 = vsub.f32 %v3703, %v3728
    %v3737 = vmul.f32 %v3729, 1.442695
    %v3738 = vpow.pop %v3737
    %v3739 = vmul.f32 %v3730, 1.442695
    %v3740 = vpow.pop %v3739
    %v3741 = vmul.f32 %v3731, 1.442695
    %v3742 = vpow.pop %v3741
    %v3743 = vmul.f32 %v3732, 1.442695
    %v3744 = vpow.pop %v3743
    %v3745 = vmul.f32 %v3733, 1.442695
    %v3746 = vpow.pop %v3745
    %v3747 = vmul.f32 %v3734, 1.442695
    %v3748 = vpow.pop %v3747
    %v3749 = vmul.f32 %v3735, 1.442695
    %v3750 = vpow.pop %v3749
    %v3751 = vmul.f32 %v3736, 1.442695
    %v3752 = vpow.pop %v3751
    %v3753 = vsel %vm664, %v3738, 0.0
    %3754 = vadd.xlane.f32.xlu0 %v3753
    %v3755 = vpop.xlane.xlu0 %3754
    %v3756 = vsel %vm664, %v3740, 0.0
    %3757 = vadd.xlane.f32.xlu0 %v3756
    %v3758 = vpop.xlane.xlu0 %3757
    %v3759 = vsel %vm664, %v3742, 0.0
    %3760 = vadd.xlane.f32.xlu0 %v3759
    %v3761 = vpop.xlane.xlu0 %3760
    %v3762 = vsel %vm664, %v3744, 0.0
    %3763 = vadd.xlane.f32.xlu0 %v3762
    %v3764 = vpop.xlane.xlu0 %3763
    %v3765 = vsel %vm664, %v3746, 0.0
    %3766 = vadd.xlane.f32.xlu0 %v3765
    %v3767 = vpop.xlane.xlu0 %3766
    %v3768 = vsel %vm664, %v3748, 0.0
    %3769 = vadd.xlane.f32.xlu0 %v3768
    %v3770 = vpop.xlane.xlu0 %3769
    %v3771 = vsel %vm664, %v3750, 0.0
    %3772 = vadd.xlane.f32.xlu0 %v3771
    %v3773 = vpop.xlane.xlu0 %3772
    %v3774 = vsel %vm664, %v3752, 0.0
    %3775 = vadd.xlane.f32.xlu0 %v3774
    %v3776 = vpop.xlane.xlu0 %3775
    %v3777 = vrcp.pop %v3755
    %v3778 = vrcp.pop %v3758
    %v3779 = vrcp.pop %v3761
    %v3780 = vrcp.pop %v3764
    %v3781 = vrcp.pop %v3767
    %v3782 = vrcp.pop %v3770
    %v3783 = vrcp.pop %v3773
    %v3784 = vrcp.pop %v3776
    %v3785 = vmul.f32 %v3738, %v3777
    %v3786 = vmul.f32 %v3740, %v3778
    %v3787 = vmul.f32 %v3742, %v3779
    %v3788 = vmul.f32 %v3744, %v3780
    %v3789 = vmul.f32 %v3746, %v3781
    %v3790 = vmul.f32 %v3748, %v3782
    %v3791 = vmul.f32 %v3750, %v3783
    %v3792 = vmul.f32 %v3752, %v3784
    %v3793 = vpack.c.bf16 %v3786, %v3785
    %v3794 = vpack.c.bf16 %v3788, %v3787
    %v3795 = vpack.c.bf16 %v3790, %v3789
    %v3796 = vpack.c.bf16 %v3792, %v3791
    %v3798 = vsel %vm664, %v3793, 0
    %v3801 = vsel %vm664, %v3794, 0
    %v3804 = vsel %vm664, %v3795, 0
    %v3807 = vsel %vm664, %v3796, 0
    %3809 = vmatpush.bf16.msra.mxu0 0
    %3810 = vmatpush.bf16.msra.mxu0 0
    %3811 = vmatpush.bf16.msra.mxu0 0
    %3812 = vmatpush.bf16.msra.mxu0 0
    %3813 = vmatpush.bf16.msra.mxu0 %v3651
    %3814 = vmatpush.bf16.msra.mxu0 %v3650
    %3815 = vmatpush.bf16.msra.mxu0 %v3649
    %3816 = vmatpush.bf16.msra.mxu0 %v3648
    %3817 = vmatmul.bf16.gmra.mxu0 %v3798
    %v3818 = vpop.f32.mrf.mxu0
    %v3819 = vadd.f32 0.0, %v3818
    %v3820 = vpop.f32.mrf.mxu0
    %v3821 = vadd.f32 0.0, %v3820
    %3822 = vmatmul.bf16.gmra.mxu0 %v3801
    %v3823 = vpop.f32.mrf.mxu0
    %v3824 = vadd.f32 0.0, %v3823
    %v3825 = vpop.f32.mrf.mxu0
    %v3826 = vadd.f32 0.0, %v3825
    %3827 = vmatmul.bf16.gmra.mxu0 %v3804
    %v3828 = vpop.f32.mrf.mxu0
    %v3829 = vadd.f32 0.0, %v3828
    %v3830 = vpop.f32.mrf.mxu0
    %v3831 = vadd.f32 0.0, %v3830
    %3832 = vmatmul.bf16.gmra.mxu0 %v3807
    %v3833 = vpop.f32.mrf.mxu0
    %v3834 = vadd.f32 0.0, %v3833
    %v3835 = vpop.f32.mrf.mxu0
    %v3836 = vadd.f32 0.0, %v3835
    %3837 = vdwg.mxu0
    %v3838 = vpack.c.bf16 %v3819, %v3819
    %v3839 = vpack.c.bf16 %v3821, %v3821
    %v3840 = vpack.c.bf16 %v3824, %v3824
    %v3841 = vpack.c.bf16 %v3826, %v3826
    %v3842 = vpack.c.bf16 %v3829, %v3829
    %v3843 = vpack.c.bf16 %v3831, %v3831
    %v3844 = vpack.c.bf16 %v3834, %v3834
    %v3845 = vpack.c.bf16 %v3836, %v3836
    %3846 = vst.msk [vmem:[#allocation2 + $0x60] sm:$0xf] %vm806, %v3838
    %3847 = vst.msk [vmem:[#allocation2 + $0x64] sm:$0xf] %vm806, %v3839
    %3848 = vst.msk [vmem:[#allocation2 + $0x68] sm:$0xf] %vm806, %v3840
    %3849 = vst.msk [vmem:[#allocation2 + $0x6c] sm:$0xf] %vm806, %v3841
    %3850 = vst.msk [vmem:[#allocation2 + $0x70] sm:$0xf] %vm806, %v3842
    %3851 = vst.msk [vmem:[#allocation2 + $0x74] sm:$0xf] %vm806, %v3843
    %3852 = vst.msk [vmem:[#allocation2 + $0x78] sm:$0xf] %vm806, %v3844
    %3853 = vst.msk [vmem:[#allocation2 + $0x7c] sm:$0xf] %vm806, %v3845
    %3858 = vrot.lane.b32.xlu0 %v3640, 96
    %v3859 = vpop.permute.xlu0 %3858
    %3860 = vrot.lane.b32.xlu0 %v3641, 96
    %v3861 = vpop.permute.xlu0 %3860
    %3862 = vrot.lane.b32.xlu0 %v3642, 96
    %v3863 = vpop.permute.xlu0 %3862
    %3864 = vrot.lane.b32.xlu0 %v3643, 96
    %v3865 = vpop.permute.xlu0 %3864
    %3870 = vrot.lane.b32.xlu0 %v3644, 96
    %v3871 = vpop.permute.xlu0 %3870
    %3872 = vrot.lane.b32.xlu0 %v3645, 96
    %v3873 = vpop.permute.xlu0 %3872
    %3874 = vrot.lane.b32.xlu0 %v3646, 96
    %v3875 = vpop.permute.xlu0 %3874
    %3876 = vrot.lane.b32.xlu0 %v3647, 96
    %v3877 = vpop.permute.xlu0 %3876
    %v3879 = vsel %vm610, %v3859, 0
    %v3882 = vsel %vm610, %v3861, 0
    %v3885 = vsel %vm610, %v3863, 0
    %v3888 = vsel %vm610, %v3865, 0
    %v3891 = vsel %vm610, %v3871, 0
    %v3894 = vsel %vm610, %v3873, 0
    %v3897 = vsel %vm610, %v3875, 0
    %v3900 = vsel %vm610, %v3877, 0
    %3902 = vmatpush.bf16.xpose.msra.mxu0 0
    %3903 = vmatpush.bf16.xpose.msra.mxu0 0
    %3904 = vmatpush.bf16.xpose.msra.mxu0 0
    %3905 = vmatpush.bf16.xpose.msra.mxu0 0
    %3906 = vmatpush.bf16.xpose.msra.mxu0 %v3900
    %3907 = vmatpush.bf16.xpose.msra.mxu0 %v3897
    %3908 = vmatpush.bf16.xpose.msra.mxu0 %v3894
    %3909 = vmatpush.bf16.xpose.msra.mxu0 %v3891
    %3910 = vmatmul.bf16.gmra.mxu0 %v3879
    %v3911 = vpop.f32.mrf.mxu0
    %v3912 = vadd.f32 0.0, %v3911
    %v3913 = vpop.f32.mrf.mxu0
    %v3914 = vadd.f32 0.0, %v3913
    %3915 = vmatmul.bf16.gmra.mxu0 %v3882
    %v3916 = vpop.f32.mrf.mxu0
    %v3917 = vadd.f32 0.0, %v3916
    %v3918 = vpop.f32.mrf.mxu0
    %v3919 = vadd.f32 0.0, %v3918
    %3920 = vmatmul.bf16.gmra.mxu0 %v3885
    %v3921 = vpop.f32.mrf.mxu0
    %v3922 = vadd.f32 0.0, %v3921
    %v3923 = vpop.f32.mrf.mxu0
    %v3924 = vadd.f32 0.0, %v3923
    %3925 = vmatmul.bf16.gmra.mxu0 %v3888
    %v3926 = vpop.f32.mrf.mxu0
    %v3927 = vadd.f32 0.0, %v3926
    %v3928 = vpop.f32.mrf.mxu0
    %v3929 = vadd.f32 0.0, %v3928
    %3930 = vdwg.mxu0
    %v3931 = vsel %vm664, %v3912, -inf
    %3932 = vmax.xlane.f32.xlu0 %v3931
    %v3933 = vpop.xlane.xlu0 %3932
    %v3934 = vsel %vm664, %v3914, -inf
    %3935 = vmax.xlane.f32.xlu0 %v3934
    %v3936 = vpop.xlane.xlu0 %3935
    %v3937 = vsel %vm664, %v3917, -inf
    %3938 = vmax.xlane.f32.xlu0 %v3937
    %v3939 = vpop.xlane.xlu0 %3938
    %v3940 = vsel %vm664, %v3919, -inf
    %3941 = vmax.xlane.f32.xlu0 %v3940
    %v3942 = vpop.xlane.xlu0 %3941
    %v3943 = vsel %vm664, %v3922, -inf
    %3944 = vmax.xlane.f32.xlu0 %v3943
    %v3945 = vpop.xlane.xlu0 %3944
    %v3946 = vsel %vm664, %v3924, -inf
    %3947 = vmax.xlane.f32.xlu0 %v3946
    %v3948 = vpop.xlane.xlu0 %3947
    %v3949 = vsel %vm664, %v3927, -inf
    %3950 = vmax.xlane.f32.xlu0 %v3949
    %v3951 = vpop.xlane.xlu0 %3950
    %v3952 = vsel %vm664, %v3929, -inf
    %3953 = vmax.xlane.f32.xlu0 %v3952
    %v3954 = vpop.xlane.xlu0 %3953
    %v3955 = vsub.f32 %v3912, %v3933
    %v3956 = vsub.f32 %v3914, %v3936
    %v3957 = vsub.f32 %v3917, %v3939
    %v3958 = vsub.f32 %v3919, %v3942
    %v3959 = vsub.f32 %v3922, %v3945
    %v3960 = vsub.f32 %v3924, %v3948
    %v3961 = vsub.f32 %v3927, %v3951
    %v3962 = vsub.f32 %v3929, %v3954
    %v3963 = vmul.f32 %v3955, 1.442695
    %v3964 = vpow.pop %v3963
    %v3965 = vmul.f32 %v3956, 1.442695
    %v3966 = vpow.pop %v3965
    %v3967 = vmul.f32 %v3957, 1.442695
    %v3968 = vpow.pop %v3967
    %v3969 = vmul.f32 %v3958, 1.442695
    %v3970 = vpow.pop %v3969
    %v3971 = vmul.f32 %v3959, 1.442695
    %v3972 = vpow.pop %v3971
    %v3973 = vmul.f32 %v3960, 1.442695
    %v3974 = vpow.pop %v3973
    %v3975 = vmul.f32 %v3961, 1.442695
    %v3976 = vpow.pop %v3975
    %v3977 = vmul.f32 %v3962, 1.442695
    %v3978 = vpow.pop %v3977
    %v3979 = vsel %vm664, %v3964, 0.0
    %3980 = vadd.xlane.f32.xlu0 %v3979
    %v3981 = vpop.xlane.xlu0 %3980
    %v3982 = vsel %vm664, %v3966, 0.0
    %3983 = vadd.xlane.f32.xlu0 %v3982
    %v3984 = vpop.xlane.xlu0 %3983
    %v3985 = vsel %vm664, %v3968, 0.0
    %3986 = vadd.xlane.f32.xlu0 %v3985
    %v3987 = vpop.xlane.xlu0 %3986
    %v3988 = vsel %vm664, %v3970, 0.0
    %3989 = vadd.xlane.f32.xlu0 %v3988
    %v3990 = vpop.xlane.xlu0 %3989
    %v3991 = vsel %vm664, %v3972, 0.0
    %3992 = vadd.xlane.f32.xlu0 %v3991
    %v3993 = vpop.xlane.xlu0 %3992
    %v3994 = vsel %vm664, %v3974, 0.0
    %3995 = vadd.xlane.f32.xlu0 %v3994
    %v3996 = vpop.xlane.xlu0 %3995
    %v3997 = vsel %vm664, %v3976, 0.0
    %3998 = vadd.xlane.f32.xlu0 %v3997
    %v3999 = vpop.xlane.xlu0 %3998
    %v4000 = vsel %vm664, %v3978, 0.0
    %4001 = vadd.xlane.f32.xlu0 %v4000
    %v4002 = vpop.xlane.xlu0 %4001
    %v4003 = vrcp.pop %v3981
    %v4004 = vrcp.pop %v3984
    %v4005 = vrcp.pop %v3987
    %v4006 = vrcp.pop %v3990
    %v4007 = vrcp.pop %v3993
    %v4008 = vrcp.pop %v3996
    %v4009 = vrcp.pop %v3999
    %v4010 = vrcp.pop %v4002
    %v4011 = vmul.f32 %v3964, %v4003
    %v4012 = vmul.f32 %v3966, %v4004
    %v4013 = vmul.f32 %v3968, %v4005
    %v4014 = vmul.f32 %v3970, %v4006
    %v4015 = vmul.f32 %v3972, %v4007
    %v4016 = vmul.f32 %v3974, %v4008
    %v4017 = vmul.f32 %v3976, %v4009
    %v4018 = vmul.f32 %v3978, %v4010
    %v4019 = vpack.c.bf16 %v4012, %v4011
    %v4020 = vpack.c.bf16 %v4014, %v4013
    %v4021 = vpack.c.bf16 %v4016, %v4015
    %v4022 = vpack.c.bf16 %v4018, %v4017
    %4027 = vrot.lane.b32.xlu0 %v3648, 96
    %v4028 = vpop.permute.xlu0 %4027
    %4029 = vrot.lane.b32.xlu0 %v3649, 96
    %v4030 = vpop.permute.xlu0 %4029
    %4031 = vrot.lane.b32.xlu0 %v3650, 96
    %v4032 = vpop.permute.xlu0 %4031
    %4033 = vrot.lane.b32.xlu0 %v3651, 96
    %v4034 = vpop.permute.xlu0 %4033
    %v4040 = vsel %vm664, %v4019, 0
    %v4043 = vsel %vm664, %v4020, 0
    %v4046 = vsel %vm664, %v4021, 0
    %v4049 = vsel %vm664, %v4022, 0
    %4051 = vmatpush.bf16.msra.mxu0 0
    %4052 = vmatpush.bf16.msra.mxu0 0
    %4053 = vmatpush.bf16.msra.mxu0 0
    %4054 = vmatpush.bf16.msra.mxu0 0
    %4055 = vmatpush.bf16.msra.mxu0 %v4034
    %4056 = vmatpush.bf16.msra.mxu0 %v4032
    %4057 = vmatpush.bf16.msra.mxu0 %v4030
    %4058 = vmatpush.bf16.msra.mxu0 %v4028
    %4059 = vmatmul.bf16.gmra.mxu0 %v4040
    %v4060 = vpop.f32.mrf.mxu0
    %v4061 = vadd.f32 0.0, %v4060
    %v4062 = vpop.f32.mrf.mxu0
    %v4063 = vadd.f32 0.0, %v4062
    %4064 = vmatmul.bf16.gmra.mxu0 %v4043
    %v4065 = vpop.f32.mrf.mxu0
    %v4066 = vadd.f32 0.0, %v4065
    %v4067 = vpop.f32.mrf.mxu0
    %v4068 = vadd.f32 0.0, %v4067
    %4069 = vmatmul.bf16.gmra.mxu0 %v4046
    %v4070 = vpop.f32.mrf.mxu0
    %v4071 = vadd.f32 0.0, %v4070
    %v4072 = vpop.f32.mrf.mxu0
    %v4073 = vadd.f32 0.0, %v4072
    %4074 = vmatmul.bf16.gmra.mxu0 %v4049
    %v4075 = vpop.f32.mrf.mxu0
    %v4076 = vadd.f32 0.0, %v4075
    %v4077 = vpop.f32.mrf.mxu0
    %v4078 = vadd.f32 0.0, %v4077
    %4079 = vdwg.mxu0
    %v4080 = vpack.c.bf16 %v4061, %v4061
    %v4081 = vpack.c.bf16 %v4063, %v4063
    %v4082 = vpack.c.bf16 %v4066, %v4066
    %v4083 = vpack.c.bf16 %v4068, %v4068
    %v4084 = vpack.c.bf16 %v4071, %v4071
    %v4085 = vpack.c.bf16 %v4073, %v4073
    %v4086 = vpack.c.bf16 %v4076, %v4076
    %v4087 = vpack.c.bf16 %v4078, %v4078
    %4096 = vrot.lane.b32.xlu0 %v4080, 32
    %v4097 = vpop.permute.xlu0 %4096
    %4098 = vrot.lane.b32.xlu0 %v4081, 32
    %v4099 = vpop.permute.xlu0 %4098
    %4100 = vrot.lane.b32.xlu0 %v4082, 32
    %v4101 = vpop.permute.xlu0 %4100
    %4102 = vrot.lane.b32.xlu0 %v4083, 32
    %v4103 = vpop.permute.xlu0 %4102
    %4104 = vrot.lane.b32.xlu0 %v4084, 32
    %v4105 = vpop.permute.xlu0 %4104
    %4106 = vrot.lane.b32.xlu0 %v4085, 32
    %v4107 = vpop.permute.xlu0 %4106
    %4108 = vrot.lane.b32.xlu0 %v4086, 32
    %v4109 = vpop.permute.xlu0 %4108
    %4110 = vrot.lane.b32.xlu0 %v4087, 32
    %v4111 = vpop.permute.xlu0 %4110
    %4120 = vst.msk [vmem:[#allocation2 + $0x60] sm:$0xf] %vm1081, %v4097
    %4121 = vst.msk [vmem:[#allocation2 + $0x64] sm:$0xf] %vm1081, %v4099
    %4122 = vst.msk [vmem:[#allocation2 + $0x68] sm:$0xf] %vm1081, %v4101
    %4123 = vst.msk [vmem:[#allocation2 + $0x6c] sm:$0xf] %vm1081, %v4103
    %4124 = vst.msk [vmem:[#allocation2 + $0x70] sm:$0xf] %vm1081, %v4105
    %4125 = vst.msk [vmem:[#allocation2 + $0x74] sm:$0xf] %vm1081, %v4107
    %4126 = vst.msk [vmem:[#allocation2 + $0x78] sm:$0xf] %vm1081, %v4109
    %4127 = vst.msk [vmem:[#allocation2 + $0x7c] sm:$0xf] %vm1081, %v4111
    %4128 = vrot.lane.b32.xlu0 %v3640, 64
    %v4129 = vpop.permute.xlu0 %4128
    %4130 = vrot.lane.b32.xlu0 %v3641, 64
    %v4131 = vpop.permute.xlu0 %4130
    %4132 = vrot.lane.b32.xlu0 %v3642, 64
    %v4133 = vpop.permute.xlu0 %4132
    %4134 = vrot.lane.b32.xlu0 %v3643, 64
    %v4135 = vpop.permute.xlu0 %4134
    %4136 = vrot.lane.b32.xlu0 %v3644, 64
    %v4137 = vpop.permute.xlu0 %4136
    %4138 = vrot.lane.b32.xlu0 %v3645, 64
    %v4139 = vpop.permute.xlu0 %4138
    %4140 = vrot.lane.b32.xlu0 %v3646, 64
    %v4141 = vpop.permute.xlu0 %4140
    %4142 = vrot.lane.b32.xlu0 %v3647, 64
    %v4143 = vpop.permute.xlu0 %4142
    %v4145 = vsel %vm610, %v4129, 0
    %v4148 = vsel %vm610, %v4131, 0
    %v4151 = vsel %vm610, %v4133, 0
    %v4154 = vsel %vm610, %v4135, 0
    %v4157 = vsel %vm610, %v4137, 0
    %v4160 = vsel %vm610, %v4139, 0
    %v4163 = vsel %vm610, %v4141, 0
    %v4166 = vsel %vm610, %v4143, 0
    %4168 = vmatpush.bf16.xpose.msra.mxu0 0
    %4169 = vmatpush.bf16.xpose.msra.mxu0 0
    %4170 = vmatpush.bf16.xpose.msra.mxu0 0
    %4171 = vmatpush.bf16.xpose.msra.mxu0 0
    %4172 = vmatpush.bf16.xpose.msra.mxu0 %v4166
    %4173 = vmatpush.bf16.xpose.msra.mxu0 %v4163
    %4174 = vmatpush.bf16.xpose.msra.mxu0 %v4160
    %4175 = vmatpush.bf16.xpose.msra.mxu0 %v4157
    %4176 = vmatmul.bf16.gmra.mxu0 %v4145
    %v4177 = vpop.f32.mrf.mxu0
    %v4178 = vadd.f32 0.0, %v4177
    %v4179 = vpop.f32.mrf.mxu0
    %v4180 = vadd.f32 0.0, %v4179
    %4181 = vmatmul.bf16.gmra.mxu0 %v4148
    %v4182 = vpop.f32.mrf.mxu0
    %v4183 = vadd.f32 0.0, %v4182
    %v4184 = vpop.f32.mrf.mxu0
    %v4185 = vadd.f32 0.0, %v4184
    %4186 = vmatmul.bf16.gmra.mxu0 %v4151
    %v4187 = vpop.f32.mrf.mxu0
    %v4188 = vadd.f32 0.0, %v4187
    %v4189 = vpop.f32.mrf.mxu0
    %v4190 = vadd.f32 0.0, %v4189
    %4191 = vmatmul.bf16.gmra.mxu0 %v4154
    %v4192 = vpop.f32.mrf.mxu0
    %v4193 = vadd.f32 0.0, %v4192
    %v4194 = vpop.f32.mrf.mxu0
    %v4195 = vadd.f32 0.0, %v4194
    %4196 = vdwg.mxu0
    %v4197 = vsel %vm664, %v4178, -inf
    %4198 = vmax.xlane.f32.xlu0 %v4197
    %v4199 = vpop.xlane.xlu0 %4198
    %v4200 = vsel %vm664, %v4180, -inf
    %4201 = vmax.xlane.f32.xlu0 %v4200
    %v4202 = vpop.xlane.xlu0 %4201
    %v4203 = vsel %vm664, %v4183, -inf
    %4204 = vmax.xlane.f32.xlu0 %v4203
    %v4205 = vpop.xlane.xlu0 %4204
    %v4206 = vsel %vm664, %v4185, -inf
    %4207 = vmax.xlane.f32.xlu0 %v4206
    %v4208 = vpop.xlane.xlu0 %4207
    %v4209 = vsel %vm664, %v4188, -inf
    %4210 = vmax.xlane.f32.xlu0 %v4209
    %v4211 = vpop.xlane.xlu0 %4210
    %v4212 = vsel %vm664, %v4190, -inf
    %4213 = vmax.xlane.f32.xlu0 %v4212
    %v4214 = vpop.xlane.xlu0 %4213
    %v4215 = vsel %vm664, %v4193, -inf
    %4216 = vmax.xlane.f32.xlu0 %v4215
    %v4217 = vpop.xlane.xlu0 %4216
    %v4218 = vsel %vm664, %v4195, -inf
    %4219 = vmax.xlane.f32.xlu0 %v4218
    %v4220 = vpop.xlane.xlu0 %4219
    %v4221 = vsub.f32 %v4178, %v4199
    %v4222 = vsub.f32 %v4180, %v4202
    %v4223 = vsub.f32 %v4183, %v4205
    %v4224 = vsub.f32 %v4185, %v4208
    %v4225 = vsub.f32 %v4188, %v4211
    %v4226 = vsub.f32 %v4190, %v4214
    %v4227 = vsub.f32 %v4193, %v4217
    %v4228 = vsub.f32 %v4195, %v4220
    %v4229 = vmul.f32 %v4221, 1.442695
    %v4230 = vpow.pop %v4229
    %v4231 = vmul.f32 %v4222, 1.442695
    %v4232 = vpow.pop %v4231
    %v4233 = vmul.f32 %v4223, 1.442695
    %v4234 = vpow.pop %v4233
    %v4235 = vmul.f32 %v4224, 1.442695
    %v4236 = vpow.pop %v4235
    %v4237 = vmul.f32 %v4225, 1.442695
    %v4238 = vpow.pop %v4237
    %v4239 = vmul.f32 %v4226, 1.442695
    %v4240 = vpow.pop %v4239
    %v4241 = vmul.f32 %v4227, 1.442695
    %v4242 = vpow.pop %v4241
    %v4243 = vmul.f32 %v4228, 1.442695
    %v4244 = vpow.pop %v4243
    %v4245 = vsel %vm664, %v4230, 0.0
    %4246 = vadd.xlane.f32.xlu0 %v4245
    %v4247 = vpop.xlane.xlu0 %4246
    %v4248 = vsel %vm664, %v4232, 0.0
    %4249 = vadd.xlane.f32.xlu0 %v4248
    %v4250 = vpop.xlane.xlu0 %4249
    %v4251 = vsel %vm664, %v4234, 0.0
    %4252 = vadd.xlane.f32.xlu0 %v4251
    %v4253 = vpop.xlane.xlu0 %4252
    %v4254 = vsel %vm664, %v4236, 0.0
    %4255 = vadd.xlane.f32.xlu0 %v4254
    %v4256 = vpop.xlane.xlu0 %4255
    %v4257 = vsel %vm664, %v4238, 0.0
    %4258 = vadd.xlane.f32.xlu0 %v4257
    %v4259 = vpop.xlane.xlu0 %4258
    %v4260 = vsel %vm664, %v4240, 0.0
    %4261 = vadd.xlane.f32.xlu0 %v4260
    %v4262 = vpop.xlane.xlu0 %4261
    %v4263 = vsel %vm664, %v4242, 0.0
    %4264 = vadd.xlane.f32.xlu0 %v4263
    %v4265 = vpop.xlane.xlu0 %4264
    %v4266 = vsel %vm664, %v4244, 0.0
    %4267 = vadd.xlane.f32.xlu0 %v4266
    %v4268 = vpop.xlane.xlu0 %4267
    %v4269 = vrcp.pop %v4247
    %v4270 = vrcp.pop %v4250
    %v4271 = vrcp.pop %v4253
    %v4272 = vrcp.pop %v4256
    %v4273 = vrcp.pop %v4259
    %v4274 = vrcp.pop %v4262
    %v4275 = vrcp.pop %v4265
    %v4276 = vrcp.pop %v4268
    %v4277 = vmul.f32 %v4230, %v4269
    %v4278 = vmul.f32 %v4232, %v4270
    %v4279 = vmul.f32 %v4234, %v4271
    %v4280 = vmul.f32 %v4236, %v4272
    %v4281 = vmul.f32 %v4238, %v4273
    %v4282 = vmul.f32 %v4240, %v4274
    %v4283 = vmul.f32 %v4242, %v4275
    %v4284 = vmul.f32 %v4244, %v4276
    %v4285 = vpack.c.bf16 %v4278, %v4277
    %v4286 = vpack.c.bf16 %v4280, %v4279
    %v4287 = vpack.c.bf16 %v4282, %v4281
    %v4288 = vpack.c.bf16 %v4284, %v4283
    %4289 = vrot.lane.b32.xlu0 %v3648, 64
    %v4290 = vpop.permute.xlu0 %4289
    %4291 = vrot.lane.b32.xlu0 %v3649, 64
    %v4292 = vpop.permute.xlu0 %4291
    %4293 = vrot.lane.b32.xlu0 %v3650, 64
    %v4294 = vpop.permute.xlu0 %4293
    %4295 = vrot.lane.b32.xlu0 %v3651, 64
    %v4296 = vpop.permute.xlu0 %4295
    %v4302 = vsel %vm664, %v4285, 0
    %v4305 = vsel %vm664, %v4286, 0
    %v4308 = vsel %vm664, %v4287, 0
    %v4311 = vsel %vm664, %v4288, 0
    %4313 = vmatpush.bf16.msra.mxu0 0
    %4314 = vmatpush.bf16.msra.mxu0 0
    %4315 = vmatpush.bf16.msra.mxu0 0
    %4316 = vmatpush.bf16.msra.mxu0 0
    %4317 = vmatpush.bf16.msra.mxu0 %v4296
    %4318 = vmatpush.bf16.msra.mxu0 %v4294
    %4319 = vmatpush.bf16.msra.mxu0 %v4292
    %4320 = vmatpush.bf16.msra.mxu0 %v4290
    %4321 = vmatmul.bf16.gmra.mxu0 %v4302
    %v4322 = vpop.f32.mrf.mxu0
    %v4323 = vadd.f32 0.0, %v4322
    %v4324 = vpop.f32.mrf.mxu0
    %v4325 = vadd.f32 0.0, %v4324
    %4326 = vmatmul.bf16.gmra.mxu0 %v4305
    %v4327 = vpop.f32.mrf.mxu0
    %v4328 = vadd.f32 0.0, %v4327
    %v4329 = vpop.f32.mrf.mxu0
    %v4330 = vadd.f32 0.0, %v4329
    %4331 = vmatmul.bf16.gmra.mxu0 %v4308
    %v4332 = vpop.f32.mrf.mxu0
    %v4333 = vadd.f32 0.0, %v4332
    %v4334 = vpop.f32.mrf.mxu0
    %v4335 = vadd.f32 0.0, %v4334
    %4336 = vmatmul.bf16.gmra.mxu0 %v4311
    %v4337 = vpop.f32.mrf.mxu0
    %v4338 = vadd.f32 0.0, %v4337
    %v4339 = vpop.f32.mrf.mxu0
    %v4340 = vadd.f32 0.0, %v4339
    %4341 = vdwg.mxu0
    %v4342 = vpack.c.bf16 %v4323, %v4323
    %v4343 = vpack.c.bf16 %v4325, %v4325
    %v4344 = vpack.c.bf16 %v4328, %v4328
    %v4345 = vpack.c.bf16 %v4330, %v4330
    %v4346 = vpack.c.bf16 %v4333, %v4333
    %v4347 = vpack.c.bf16 %v4335, %v4335
    %v4348 = vpack.c.bf16 %v4338, %v4338
    %v4349 = vpack.c.bf16 %v4340, %v4340
    %4358 = vrot.lane.b32.xlu0 %v4342, 64
    %v4359 = vpop.permute.xlu0 %4358
    %4360 = vrot.lane.b32.xlu0 %v4343, 64
    %v4361 = vpop.permute.xlu0 %4360
    %4362 = vrot.lane.b32.xlu0 %v4344, 64
    %v4363 = vpop.permute.xlu0 %4362
    %4364 = vrot.lane.b32.xlu0 %v4345, 64
    %v4365 = vpop.permute.xlu0 %4364
    %4366 = vrot.lane.b32.xlu0 %v4346, 64
    %v4367 = vpop.permute.xlu0 %4366
    %4368 = vrot.lane.b32.xlu0 %v4347, 64
    %v4369 = vpop.permute.xlu0 %4368
    %4370 = vrot.lane.b32.xlu0 %v4348, 64
    %v4371 = vpop.permute.xlu0 %4370
    %4372 = vrot.lane.b32.xlu0 %v4349, 64
    %v4373 = vpop.permute.xlu0 %4372
    %4382 = vst.msk [vmem:[#allocation2 + $0x60] sm:$0xf] %vm1344, %v4359
    %4383 = vst.msk [vmem:[#allocation2 + $0x64] sm:$0xf] %vm1344, %v4361
    %4384 = vst.msk [vmem:[#allocation2 + $0x68] sm:$0xf] %vm1344, %v4363
    %4385 = vst.msk [vmem:[#allocation2 + $0x6c] sm:$0xf] %vm1344, %v4365
    %4386 = vst.msk [vmem:[#allocation2 + $0x70] sm:$0xf] %vm1344, %v4367
    %4387 = vst.msk [vmem:[#allocation2 + $0x74] sm:$0xf] %vm1344, %v4369
    %4388 = vst.msk [vmem:[#allocation2 + $0x78] sm:$0xf] %vm1344, %v4371
    %4389 = vst.msk [vmem:[#allocation2 + $0x7c] sm:$0xf] %vm1344, %v4373
    %4390 = vrot.lane.b32.xlu0 %v3640, 32
    %v4391 = vpop.permute.xlu0 %4390
    %4392 = vrot.lane.b32.xlu0 %v3641, 32
    %v4393 = vpop.permute.xlu0 %4392
    %4394 = vrot.lane.b32.xlu0 %v3642, 32
    %v4395 = vpop.permute.xlu0 %4394
    %4396 = vrot.lane.b32.xlu0 %v3643, 32
    %v4397 = vpop.permute.xlu0 %4396
    %4398 = vrot.lane.b32.xlu0 %v3644, 32
    %v4399 = vpop.permute.xlu0 %4398
    %4400 = vrot.lane.b32.xlu0 %v3645, 32
    %v4401 = vpop.permute.xlu0 %4400
    %4402 = vrot.lane.b32.xlu0 %v3646, 32
    %v4403 = vpop.permute.xlu0 %4402
    %4404 = vrot.lane.b32.xlu0 %v3647, 32
    %v4405 = vpop.permute.xlu0 %4404
    %v4407 = vsel %vm610, %v4391, 0
    %v4410 = vsel %vm610, %v4393, 0
    %v4413 = vsel %vm610, %v4395, 0
    %v4416 = vsel %vm610, %v4397, 0
    %v4419 = vsel %vm610, %v4399, 0
    %v4422 = vsel %vm610, %v4401, 0
    %v4425 = vsel %vm610, %v4403, 0
    %v4428 = vsel %vm610, %v4405, 0
    %4430 = vmatpush.bf16.xpose.msra.mxu0 0
    %4431 = vmatpush.bf16.xpose.msra.mxu0 0
    %4432 = vmatpush.bf16.xpose.msra.mxu0 0
    %4433 = vmatpush.bf16.xpose.msra.mxu0 0
    %4434 = vmatpush.bf16.xpose.msra.mxu0 %v4428
    %4435 = vmatpush.bf16.xpose.msra.mxu0 %v4425
    %4436 = vmatpush.bf16.xpose.msra.mxu0 %v4422
    %4437 = vmatpush.bf16.xpose.msra.mxu0 %v4419
    %4438 = vmatmul.bf16.gmra.mxu0 %v4407
    %v4439 = vpop.f32.mrf.mxu0
    %v4440 = vadd.f32 0.0, %v4439
    %v4441 = vpop.f32.mrf.mxu0
    %v4442 = vadd.f32 0.0, %v4441
    %4443 = vmatmul.bf16.gmra.mxu0 %v4410
    %v4444 = vpop.f32.mrf.mxu0
    %v4445 = vadd.f32 0.0, %v4444
    %v4446 = vpop.f32.mrf.mxu0
    %v4447 = vadd.f32 0.0, %v4446
    %4448 = vmatmul.bf16.gmra.mxu0 %v4413
    %v4449 = vpop.f32.mrf.mxu0
    %v4450 = vadd.f32 0.0, %v4449
    %v4451 = vpop.f32.mrf.mxu0
    %v4452 = vadd.f32 0.0, %v4451
    %4453 = vmatmul.bf16.gmra.mxu0 %v4416
    %v4454 = vpop.f32.mrf.mxu0
    %v4455 = vadd.f32 0.0, %v4454
    %v4456 = vpop.f32.mrf.mxu0
    %v4457 = vadd.f32 0.0, %v4456
    %4458 = vdwg.mxu0
    %v4459 = vsel %vm664, %v4440, -inf
    %4460 = vmax.xlane.f32.xlu0 %v4459
    %v4461 = vpop.xlane.xlu0 %4460
    %v4462 = vsel %vm664, %v4442, -inf
    %4463 = vmax.xlane.f32.xlu0 %v4462
    %v4464 = vpop.xlane.xlu0 %4463
    %v4465 = vsel %vm664, %v4445, -inf
    %4466 = vmax.xlane.f32.xlu0 %v4465
    %v4467 = vpop.xlane.xlu0 %4466
    %v4468 = vsel %vm664, %v4447, -inf
    %4469 = vmax.xlane.f32.xlu0 %v4468
    %v4470 = vpop.xlane.xlu0 %4469
    %v4471 = vsel %vm664, %v4450, -inf
    %4472 = vmax.xlane.f32.xlu0 %v4471
    %v4473 = vpop.xlane.xlu0 %4472
    %v4474 = vsel %vm664, %v4452, -inf
    %4475 = vmax.xlane.f32.xlu0 %v4474
    %v4476 = vpop.xlane.xlu0 %4475
    %v4477 = vsel %vm664, %v4455, -inf
    %4478 = vmax.xlane.f32.xlu0 %v4477
    %v4479 = vpop.xlane.xlu0 %4478
    %v4480 = vsel %vm664, %v4457, -inf
    %4481 = vmax.xlane.f32.xlu0 %v4480
    %v4482 = vpop.xlane.xlu0 %4481
    %v4483 = vsub.f32 %v4440, %v4461
    %v4484 = vsub.f32 %v4442, %v4464
    %v4485 = vsub.f32 %v4445, %v4467
    %v4486 = vsub.f32 %v4447, %v4470
    %v4487 = vsub.f32 %v4450, %v4473
    %v4488 = vsub.f32 %v4452, %v4476
    %v4489 = vsub.f32 %v4455, %v4479
    %v4490 = vsub.f32 %v4457, %v4482
    %v4491 = vmul.f32 %v4483, 1.442695
    %v4492 = vpow.pop %v4491
    %v4493 = vmul.f32 %v4484, 1.442695
    %v4494 = vpow.pop %v4493
    %v4495 = vmul.f32 %v4485, 1.442695
    %v4496 = vpow.pop %v4495
    %v4497 = vmul.f32 %v4486, 1.442695
    %v4498 = vpow.pop %v4497
    %v4499 = vmul.f32 %v4487, 1.442695
    %v4500 = vpow.pop %v4499
    %v4501 = vmul.f32 %v4488, 1.442695
    %v4502 = vpow.pop %v4501
    %v4503 = vmul.f32 %v4489, 1.442695
    %v4504 = vpow.pop %v4503
    %v4505 = vmul.f32 %v4490, 1.442695
    %v4506 = vpow.pop %v4505
    %v4507 = vsel %vm664, %v4492, 0.0
    %4508 = vadd.xlane.f32.xlu0 %v4507
    %v4509 = vpop.xlane.xlu0 %4508
    %v4510 = vsel %vm664, %v4494, 0.0
    %4511 = vadd.xlane.f32.xlu0 %v4510
    %v4512 = vpop.xlane.xlu0 %4511
    %v4513 = vsel %vm664, %v4496, 0.0
    %4514 = vadd.xlane.f32.xlu0 %v4513
    %v4515 = vpop.xlane.xlu0 %4514
    %v4516 = vsel %vm664, %v4498, 0.0
    %4517 = vadd.xlane.f32.xlu0 %v4516
    %v4518 = vpop.xlane.xlu0 %4517
    %v4519 = vsel %vm664, %v4500, 0.0
    %4520 = vadd.xlane.f32.xlu0 %v4519
    %v4521 = vpop.xlane.xlu0 %4520
    %v4522 = vsel %vm664, %v4502, 0.0
    %4523 = vadd.xlane.f32.xlu0 %v4522
    %v4524 = vpop.xlane.xlu0 %4523
    %v4525 = vsel %vm664, %v4504, 0.0
    %4526 = vadd.xlane.f32.xlu0 %v4525
    %v4527 = vpop.xlane.xlu0 %4526
    %v4528 = vsel %vm664, %v4506, 0.0
    %4529 = vadd.xlane.f32.xlu0 %v4528
    %v4530 = vpop.xlane.xlu0 %4529
    %v4531 = vrcp.pop %v4509
    %v4532 = vrcp.pop %v4512
    %v4533 = vrcp.pop %v4515
    %v4534 = vrcp.pop %v4518
    %v4535 = vrcp.pop %v4521
    %v4536 = vrcp.pop %v4524
    %v4537 = vrcp.pop %v4527
    %v4538 = vrcp.pop %v4530
    %v4539 = vmul.f32 %v4492, %v4531
    %v4540 = vmul.f32 %v4494, %v4532
    %v4541 = vmul.f32 %v4496, %v4533
    %v4542 = vmul.f32 %v4498, %v4534
    %v4543 = vmul.f32 %v4500, %v4535
    %v4544 = vmul.f32 %v4502, %v4536
    %v4545 = vmul.f32 %v4504, %v4537
    %v4546 = vmul.f32 %v4506, %v4538
    %v4547 = vpack.c.bf16 %v4540, %v4539
    %v4548 = vpack.c.bf16 %v4542, %v4541
    %v4549 = vpack.c.bf16 %v4544, %v4543
    %v4550 = vpack.c.bf16 %v4546, %v4545
    %4551 = vrot.lane.b32.xlu0 %v3648, 32
    %v4552 = vpop.permute.xlu0 %4551
    %4553 = vrot.lane.b32.xlu0 %v3649, 32
    %v4554 = vpop.permute.xlu0 %4553
    %4555 = vrot.lane.b32.xlu0 %v3650, 32
    %v4556 = vpop.permute.xlu0 %4555
    %4557 = vrot.lane.b32.xlu0 %v3651, 32
    %v4558 = vpop.permute.xlu0 %4557
    %v4564 = vsel %vm664, %v4547, 0
    %v4567 = vsel %vm664, %v4548, 0
    %v4570 = vsel %vm664, %v4549, 0
    %v4573 = vsel %vm664, %v4550, 0
    %4575 = vmatpush.bf16.msra.mxu0 0
    %4576 = vmatpush.bf16.msra.mxu0 0
    %4577 = vmatpush.bf16.msra.mxu0 0
    %4578 = vmatpush.bf16.msra.mxu0 0
    %4579 = vmatpush.bf16.msra.mxu0 %v4558
    %4580 = vmatpush.bf16.msra.mxu0 %v4556
    %4581 = vmatpush.bf16.msra.mxu0 %v4554
    %4582 = vmatpush.bf16.msra.mxu0 %v4552
    %4583 = vmatmul.bf16.gmra.mxu0 %v4564
    %v4584 = vpop.f32.mrf.mxu0
    %v4585 = vadd.f32 0.0, %v4584
    %v4586 = vpop.f32.mrf.mxu0
    %v4587 = vadd.f32 0.0, %v4586
    %4588 = vmatmul.bf16.gmra.mxu0 %v4567
    %v4589 = vpop.f32.mrf.mxu0
    %v4590 = vadd.f32 0.0, %v4589
    %v4591 = vpop.f32.mrf.mxu0
    %v4592 = vadd.f32 0.0, %v4591
    %4593 = vmatmul.bf16.gmra.mxu0 %v4570
    %v4594 = vpop.f32.mrf.mxu0
    %v4595 = vadd.f32 0.0, %v4594
    %v4596 = vpop.f32.mrf.mxu0
    %v4597 = vadd.f32 0.0, %v4596
    %4598 = vmatmul.bf16.gmra.mxu0 %v4573
    %v4599 = vpop.f32.mrf.mxu0
    %v4600 = vadd.f32 0.0, %v4599
    %v4601 = vpop.f32.mrf.mxu0
    %v4602 = vadd.f32 0.0, %v4601
    %4603 = vdwg.mxu0
    %v4604 = vpack.c.bf16 %v4585, %v4585
    %v4605 = vpack.c.bf16 %v4587, %v4587
    %v4606 = vpack.c.bf16 %v4590, %v4590
    %v4607 = vpack.c.bf16 %v4592, %v4592
    %v4608 = vpack.c.bf16 %v4595, %v4595
    %v4609 = vpack.c.bf16 %v4597, %v4597
    %v4610 = vpack.c.bf16 %v4600, %v4600
    %v4611 = vpack.c.bf16 %v4602, %v4602
    %4620 = vrot.lane.b32.xlu0 %v4604, 96
    %v4621 = vpop.permute.xlu0 %4620
    %4622 = vrot.lane.b32.xlu0 %v4605, 96
    %v4623 = vpop.permute.xlu0 %4622
    %4624 = vrot.lane.b32.xlu0 %v4606, 96
    %v4625 = vpop.permute.xlu0 %4624
    %4626 = vrot.lane.b32.xlu0 %v4607, 96
    %v4627 = vpop.permute.xlu0 %4626
    %4628 = vrot.lane.b32.xlu0 %v4608, 96
    %v4629 = vpop.permute.xlu0 %4628
    %4630 = vrot.lane.b32.xlu0 %v4609, 96
    %v4631 = vpop.permute.xlu0 %4630
    %4632 = vrot.lane.b32.xlu0 %v4610, 96
    %v4633 = vpop.permute.xlu0 %4632
    %4634 = vrot.lane.b32.xlu0 %v4611, 96
    %v4635 = vpop.permute.xlu0 %4634
    %4644 = vst.msk [vmem:[#allocation2 + $0x60] sm:$0xf] %vm1607, %v4621
    %4645 = vst.msk [vmem:[#allocation2 + $0x64] sm:$0xf] %vm1607, %v4623
    %4646 = vst.msk [vmem:[#allocation2 + $0x68] sm:$0xf] %vm1607, %v4625
    %4647 = vst.msk [vmem:[#allocation2 + $0x6c] sm:$0xf] %vm1607, %v4627
    %4648 = vst.msk [vmem:[#allocation2 + $0x70] sm:$0xf] %vm1607, %v4629
    %4649 = vst.msk [vmem:[#allocation2 + $0x74] sm:$0xf] %vm1607, %v4631
    %4650 = vst.msk [vmem:[#allocation2 + $0x78] sm:$0xf] %vm1607, %v4633
    %4651 = vst.msk [vmem:[#allocation2 + $0x7c] sm:$0xf] %vm1607, %v4635
    %v4652 = vld [vmem:[#allocation2] sm:$0xf]
    %v4653 = vld [vmem:[#allocation2 + $0x4] sm:$0xf]
    %v4654 = vld [vmem:[#allocation2 + $0x8] sm:$0xf]
    %v4655 = vld [vmem:[#allocation2 + $0xc] sm:$0xf]
    %v4656 = vld [vmem:[#allocation2 + $0x10] sm:$0xf]
    %v4657 = vld [vmem:[#allocation2 + $0x14] sm:$0xf]
    %v4658 = vld [vmem:[#allocation2 + $0x18] sm:$0xf]
    %v4659 = vld [vmem:[#allocation2 + $0x1c] sm:$0xf]
    %v4660 = vld [vmem:[#allocation2 + $0x20] sm:$0xf]
    %v4661 = vld [vmem:[#allocation2 + $0x24] sm:$0xf]
    %v4662 = vld [vmem:[#allocation2 + $0x28] sm:$0xf]
    %v4663 = vld [vmem:[#allocation2 + $0x2c] sm:$0xf]
    %v4664 = vld [vmem:[#allocation2 + $0x30] sm:$0xf]
    %v4665 = vld [vmem:[#allocation2 + $0x34] sm:$0xf]
    %v4666 = vld [vmem:[#allocation2 + $0x38] sm:$0xf]
    %v4667 = vld [vmem:[#allocation2 + $0x3c] sm:$0xf]
    %v4668 = vld [vmem:[#allocation2 + $0x40] sm:$0xf]
    %v4669 = vld [vmem:[#allocation2 + $0x44] sm:$0xf]
    %v4670 = vld [vmem:[#allocation2 + $0x48] sm:$0xf]
    %v4671 = vld [vmem:[#allocation2 + $0x4c] sm:$0xf]
    %v4672 = vld [vmem:[#allocation2 + $0x50] sm:$0xf]
    %v4673 = vld [vmem:[#allocation2 + $0x54] sm:$0xf]
    %v4674 = vld [vmem:[#allocation2 + $0x58] sm:$0xf]
    %v4675 = vld [vmem:[#allocation2 + $0x5c] sm:$0xf]
    %v4676 = vld [vmem:[#allocation2 + $0x60] sm:$0xf]
    %v4677 = vld [vmem:[#allocation2 + $0x64] sm:$0xf]
    %v4678 = vld [vmem:[#allocation2 + $0x68] sm:$0xf]
    %v4679 = vld [vmem:[#allocation2 + $0x6c] sm:$0xf]
    %v4680 = vld [vmem:[#allocation2 + $0x70] sm:$0xf]
    %v4681 = vld [vmem:[#allocation2 + $0x74] sm:$0xf]
    %v4682 = vld [vmem:[#allocation2 + $0x78] sm:$0xf]
    %v4683 = vld [vmem:[#allocation2 + $0x7c] sm:$0xf]
    %v4684 = vld [vmem:[#allocation9] sm:$0xf]
    %v4685 = vld [vmem:[#allocation9 + $0x4] sm:$0xf]
    %v4686 = vld [vmem:[#allocation9 + $0x8] sm:$0xf]
    %v4687 = vld [vmem:[#allocation9 + $0xc] sm:$0xf]
    %v4688 = vld [vmem:[#allocation9 + $0x10] sm:$0xf]
    %v4689 = vld [vmem:[#allocation9 + $0x14] sm:$0xf]
    %v4690 = vld [vmem:[#allocation9 + $0x18] sm:$0xf]
    %v4691 = vld [vmem:[#allocation9 + $0x1c] sm:$0xf]
    %v4692 = vld [vmem:[#allocation9 + $0x20] sm:$0xf]
    %v4693 = vld [vmem:[#allocation9 + $0x24] sm:$0xf]
    %v4694 = vld [vmem:[#allocation9 + $0x28] sm:$0xf]
    %v4695 = vld [vmem:[#allocation9 + $0x2c] sm:$0xf]
    %v4696 = vld [vmem:[#allocation9 + $0x30] sm:$0xf]
    %v4697 = vld [vmem:[#allocation9 + $0x34] sm:$0xf]
    %v4698 = vld [vmem:[#allocation9 + $0x38] sm:$0xf]
    %v4699 = vld [vmem:[#allocation9 + $0x3c] sm:$0xf]
    %v4700 = vld [vmem:[%s4] sm:$0x1]
    %v4702 = vperm.slane %v4700, 0
    %v4736 = vunpack.c.l.b16 %v4652
    %v4737 = vunpack.c.l.b16 %v4653
    %v4738 = vunpack.c.l.b16 %v4654
    %v4739 = vunpack.c.l.b16 %v4655
    %v4740 = vunpack.c.l.b16 %v4656
    %v4741 = vunpack.c.l.b16 %v4657
    %v4742 = vunpack.c.l.b16 %v4658
    %v4743 = vunpack.c.l.b16 %v4659
    %v4744 = vunpack.c.l.b16 %v4660
    %v4745 = vunpack.c.l.b16 %v4661
    %v4746 = vunpack.c.l.b16 %v4662
    %v4747 = vunpack.c.l.b16 %v4663
    %v4748 = vunpack.c.l.b16 %v4664
    %v4749 = vunpack.c.l.b16 %v4665
    %v4750 = vunpack.c.l.b16 %v4666
    %v4751 = vunpack.c.l.b16 %v4667
    %v4752 = vunpack.c.l.b16 %v4668
    %v4753 = vunpack.c.l.b16 %v4669
    %v4754 = vunpack.c.l.b16 %v4670
    %v4755 = vunpack.c.l.b16 %v4671
    %v4756 = vunpack.c.l.b16 %v4672
    %v4757 = vunpack.c.l.b16 %v4673
    %v4758 = vunpack.c.l.b16 %v4674
    %v4759 = vunpack.c.l.b16 %v4675
    %v4760 = vunpack.c.l.b16 %v4676
    %v4761 = vunpack.c.l.b16 %v4677
    %v4762 = vunpack.c.l.b16 %v4678
    %v4763 = vunpack.c.l.b16 %v4679
    %v4764 = vunpack.c.l.b16 %v4680
    %v4765 = vunpack.c.l.b16 %v4681
    %v4766 = vunpack.c.l.b16 %v4682
    %v4767 = vunpack.c.l.b16 %v4683
    %v4768 = vpack.c.b16 %v4737, %v4736
    %v4769 = vpack.c.b16 %v4739, %v4738
    %v4770 = vpack.c.b16 %v4741, %v4740
    %v4771 = vpack.c.b16 %v4743, %v4742
    %v4772 = vpack.c.b16 %v4745, %v4744
    %v4773 = vpack.c.b16 %v4747, %v4746
    %v4774 = vpack.c.b16 %v4749, %v4748
    %v4775 = vpack.c.b16 %v4751, %v4750
    %v4776 = vpack.c.b16 %v4753, %v4752
    %v4777 = vpack.c.b16 %v4755, %v4754
    %v4778 = vpack.c.b16 %v4757, %v4756
    %v4779 = vpack.c.b16 %v4759, %v4758
    %v4780 = vpack.c.b16 %v4761, %v4760
    %v4781 = vpack.c.b16 %v4763, %v4762
    %v4782 = vpack.c.b16 %v4765, %v4764
    %v4783 = vpack.c.b16 %v4767, %v4766
    %v4816 = vunpack.c.l.b16 %v4684
    %v4817 = vunpack.c.l.b16 %v4685
    %v4818 = vunpack.c.l.b16 %v4686
    %v4819 = vunpack.c.l.b16 %v4687
    %v4820 = vunpack.c.l.b16 %v4688
    %v4821 = vunpack.c.l.b16 %v4689
    %v4822 = vunpack.c.l.b16 %v4690
    %v4823 = vunpack.c.l.b16 %v4691
    %v4824 = vunpack.c.l.b16 %v4692
    %v4825 = vunpack.c.l.b16 %v4693
    %v4826 = vunpack.c.l.b16 %v4694
    %v4827 = vunpack.c.l.b16 %v4695
    %v4828 = vunpack.c.l.b16 %v4696
    %v4829 = vunpack.c.l.b16 %v4697
    %v4830 = vunpack.c.l.b16 %v4698
    %v4831 = vunpack.c.l.b16 %v4699
    %v4832 = vpack.c.b16 %v4817, %v4816
    %v4833 = vpack.c.b16 %v4819, %v4818
    %v4834 = vpack.c.b16 %v4821, %v4820
    %v4835 = vpack.c.b16 %v4823, %v4822
    %v4836 = vpack.c.b16 %v4825, %v4824
    %v4837 = vpack.c.b16 %v4827, %v4826
    %v4838 = vpack.c.b16 %v4829, %v4828
    %v4839 = vpack.c.b16 %v4831, %v4830
    %4848 = vmatpush.bf16.msra.mxu0 %v4839
    %4849 = vmatpush.bf16.msra.mxu0 %v4838
    %4850 = vmatpush.bf16.msra.mxu0 %v4837
    %4851 = vmatpush.bf16.msra.mxu0 %v4836
    %4852 = vmatpush.bf16.msra.mxu0 %v4835
    %4853 = vmatpush.bf16.msra.mxu0 %v4834
    %4854 = vmatpush.bf16.msra.mxu0 %v4833
    %4855 = vmatpush.bf16.msra.mxu0 %v4832
    %4856 = vmatmul.bf16.gmra.mxu0 %v4768
    %v4857 = vpop.f32.mrf.mxu0
    %v4858 = vadd.f32 %v4702, %v4857
    %v4859 = vpop.f32.mrf.mxu0
    %v4860 = vadd.f32 %v4702, %v4859
    %4861 = vmatmul.bf16.gmra.mxu0 %v4769
    %v4862 = vpop.f32.mrf.mxu0
    %v4863 = vadd.f32 %v4702, %v4862
    %v4864 = vpop.f32.mrf.mxu0
    %v4865 = vadd.f32 %v4702, %v4864
    %4866 = vmatmul.bf16.gmra.mxu0 %v4770
    %v4867 = vpop.f32.mrf.mxu0
    %v4868 = vadd.f32 %v4702, %v4867
    %v4869 = vpop.f32.mrf.mxu0
    %v4870 = vadd.f32 %v4702, %v4869
    %4871 = vmatmul.bf16.gmra.mxu0 %v4771
    %v4872 = vpop.f32.mrf.mxu0
    %v4873 = vadd.f32 %v4702, %v4872
    %v4874 = vpop.f32.mrf.mxu0
    %v4875 = vadd.f32 %v4702, %v4874
    %4876 = vmatmul.bf16.gmra.mxu0 %v4772
    %v4877 = vpop.f32.mrf.mxu0
    %v4878 = vadd.f32 %v4702, %v4877
    %v4879 = vpop.f32.mrf.mxu0
    %v4880 = vadd.f32 %v4702, %v4879
    %4881 = vmatmul.bf16.gmra.mxu0 %v4773
    %v4882 = vpop.f32.mrf.mxu0
    %v4883 = vadd.f32 %v4702, %v4882
    %v4884 = vpop.f32.mrf.mxu0
    %v4885 = vadd.f32 %v4702, %v4884
    %4886 = vmatmul.bf16.gmra.mxu0 %v4774
    %v4887 = vpop.f32.mrf.mxu0
    %v4888 = vadd.f32 %v4702, %v4887
    %v4889 = vpop.f32.mrf.mxu0
    %v4890 = vadd.f32 %v4702, %v4889
    %4891 = vmatmul.bf16.gmra.mxu0 %v4775
    %v4892 = vpop.f32.mrf.mxu0
    %v4893 = vadd.f32 %v4702, %v4892
    %v4894 = vpop.f32.mrf.mxu0
    %v4895 = vadd.f32 %v4702, %v4894
    %4896 = vmatmul.bf16.gmra.mxu0 %v4776
    %v4897 = vpop.f32.mrf.mxu0
    %v4898 = vadd.f32 %v4702, %v4897
    %v4899 = vpop.f32.mrf.mxu0
    %v4900 = vadd.f32 %v4702, %v4899
    %4901 = vmatmul.bf16.gmra.mxu0 %v4777
    %v4902 = vpop.f32.mrf.mxu0
    %v4903 = vadd.f32 %v4702, %v4902
    %v4904 = vpop.f32.mrf.mxu0
    %v4905 = vadd.f32 %v4702, %v4904
    %4906 = vmatmul.bf16.gmra.mxu0 %v4778
    %v4907 = vpop.f32.mrf.mxu0
    %v4908 = vadd.f32 %v4702, %v4907
    %v4909 = vpop.f32.mrf.mxu0
    %v4910 = vadd.f32 %v4702, %v4909
    %4911 = vmatmul.bf16.gmra.mxu0 %v4779
    %v4912 = vpop.f32.mrf.mxu0
    %v4913 = vadd.f32 %v4702, %v4912
    %v4914 = vpop.f32.mrf.mxu0
    %v4915 = vadd.f32 %v4702, %v4914
    %4916 = vmatmul.bf16.gmra.mxu0 %v4780
    %v4917 = vpop.f32.mrf.mxu0
    %v4918 = vadd.f32 %v4702, %v4917
    %v4919 = vpop.f32.mrf.mxu0
    %v4920 = vadd.f32 %v4702, %v4919
    %4921 = vmatmul.bf16.gmra.mxu0 %v4781
    %v4922 = vpop.f32.mrf.mxu0
    %v4923 = vadd.f32 %v4702, %v4922
    %v4924 = vpop.f32.mrf.mxu0
    %v4925 = vadd.f32 %v4702, %v4924
    %4926 = vmatmul.bf16.gmra.mxu0 %v4782
    %v4927 = vpop.f32.mrf.mxu0
    %v4928 = vadd.f32 %v4702, %v4927
    %v4929 = vpop.f32.mrf.mxu0
    %v4930 = vadd.f32 %v4702, %v4929
    %4931 = vmatmul.bf16.gmra.mxu0 %v4783
    %v4932 = vpop.f32.mrf.mxu0
    %v4933 = vadd.f32 %v4702, %v4932
    %v4934 = vpop.f32.mrf.mxu0
    %v4935 = vadd.f32 %v4702, %v4934
    %4936 = vdwg.mxu0
    %4937 = vst [vmem:[#allocation11] sm:$0xff] %v4858
    %4938 = vst [vmem:[#allocation11 + $0x8] sm:$0xff] %v4860
    %4939 = vst [vmem:[#allocation11 + $0x10] sm:$0xff] %v4863
    %4940 = vst [vmem:[#allocation11 + $0x18] sm:$0xff] %v4865
    %4941 = vst [vmem:[#allocation11 + $0x20] sm:$0xff] %v4868
    %4942 = vst [vmem:[#allocation11 + $0x28] sm:$0xff] %v4870
    %4943 = vst [vmem:[#allocation11 + $0x30] sm:$0xff] %v4873
    %4944 = vst [vmem:[#allocation11 + $0x38] sm:$0xff] %v4875
    %4945 = vst [vmem:[#allocation11 + $0x40] sm:$0xff] %v4878
    %4946 = vst [vmem:[#allocation11 + $0x48] sm:$0xff] %v4880
    %4947 = vst [vmem:[#allocation11 + $0x50] sm:$0xff] %v4883
    %4948 = vst [vmem:[#allocation11 + $0x58] sm:$0xff] %v4885
    %4949 = vst [vmem:[#allocation11 + $0x60] sm:$0xff] %v4888
    %4950 = vst [vmem:[#allocation11 + $0x68] sm:$0xff] %v4890
    %4951 = vst [vmem:[#allocation11 + $0x70] sm:$0xff] %v4893
    %4952 = vst [vmem:[#allocation11 + $0x78] sm:$0xff] %v4895
    %4953 = vst [vmem:[#allocation11 + $0x80] sm:$0xff] %v4898
    %4954 = vst [vmem:[#allocation11 + $0x88] sm:$0xff] %v4900
    %4955 = vst [vmem:[#allocation11 + $0x90] sm:$0xff] %v4903
    %4956 = vst [vmem:[#allocation11 + $0x98] sm:$0xff] %v4905
    %4957 = vst [vmem:[#allocation11 + $0xa0] sm:$0xff] %v4908
    %4958 = vst [vmem:[#allocation11 + $0xa8] sm:$0xff] %v4910
    %4959 = vst [vmem:[#allocation11 + $0xb0] sm:$0xff] %v4913
    %4960 = vst [vmem:[#allocation11 + $0xb8] sm:$0xff] %v4915
    %4961 = vst [vmem:[#allocation11 + $0xc0] sm:$0xff] %v4918
    %4962 = vst [vmem:[#allocation11 + $0xc8] sm:$0xff] %v4920
    %4963 = vst [vmem:[#allocation11 + $0xd0] sm:$0xff] %v4923
    %4964 = vst [vmem:[#allocation11 + $0xd8] sm:$0xff] %v4925
    %4965 = vst [vmem:[#allocation11 + $0xe0] sm:$0xff] %v4928
    %4966 = vst [vmem:[#allocation11 + $0xe8] sm:$0xff] %v4930
    %4967 = vst [vmem:[#allocation11 + $0xf0] sm:$0xff] %v4933
    %4968 = vst [vmem:[#allocation11 + $0xf8] sm:$0xff] %v4935
    // Predicated region
    $region38: #{tpu_custom_call.1} parent=1 // pred_check
      _
    $region39: #{tpu_custom_call.1} parent=1 // pred_check_branch
      %4970 = sbr.rel (0) target = $region41
    $region40: #{tpu_custom_call.1} parent=1 // pred_region
      %4972 = vsyncadd [#allocation5], 0
      %s4973 = sshll.u32 [#allocation11], 4
      %s4974 = int_to_ptr.vmem [resolvable:$true] %s4973
      %s4975 = sshll.u32 %s5, 4
      %s4976 = int_to_ptr.hbm [resolvable:$true] %s4975
      %4981 = dma.vmem_to_hbm [thread:$0]  %s4974, 4096, %s4976, [#allocation5], 128, 128, 8
    $region41: #{tpu_custom_call.1} parent=1 // pred_fallthru
      _
    // Predicated region
    $region42: #{tpu_custom_call.1} parent=1 // pred_check
      _
    $region43: #{tpu_custom_call.1} parent=1 // pred_check_branch
      %4983 = sbr.rel (0) target = $region45
    $region44: #{tpu_custom_call.1} parent=1 // pred_region
      %4985 = dma.done [#allocation5], 4096
    $region45: #{tpu_custom_call.1} parent=1 // pred_fallthru
      _
    %4986 = vsyncpa [#allocation4], 1
    %4987 = vsyncpa [#allocation7], 1
    %4988 = vsyncpa [#allocation10], 1
    %4989 = vsyncpa [#allocation5], 1

</llo_original>
